<compile_context>
chip_gen: v6e
topology: v6e:2x2x1
jax: 0.10.0
libtpu: 0.0.40
codegen_flags: <defaults>
</compile_context>

<pallas_src>
import math
from functools import partial

import jax
import jax.numpy as jnp
from jax import lax
from jax.experimental import pallas as pl
from jax.experimental.pallas import tpu as pltpu

LN_EPS = 1e-5
INV_SQRT2 = 1.0 / math.sqrt(2.0)
LANE = 128
SUBLANE = 8
BM_CAP = 512                       # batch-tile cap (perf review)


def _round_up(n, m):
    return ((n + m - 1) // m) * m


# ----------------------------- in-kernel helpers ------------------------------

_ERF_P = 0.3275911
_ERF_A1 = 0.254829592
_ERF_A2 = -0.284496736
_ERF_A3 = 1.421413741
_ERF_A4 = -1.453152027
_ERF_A5 = 1.061405429


def _erf(x):
    """Abramowitz & Stegun 7.1.26 (|error| < 1.5e-7) — exact-GELU semantics from
    ops guaranteed to lower in Mosaic (exp, mul, add, select)."""
    a = jnp.abs(x)
    t = 1.0 / (1.0 + _ERF_P * a)
    poly = t * (_ERF_A1 + t * (_ERF_A2 + t * (_ERF_A3 + t * (_ERF_A4 + t * _ERF_A5))))
    r = 1.0 - poly * jnp.exp(-a * a)
    return jnp.where(x < 0.0, -r, r)


def _linear_block(x, w, bgb):
    """torch LinearBlock: Linear -> exact GELU -> LayerNorm.
    MXU inputs in bf16, accumulation + elementwise in f32."""
    y = jnp.dot(x.astype(jnp.bfloat16), w,
                preferred_element_type=jnp.float32) + bgb[0:1, :]
    g = 0.5 * y * (1.0 + _erf(y * INV_SQRT2))               # exact GELU
    mean = jnp.mean(g, axis=-1, keepdims=True)              # single-pass LN:
    msq = jnp.mean(g * g, axis=-1, keepdims=True)           # var = E[g^2]-mean^2
    normed = (g - mean) * lax.rsqrt(msq - mean * mean + LN_EPS)
    return normed * bgb[1:2, :] + bgb[2:3, :]


def make_fused_forward_kernel(n_res, width, out_pad):
    W = width

    def kernel(x_ref, temb_ref, emb_w_ref, emb_bgb_ref, l0_w_ref,
               sq_w_ref, bgb_ref, tw_ref, out_w_ref, o_ref):
        # embedding -> layers[0] -> layers[1]
        x = _linear_block(x_ref[...], emb_w_ref[...], emb_bgb_ref[...])
        x = _linear_block(x, l0_w_ref[...], bgb_ref[0])
        x = _linear_block(x, sq_w_ref[0], bgb_ref[1])

        temb = temb_ref[...]                      # (BM, TD_PAD); col time_dim == 1
        for r in range(n_res):                    # residual blocks (unrolled)
            # time projection; bias fused as row `time_dim` of tw (ones column)
            tproj = jnp.dot(temb, tw_ref[r], preferred_element_type=jnp.float32)
            scale = tproj[:, :W]                  # torch chunk order: (scale, shift)
            shift = tproj[:, W:]
            x_in = x
            h = x * (scale + 1.0) + shift         # FiLM: x * (scale + 1) + shift
            h = _linear_block(h, sq_w_ref[1 + 2 * r], bgb_ref[2 + 2 * r])
            h = _linear_block(h, sq_w_ref[2 + 2 * r], bgb_ref[3 + 2 * r])
            x = h + x_in                          # residual add

        # output head: Linear + ExpAct = exp(5 * tanh(y / 5)); lane-dense store
        out_b = bgb_ref[2 + 2 * n_res][0:1, :out_pad]
        y = jnp.dot(x.astype(jnp.bfloat16), out_w_ref[...],
                    preferred_element_type=jnp.float32) + out_b
        o_ref[...] = jnp.exp(5.0 * jnp.tanh(y * 0.2))

    return kernel


# ----------------------------- one-time weight packing ------------------------

def pack_params(params, *, input_dim, width, time_dim, output_dim):
    """Pad / stack / bf16-cast every weight ONCE, off the per-call path."""
    W = width
    assert W % LANE == 0, "width must be a multiple of 128 lanes"
    IN_PAD = _round_up(input_dim, LANE)
    TD_PAD = _round_up(time_dim + 1, LANE)       # +1 row for the fused time bias
    OUT_PAD = _round_up(output_dim, LANE)
    assert OUT_PAD <= W

    def bgb(p):
        return jnp.stack([p['b'], p['gamma'], p['beta']], 0).astype(jnp.float32)

    emb_w = (jnp.zeros((IN_PAD, 5 * W), jnp.float32)
             .at[:input_dim].set(params['embedding']['w'])
             .astype(jnp.bfloat16))

    sq_ws = [params['layer1']['w']]
    bgbs = [bgb(params['layer0']), bgb(params['layer1'])]
    tws = []
    for rb in params['res_blocks']:
        tw = (jnp.zeros((TD_PAD, 2 * W), jnp.float32)
              .at[:time_dim].set(rb['time_w'])
              .at[time_dim].set(rb['time_b']))   # fused bias row
        tws.append(tw)
        sq_ws += [rb['l0']['w'], rb['l1']['w']]
        bgbs += [bgb(rb['l0']), bgb(rb['l1'])]
    # last bgb entry: row 0 carries the lane-padded output bias
    bgbs.append(jnp.zeros((3, W), jnp.float32)
                .at[0, :output_dim].set(params['output']['b']))

    out_w = (jnp.zeros((W, OUT_PAD), jnp.float32)
             .at[:, :output_dim].set(params['output']['w'])
             .astype(jnp.bfloat16))

    return dict(
        emb_w=emb_w,                                          # (IN_PAD, 5W) bf16
        emb_bgb=bgb(params['embedding']),                     # (3, 5W)      f32
        l0_w=params['layer0']['w'].astype(jnp.bfloat16),      # (5W, W)      bf16
        sq_w=jnp.stack(sq_ws, 0).astype(jnp.bfloat16),        # (1+2n, W, W) bf16
        bgb=jnp.stack(bgbs, 0),                               # (3+2n, 3, W) f32
        tw=jnp.stack(tws, 0).astype(jnp.bfloat16),            # (n, TD_PAD, 2W)
        out_w=out_w,                                          # (W, OUT_PAD) bf16
    )


# ----------------------------- forward (jitted) --------------------------------

def sinusoidal_position_embedding(t, dim, base):
    half = dim // 2
    e = math.log(base) / (half - 1)
    freqs = jnp.exp(jnp.arange(half, dtype=jnp.float32) * -e)
    arg = t[:, None] * freqs[None, :]
    return jnp.concatenate([jnp.sin(arg), jnp.cos(arg)], axis=1)


@partial(jax.jit, static_argnames=("num_classes", "input_dim", "time_dim",
                                   "time_base", "width", "output_dim", "n_res"))
def model_cube_forward(packed, inputs, t, *, num_classes, input_dim, time_dim,
                       time_base, width, output_dim, n_res):
    B = inputs.shape[0]
    W = width
    IN_PAD = _round_up(input_dim, LANE)
    TD_PAD = _round_up(time_dim + 1, LANE)
    OUT_PAD = _round_up(output_dim, LANE)

    # glue: one-hot + flatten, sinusoidal time embedding (shared by all blocks)
    x = jax.nn.one_hot(inputs.astype(jnp.int32), num_classes, dtype=jnp.float32)
    x = x.reshape(B, input_dim)
    t_emb = sinusoidal_position_embedding(t, time_dim, time_base)

    # batch tiling: pad to sublane, cap tile, keep an even grid for v7x 2-TC split
    B_pad = _round_up(B, SUBLANE)
    if B_pad <= BM_CAP:
        BM = B_pad
    else:
        BM = BM_CAP
        B_pad = _round_up(B_pad, 2 * BM)
    grid = (B_pad // BM,)

    x_p = (jnp.zeros((B_pad, IN_PAD), jnp.float32)
           .at[:B, :input_dim].set(x)
           .astype(jnp.bfloat16))                       # one-hot is exact in bf16
    temb_p = (jnp.zeros((B_pad, TD_PAD), jnp.float32)
              .at[:B, :time_dim].set(t_emb)
              .at[:, time_dim].set(1.0)                 # ones column -> fused bias
              .astype(jnp.bfloat16))

    operands = (x_p, temb_p, packed['emb_w'], packed['emb_bgb'], packed['l0_w'],
                packed['sq_w'], packed['bgb'], packed['tw'], packed['out_w'])

    def batch_spec(feat):
        return pl.BlockSpec((BM, feat), lambda i: (i, 0))

    def whole_spec(arr):      # whole weight resident, same block every grid step
        return pl.BlockSpec(arr.shape, lambda i, nd=arr.ndim: (0,) * nd)

    in_specs = [batch_spec(IN_PAD), batch_spec(TD_PAD)]
    in_specs += [whole_spec(op) for op in operands[2:]]

    out = pl.pallas_call(
        make_fused_forward_kernel(n_res, W, OUT_PAD),
        out_shape=jax.ShapeDtypeStruct((B_pad, OUT_PAD), jnp.float32),
        grid=grid,
        in_specs=in_specs,
        out_specs=pl.BlockSpec((BM, OUT_PAD), lambda i: (i, 0)),
        compiler_params=pltpu.CompilerParams(
            dimension_semantics=("parallel",)),          # megacore split (v7x)
    )(*operands)
    return out[:B, :output_dim]


# ----------------------------- init + pure-JAX f32 reference -------------------

def init_linear(key, fan_in, fan_out):
    kw, kb = jax.random.split(key)
    bound = 1.0 / math.sqrt(fan_in)
    w = jax.random.uniform(kw, (fan_in, fan_out), jnp.float32, -bound, bound)
    b = jax.random.uniform(kb, (fan_out,), jnp.float32, -bound, bound)
    return w, b


def init_model(key, input_dim, output_dim, time_dim, width, n_res):
    keys = iter(jax.random.split(key, 4 + 3 * n_res))

    def lin_block(fan_in, fan_out):
        w, b = init_linear(next(keys), fan_in, fan_out)
        return dict(w=w, b=b,
                    gamma=jnp.ones((fan_out,), jnp.float32),
                    beta=jnp.zeros((fan_out,), jnp.float32))

    params = dict(
        embedding=lin_block(input_dim, 5 * width),
        layer0=lin_block(5 * width, width),
        layer1=lin_block(width, width),
        res_blocks=[],
    )
    for _ in range(n_res):
        tw, tb = init_linear(next(keys), time_dim, 2 * width)
        params['res_blocks'].append(dict(
            time_w=tw, time_b=tb,
            l0=lin_block(width, width),
            l1=lin_block(width, width)))
    ow, ob = init_linear(next(keys), width, output_dim)
    params['output'] = dict(w=ow, b=ob)
    return params


def _linear_block_ref(x, p):
    y = x @ p['w'] + p['b']
    g = 0.5 * y * (1.0 + lax.erf(y * INV_SQRT2))
    mean = jnp.mean(g, -1, keepdims=True)
    var = jnp.mean((g - mean) ** 2, -1, keepdims=True)
    return (g - mean) / jnp.sqrt(var + LN_EPS) * p['gamma'] + p['beta']


def model_cube_reference(params, inputs, t, *, num_classes, input_dim,
                         time_dim, time_base, width):
    x = jax.nn.one_hot(inputs.astype(jnp.int32), num_classes, dtype=jnp.float32)
    x = x.reshape(-1, input_dim)
    x = _linear_block_ref(x, params['embedding'])
    x = _linear_block_ref(x, params['layer0'])
    x = _linear_block_ref(x, params['layer1'])
    t_emb = sinusoidal_position_embedding(t, time_dim, time_base)
    for rb in params['res_blocks']:
        tproj = t_emb @ rb['time_w'] + rb['time_b']
        scale, shift = tproj[:, :width], tproj[:, width:]
        h = x * (scale + 1.0) + shift
        h = _linear_block_ref(h, rb['l0'])
        h = _linear_block_ref(h, rb['l1'])
        x = h + x
    y = x @ params['output']['w'] + params['output']['b']
    return jnp.exp(5.0 * jnp.tanh(y / 5.0))


# ----------------------------- main --------------------------------------------

if __name__ == "__main__":
    # small but architecture-consistent configuration
    num_classes = 6
    n_positions = 8
    input_dim = n_positions * num_classes        # 48
    width = 128
    time_dim = 32
    output_dim = 12
    n_res = 2
    time_base = 100
    B = 2

    key = jax.random.PRNGKey(0)
    kp, ki, kt = jax.random.split(key, 3)
    params = init_model(kp, input_dim, output_dim, time_dim, width, n_res)
    inputs = jax.random.randint(ki, (B, n_positions), 0, num_classes)  # cube state
    t = jax.random.uniform(kt, (B,), jnp.float32, 0.0, 1.0)            # diffusion time

    # one-time packing (hoisted off the per-call path)
    packed = jax.block_until_ready(
        pack_params(params, input_dim=input_dim, width=width,
                    time_dim=time_dim, output_dim=output_dim))

    out = model_cube_forward(packed, inputs, t,
                             num_classes=num_classes, input_dim=input_dim,
                             time_dim=time_dim, time_base=time_base,
                             width=width, output_dim=output_dim, n_res=n_res)
    out = jax.block_until_ready(out)

    assert out.shape == (B, output_dim)
    assert bool(jnp.all(jnp.isfinite(out))) and bool(jnp.all(out > 0.0))  # ExpAct > 0

    # tolerance-asserted pure-JAX f32 reference (bf16 MXU inputs => loose tol)
    ref = model_cube_reference(params, inputs, t, num_classes=num_classes,
                               input_dim=input_dim, time_dim=time_dim,
                               time_base=time_base, width=width)
    rel = float(jnp.max(jnp.abs(out - ref) / (jnp.abs(ref) + 1e-2)))
    assert rel < 0.25, f"kernel vs f32 reference max relative error too large: {rel}"
    print("KERNEL_OK")
</pallas_src>

<mosaic_0001>
module attributes {stable_mosaic.version = 11 : i64} {
  func.func @kernel(%arg0: i32, %arg1: memref<8x128xbf16, #tpu.memory_space<vmem>>, %arg2: memref<8x128xbf16, #tpu.memory_space<vmem>>, %arg3: memref<128x640xbf16, #tpu.memory_space<vmem>>, %arg4: memref<3x640xf32, #tpu.memory_space<vmem>>, %arg5: memref<640x128xbf16, #tpu.memory_space<vmem>>, %arg6: memref<5x128x128xbf16, #tpu.memory_space<vmem>>, %arg7: memref<7x3x128xf32, #tpu.memory_space<vmem>>, %arg8: memref<2x128x256xbf16, #tpu.memory_space<vmem>>, %arg9: memref<128x128xbf16, #tpu.memory_space<vmem>>, %arg10: memref<8x128xf32, #tpu.memory_space<vmem>>) attributes {dimension_semantics = [#tpu.dimension_semantics<parallel>], iteration_bounds = array<i64: 1>, scalar_prefetch = 0 : i64, scratch_operands = 0 : i64, tpu.core_type = #tpu.core_type<tc>, window_params = [{transform_indices = @transform_0, window_bounds = array<i64: 8, 128>}, {transform_indices = @transform_1, window_bounds = array<i64: 8, 128>}, {pipeline_mode = #tpu.pipeline_mode<synchronous>, transform_indices = @transform_2, window_bounds = array<i64: 128, 640>}, {pipeline_mode = #tpu.pipeline_mode<synchronous>, transform_indices = @transform_3, window_bounds = array<i64: 3, 640>}, {pipeline_mode = #tpu.pipeline_mode<synchronous>, transform_indices = @transform_4, window_bounds = array<i64: 640, 128>}, {pipeline_mode = #tpu.pipeline_mode<synchronous>, transform_indices = @transform_5, window_bounds = array<i64: 5, 128, 128>}, {pipeline_mode = #tpu.pipeline_mode<synchronous>, transform_indices = @transform_6, window_bounds = array<i64: 7, 3, 128>}, {pipeline_mode = #tpu.pipeline_mode<synchronous>, transform_indices = @transform_7, window_bounds = array<i64: 2, 128, 256>}, {pipeline_mode = #tpu.pipeline_mode<synchronous>, transform_indices = @transform_8, window_bounds = array<i64: 128, 128>}, {transform_indices = @transform_9, window_bounds = array<i64: 8, 128>}]} {
    %c0 = arith.constant 0 : index
    %c0_0 = arith.constant 0 : index
    %0 = vector.load %arg1[%c0, %c0_0] : memref<8x128xbf16, #tpu.memory_space<vmem>>, vector<8x128xbf16>
    %c0_1 = arith.constant 0 : index
    %c0_2 = arith.constant 0 : index
    %1 = vector.load %arg3[%c0_1, %c0_2] : memref<128x640xbf16, #tpu.memory_space<vmem>>, vector<128x640xbf16>
    %c0_3 = arith.constant 0 : index
    %c0_4 = arith.constant 0 : index
    %2 = vector.load %arg4[%c0_3, %c0_4] : memref<3x640xf32, #tpu.memory_space<vmem>>, vector<3x640xf32>
    %cst = arith.constant dense<0.000000e+00> : vector<8x640xf32>
    %3 = tpu.matmul %0, %1, %cst {dimension_numbers = #tpu.dot_dimension_numbers<[1], [0], [0], [1], [0, 0, 1, 1], [], []>} : vector<8x128xbf16>, vector<128x640xbf16>, vector<8x640xf32> -> vector<8x640xf32>
    %4 = vector.extract_strided_slice %2 {offsets = [0, 0], sizes = [1, 640], strides = [1, 1]} : vector<3x640xf32> to vector<1x640xf32>
    %5 = vector.broadcast %4 : vector<1x640xf32> to vector<8x640xf32>
    %6 = arith.addf %3, %5 : vector<8x640xf32>
    %cst_5 = arith.constant 5.000000e-01 : f32
    %7 = vector.broadcast %cst_5 : f32 to vector<8x640xf32>
    %8 = arith.mulf %7, %6 : vector<8x640xf32>
    %cst_6 = arith.constant 0.707106769 : f32
    %9 = vector.broadcast %cst_6 : f32 to vector<8x640xf32>
    %10 = arith.mulf %6, %9 : vector<8x640xf32>
    %11 = math.absf %10 : vector<8x640xf32>
    %cst_7 = arith.constant 0.327591091 : f32
    %12 = vector.broadcast %cst_7 : f32 to vector<8x640xf32>
    %13 = arith.mulf %12, %11 : vector<8x640xf32>
    %cst_8 = arith.constant 1.000000e+00 : f32
    %14 = vector.broadcast %cst_8 : f32 to vector<8x640xf32>
    %15 = arith.addf %14, %13 : vector<8x640xf32>
    %cst_9 = arith.constant 1.000000e+00 : f32
    %16 = vector.broadcast %cst_9 : f32 to vector<8x640xf32>
    %17 = arith.divf %16, %15 : vector<8x640xf32>
    %cst_10 = arith.constant 1.06140542 : f32
    %18 = vector.broadcast %cst_10 : f32 to vector<8x640xf32>
    %19 = arith.mulf %17, %18 : vector<8x640xf32>
    %cst_11 = arith.constant -1.45315206 : f32
    %20 = vector.broadcast %cst_11 : f32 to vector<8x640xf32>
    %21 = arith.addf %20, %19 : vector<8x640xf32>
    %22 = arith.mulf %17, %21 : vector<8x640xf32>
    %cst_12 = arith.constant 1.42141378 : f32
    %23 = vector.broadcast %cst_12 : f32 to vector<8x640xf32>
    %24 = arith.addf %23, %22 : vector<8x640xf32>
    %25 = arith.mulf %17, %24 : vector<8x640xf32>
    %cst_13 = arith.constant -0.284496725 : f32
    %26 = vector.broadcast %cst_13 : f32 to vector<8x640xf32>
    %27 = arith.addf %26, %25 : vector<8x640xf32>
    %28 = arith.mulf %17, %27 : vector<8x640xf32>
    %cst_14 = arith.constant 0.254829586 : f32
    %29 = vector.broadcast %cst_14 : f32 to vector<8x640xf32>
    %30 = arith.addf %29, %28 : vector<8x640xf32>
    %31 = arith.mulf %17, %30 : vector<8x640xf32>
    %cst_15 = arith.constant 0.000000e+00 : f32
    %32 = vector.broadcast %cst_15 : f32 to vector<8x640xf32>
    %33 = arith.subf %32, %11 : vector<8x640xf32>
    %34 = arith.mulf %33, %11 : vector<8x640xf32>
    %35 = math.exp %34 : vector<8x640xf32>
    %36 = arith.mulf %31, %35 : vector<8x640xf32>
    %cst_16 = arith.constant 1.000000e+00 : f32
    %37 = vector.broadcast %cst_16 : f32 to vector<8x640xf32>
    %38 = arith.subf %37, %36 : vector<8x640xf32>
    %cst_17 = arith.constant 0.000000e+00 : f32
    %39 = vector.broadcast %cst_17 : f32 to vector<8x640xf32>
    %40 = arith.cmpf olt, %10, %39 : vector<8x640xf32>
    %cst_18 = arith.constant 0.000000e+00 : f32
    %41 = vector.broadcast %cst_18 : f32 to vector<8x640xf32>
    %42 = arith.subf %41, %38 : vector<8x640xf32>
    %43 = arith.select %40, %42, %38 : vector<8x640xi1>, vector<8x640xf32>
    %cst_19 = arith.constant 1.000000e+00 : f32
    %44 = vector.broadcast %cst_19 : f32 to vector<8x640xf32>
    %45 = arith.addf %44, %43 : vector<8x640xf32>
    %46 = arith.mulf %8, %45 : vector<8x640xf32>
    %cst_20 = arith.constant dense<0.000000e+00> : vector<8xf32>
    %47 = vector.multi_reduction <add>, %46, %cst_20 [1] : vector<8x640xf32> to vector<8xf32>
    %48 = vector.shape_cast %47 : vector<8xf32> to vector<8x1xf32>
    %cst_21 = arith.constant 6.400000e+02 : f32
    %49 = vector.broadcast %cst_21 : f32 to vector<8x1xf32>
    %50 = arith.divf %48, %49 : vector<8x1xf32>
    %51 = arith.mulf %46, %46 : vector<8x640xf32>
    %cst_22 = arith.constant dense<0.000000e+00> : vector<8xf32>
    %52 = vector.multi_reduction <add>, %51, %cst_22 [1] : vector<8x640xf32> to vector<8xf32>
    %53 = vector.shape_cast %52 : vector<8xf32> to vector<8x1xf32>
    %cst_23 = arith.constant 6.400000e+02 : f32
    %54 = vector.broadcast %cst_23 : f32 to vector<8x1xf32>
    %55 = arith.divf %53, %54 : vector<8x1xf32>
    %56 = vector.broadcast %50 : vector<8x1xf32> to vector<8x640xf32>
    %57 = arith.subf %46, %56 : vector<8x640xf32>
    %58 = arith.mulf %50, %50 : vector<8x1xf32>
    %59 = arith.subf %55, %58 : vector<8x1xf32>
    %cst_24 = arith.constant 9.99999974E-6 : f32
    %60 = vector.broadcast %cst_24 : f32 to vector<8x1xf32>
    %61 = arith.addf %59, %60 : vector<8x1xf32>
    %62 = math.rsqrt %61 : vector<8x1xf32>
    %63 = vector.broadcast %62 : vector<8x1xf32> to vector<8x640xf32>
    %64 = arith.mulf %57, %63 : vector<8x640xf32>
    %65 = vector.extract_strided_slice %2 {offsets = [1, 0], sizes = [1, 640], strides = [1, 1]} : vector<3x640xf32> to vector<1x640xf32>
    %66 = vector.broadcast %65 : vector<1x640xf32> to vector<8x640xf32>
    %67 = arith.mulf %64, %66 : vector<8x640xf32>
    %68 = vector.extract_strided_slice %2 {offsets = [2, 0], sizes = [1, 640], strides = [1, 1]} : vector<3x640xf32> to vector<1x640xf32>
    %69 = vector.broadcast %68 : vector<1x640xf32> to vector<8x640xf32>
    %70 = arith.addf %67, %69 : vector<8x640xf32>
    %c0_25 = arith.constant 0 : index
    %c0_26 = arith.constant 0 : index
    %71 = vector.load %arg5[%c0_25, %c0_26] : memref<640x128xbf16, #tpu.memory_space<vmem>>, vector<640x128xbf16>
    %c0_27 = arith.constant 0 : index
    %c0_28 = arith.constant 0 : index
    %c0_29 = arith.constant 0 : index
    %72 = vector.load %arg7[%c0_27, %c0_28, %c0_29] : memref<7x3x128xf32, #tpu.memory_space<vmem>>, vector<1x3x128xf32>
    %73 = vector.shape_cast %72 : vector<1x3x128xf32> to vector<3x128xf32>
    %74 = arith.truncf %70 : vector<8x640xf32> to vector<8x640xbf16>
    %cst_30 = arith.constant dense<0.000000e+00> : vector<8x128xf32>
    %75 = tpu.matmul %74, %71, %cst_30 {dimension_numbers = #tpu.dot_dimension_numbers<[1], [0], [0], [1], [0, 0, 1, 1], [], []>} : vector<8x640xbf16>, vector<640x128xbf16>, vector<8x128xf32> -> vector<8x128xf32>
    %76 = vector.extract_strided_slice %73 {offsets = [0, 0], sizes = [1, 128], strides = [1, 1]} : vector<3x128xf32> to vector<1x128xf32>
    %77 = vector.broadcast %76 : vector<1x128xf32> to vector<8x128xf32>
    %78 = arith.addf %75, %77 : vector<8x128xf32>
    %cst_31 = arith.constant 5.000000e-01 : f32
    %79 = vector.broadcast %cst_31 : f32 to vector<8x128xf32>
    %80 = arith.mulf %79, %78 : vector<8x128xf32>
    %cst_32 = arith.constant 0.707106769 : f32
    %81 = vector.broadcast %cst_32 : f32 to vector<8x128xf32>
    %82 = arith.mulf %78, %81 : vector<8x128xf32>
    %83 = math.absf %82 : vector<8x128xf32>
    %cst_33 = arith.constant 0.327591091 : f32
    %84 = vector.broadcast %cst_33 : f32 to vector<8x128xf32>
    %85 = arith.mulf %84, %83 : vector<8x128xf32>
    %cst_34 = arith.constant 1.000000e+00 : f32
    %86 = vector.broadcast %cst_34 : f32 to vector<8x128xf32>
    %87 = arith.addf %86, %85 : vector<8x128xf32>
    %cst_35 = arith.constant 1.000000e+00 : f32
    %88 = vector.broadcast %cst_35 : f32 to vector<8x128xf32>
    %89 = arith.divf %88, %87 : vector<8x128xf32>
    %cst_36 = arith.constant 1.06140542 : f32
    %90 = vector.broadcast %cst_36 : f32 to vector<8x128xf32>
    %91 = arith.mulf %89, %90 : vector<8x128xf32>
    %cst_37 = arith.constant -1.45315206 : f32
    %92 = vector.broadcast %cst_37 : f32 to vector<8x128xf32>
    %93 = arith.addf %92, %91 : vector<8x128xf32>
    %94 = arith.mulf %89, %93 : vector<8x128xf32>
    %cst_38 = arith.constant 1.42141378 : f32
    %95 = vector.broadcast %cst_38 : f32 to vector<8x128xf32>
    %96 = arith.addf %95, %94 : vector<8x128xf32>
    %97 = arith.mulf %89, %96 : vector<8x128xf32>
    %cst_39 = arith.constant -0.284496725 : f32
    %98 = vector.broadcast %cst_39 : f32 to vector<8x128xf32>
    %99 = arith.addf %98, %97 : vector<8x128xf32>
    %100 = arith.mulf %89, %99 : vector<8x128xf32>
    %cst_40 = arith.constant 0.254829586 : f32
    %101 = vector.broadcast %cst_40 : f32 to vector<8x128xf32>
    %102 = arith.addf %101, %100 : vector<8x128xf32>
    %103 = arith.mulf %89, %102 : vector<8x128xf32>
    %cst_41 = arith.constant 0.000000e+00 : f32
    %104 = vector.broadcast %cst_41 : f32 to vector<8x128xf32>
    %105 = arith.subf %104, %83 : vector<8x128xf32>
    %106 = arith.mulf %105, %83 : vector<8x128xf32>
    %107 = math.exp %106 : vector<8x128xf32>
    %108 = arith.mulf %103, %107 : vector<8x128xf32>
    %cst_42 = arith.constant 1.000000e+00 : f32
    %109 = vector.broadcast %cst_42 : f32 to vector<8x128xf32>
    %110 = arith.subf %109, %108 : vector<8x128xf32>
    %cst_43 = arith.constant 0.000000e+00 : f32
    %111 = vector.broadcast %cst_43 : f32 to vector<8x128xf32>
    %112 = arith.cmpf olt, %82, %111 : vector<8x128xf32>
    %cst_44 = arith.constant 0.000000e+00 : f32
    %113 = vector.broadcast %cst_44 : f32 to vector<8x128xf32>
    %114 = arith.subf %113, %110 : vector<8x128xf32>
    %115 = arith.select %112, %114, %110 : vector<8x128xi1>, vector<8x128xf32>
    %cst_45 = arith.constant 1.000000e+00 : f32
    %116 = vector.broadcast %cst_45 : f32 to vector<8x128xf32>
    %117 = arith.addf %116, %115 : vector<8x128xf32>
    %118 = arith.mulf %80, %117 : vector<8x128xf32>
    %cst_46 = arith.constant dense<0.000000e+00> : vector<8xf32>
    %119 = vector.multi_reduction <add>, %118, %cst_46 [1] : vector<8x128xf32> to vector<8xf32>
    %120 = vector.shape_cast %119 : vector<8xf32> to vector<8x1xf32>
    %cst_47 = arith.constant 1.280000e+02 : f32
    %121 = vector.broadcast %cst_47 : f32 to vector<8x1xf32>
    %122 = arith.divf %120, %121 : vector<8x1xf32>
    %123 = arith.mulf %118, %118 : vector<8x128xf32>
    %cst_48 = arith.constant dense<0.000000e+00> : vector<8xf32>
    %124 = vector.multi_reduction <add>, %123, %cst_48 [1] : vector<8x128xf32> to vector<8xf32>
    %125 = vector.shape_cast %124 : vector<8xf32> to vector<8x1xf32>
    %cst_49 = arith.constant 1.280000e+02 : f32
    %126 = vector.broadcast %cst_49 : f32 to vector<8x1xf32>
    %127 = arith.divf %125, %126 : vector<8x1xf32>
    %128 = vector.broadcast %122 : vector<8x1xf32> to vector<8x128xf32>
    %129 = arith.subf %118, %128 : vector<8x128xf32>
    %130 = arith.mulf %122, %122 : vector<8x1xf32>
    %131 = arith.subf %127, %130 : vector<8x1xf32>
    %cst_50 = arith.constant 9.99999974E-6 : f32
    %132 = vector.broadcast %cst_50 : f32 to vector<8x1xf32>
    %133 = arith.addf %131, %132 : vector<8x1xf32>
    %134 = math.rsqrt %133 : vector<8x1xf32>
    %135 = vector.broadcast %134 : vector<8x1xf32> to vector<8x128xf32>
    %136 = arith.mulf %129, %135 : vector<8x128xf32>
    %137 = vector.extract_strided_slice %73 {offsets = [1, 0], sizes = [1, 128], strides = [1, 1]} : vector<3x128xf32> to vector<1x128xf32>
    %138 = vector.broadcast %137 : vector<1x128xf32> to vector<8x128xf32>
    %139 = arith.mulf %136, %138 : vector<8x128xf32>
    %140 = vector.extract_strided_slice %73 {offsets = [2, 0], sizes = [1, 128], strides = [1, 1]} : vector<3x128xf32> to vector<1x128xf32>
    %141 = vector.broadcast %140 : vector<1x128xf32> to vector<8x128xf32>
    %142 = arith.addf %139, %141 : vector<8x128xf32>
    %c0_51 = arith.constant 0 : index
    %c0_52 = arith.constant 0 : index
    %c0_53 = arith.constant 0 : index
    %143 = vector.load %arg6[%c0_51, %c0_52, %c0_53] : memref<5x128x128xbf16, #tpu.memory_space<vmem>>, vector<1x128x128xbf16>
    %144 = vector.shape_cast %143 : vector<1x128x128xbf16> to vector<128x128xbf16>
    %c1 = arith.constant 1 : index
    %c0_54 = arith.constant 0 : index
    %c0_55 = arith.constant 0 : index
    %145 = vector.load %arg7[%c1, %c0_54, %c0_55] : memref<7x3x128xf32, #tpu.memory_space<vmem>>, vector<1x3x128xf32>
    %146 = vector.shape_cast %145 : vector<1x3x128xf32> to vector<3x128xf32>
    %147 = arith.truncf %142 : vector<8x128xf32> to vector<8x128xbf16>
    %cst_56 = arith.constant dense<0.000000e+00> : vector<8x128xf32>
    %148 = tpu.matmul %147, %144, %cst_56 {dimension_numbers = #tpu.dot_dimension_numbers<[1], [0], [0], [1], [0, 0, 1, 1], [], []>} : vector<8x128xbf16>, vector<128x128xbf16>, vector<8x128xf32> -> vector<8x128xf32>
    %149 = vector.extract_strided_slice %146 {offsets = [0, 0], sizes = [1, 128], strides = [1, 1]} : vector<3x128xf32> to vector<1x128xf32>
    %150 = vector.broadcast %149 : vector<1x128xf32> to vector<8x128xf32>
    %151 = arith.addf %148, %150 : vector<8x128xf32>
    %cst_57 = arith.constant 5.000000e-01 : f32
    %152 = vector.broadcast %cst_57 : f32 to vector<8x128xf32>
    %153 = arith.mulf %152, %151 : vector<8x128xf32>
    %cst_58 = arith.constant 0.707106769 : f32
    %154 = vector.broadcast %cst_58 : f32 to vector<8x128xf32>
    %155 = arith.mulf %151, %154 : vector<8x128xf32>
    %156 = math.absf %155 : vector<8x128xf32>
    %cst_59 = arith.constant 0.327591091 : f32
    %157 = vector.broadcast %cst_59 : f32 to vector<8x128xf32>
    %158 = arith.mulf %157, %156 : vector<8x128xf32>
    %cst_60 = arith.constant 1.000000e+00 : f32
    %159 = vector.broadcast %cst_60 : f32 to vector<8x128xf32>
    %160 = arith.addf %159, %158 : vector<8x128xf32>
    %cst_61 = arith.constant 1.000000e+00 : f32
    %161 = vector.broadcast %cst_61 : f32 to vector<8x128xf32>
    %162 = arith.divf %161, %160 : vector<8x128xf32>
    %cst_62 = arith.constant 1.06140542 : f32
    %163 = vector.broadcast %cst_62 : f32 to vector<8x128xf32>
    %164 = arith.mulf %162, %163 : vector<8x128xf32>
    %cst_63 = arith.constant -1.45315206 : f32
    %165 = vector.broadcast %cst_63 : f32 to vector<8x128xf32>
    %166 = arith.addf %165, %164 : vector<8x128xf32>
    %167 = arith.mulf %162, %166 : vector<8x128xf32>
    %cst_64 = arith.constant 1.42141378 : f32
    %168 = vector.broadcast %cst_64 : f32 to vector<8x128xf32>
    %169 = arith.addf %168, %167 : vector<8x128xf32>
    %170 = arith.mulf %162, %169 : vector<8x128xf32>
    %cst_65 = arith.constant -0.284496725 : f32
    %171 = vector.broadcast %cst_65 : f32 to vector<8x128xf32>
    %172 = arith.addf %171, %170 : vector<8x128xf32>
    %173 = arith.mulf %162, %172 : vector<8x128xf32>
    %cst_66 = arith.constant 0.254829586 : f32
    %174 = vector.broadcast %cst_66 : f32 to vector<8x128xf32>
    %175 = arith.addf %174, %173 : vector<8x128xf32>
    %176 = arith.mulf %162, %175 : vector<8x128xf32>
    %cst_67 = arith.constant 0.000000e+00 : f32
    %177 = vector.broadcast %cst_67 : f32 to vector<8x128xf32>
    %178 = arith.subf %177, %156 : vector<8x128xf32>
    %179 = arith.mulf %178, %156 : vector<8x128xf32>
    %180 = math.exp %179 : vector<8x128xf32>
    %181 = arith.mulf %176, %180 : vector<8x128xf32>
    %cst_68 = arith.constant 1.000000e+00 : f32
    %182 = vector.broadcast %cst_68 : f32 to vector<8x128xf32>
    %183 = arith.subf %182, %181 : vector<8x128xf32>
    %cst_69 = arith.constant 0.000000e+00 : f32
    %184 = vector.broadcast %cst_69 : f32 to vector<8x128xf32>
    %185 = arith.cmpf olt, %155, %184 : vector<8x128xf32>
    %cst_70 = arith.constant 0.000000e+00 : f32
    %186 = vector.broadcast %cst_70 : f32 to vector<8x128xf32>
    %187 = arith.subf %186, %183 : vector<8x128xf32>
    %188 = arith.select %185, %187, %183 : vector<8x128xi1>, vector<8x128xf32>
    %cst_71 = arith.constant 1.000000e+00 : f32
    %189 = vector.broadcast %cst_71 : f32 to vector<8x128xf32>
    %190 = arith.addf %189, %188 : vector<8x128xf32>
    %191 = arith.mulf %153, %190 : vector<8x128xf32>
    %cst_72 = arith.constant dense<0.000000e+00> : vector<8xf32>
    %192 = vector.multi_reduction <add>, %191, %cst_72 [1] : vector<8x128xf32> to vector<8xf32>
    %193 = vector.shape_cast %192 : vector<8xf32> to vector<8x1xf32>
    %cst_73 = arith.constant 1.280000e+02 : f32
    %194 = vector.broadcast %cst_73 : f32 to vector<8x1xf32>
    %195 = arith.divf %193, %194 : vector<8x1xf32>
    %196 = arith.mulf %191, %191 : vector<8x128xf32>
    %cst_74 = arith.constant dense<0.000000e+00> : vector<8xf32>
    %197 = vector.multi_reduction <add>, %196, %cst_74 [1] : vector<8x128xf32> to vector<8xf32>
    %198 = vector.shape_cast %197 : vector<8xf32> to vector<8x1xf32>
    %cst_75 = arith.constant 1.280000e+02 : f32
    %199 = vector.broadcast %cst_75 : f32 to vector<8x1xf32>
    %200 = arith.divf %198, %199 : vector<8x1xf32>
    %201 = vector.broadcast %195 : vector<8x1xf32> to vector<8x128xf32>
    %202 = arith.subf %191, %201 : vector<8x128xf32>
    %203 = arith.mulf %195, %195 : vector<8x1xf32>
    %204 = arith.subf %200, %203 : vector<8x1xf32>
    %cst_76 = arith.constant 9.99999974E-6 : f32
    %205 = vector.broadcast %cst_76 : f32 to vector<8x1xf32>
    %206 = arith.addf %204, %205 : vector<8x1xf32>
    %207 = math.rsqrt %206 : vector<8x1xf32>
    %208 = vector.broadcast %207 : vector<8x1xf32> to vector<8x128xf32>
    %209 = arith.mulf %202, %208 : vector<8x128xf32>
    %210 = vector.extract_strided_slice %146 {offsets = [1, 0], sizes = [1, 128], strides = [1, 1]} : vector<3x128xf32> to vector<1x128xf32>
    %211 = vector.broadcast %210 : vector<1x128xf32> to vector<8x128xf32>
    %212 = arith.mulf %209, %211 : vector<8x128xf32>
    %213 = vector.extract_strided_slice %146 {offsets = [2, 0], sizes = [1, 128], strides = [1, 1]} : vector<3x128xf32> to vector<1x128xf32>
    %214 = vector.broadcast %213 : vector<1x128xf32> to vector<8x128xf32>
    %215 = arith.addf %212, %214 : vector<8x128xf32>
    %c0_77 = arith.constant 0 : index
    %c0_78 = arith.constant 0 : index
    %216 = vector.load %arg2[%c0_77, %c0_78] : memref<8x128xbf16, #tpu.memory_space<vmem>>, vector<8x128xbf16>
    %c0_79 = arith.constant 0 : index
    %c0_80 = arith.constant 0 : index
    %c0_81 = arith.constant 0 : index
    %217 = vector.load %arg8[%c0_79, %c0_80, %c0_81] : memref<2x128x256xbf16, #tpu.memory_space<vmem>>, vector<1x128x256xbf16>
    %218 = vector.shape_cast %217 : vector<1x128x256xbf16> to vector<128x256xbf16>
    %cst_82 = arith.constant dense<0.000000e+00> : vector<8x256xf32>
    %219 = tpu.matmul %216, %218, %cst_82 {dimension_numbers = #tpu.dot_dimension_numbers<[1], [0], [0], [1], [0, 0, 1, 1], [], []>} : vector<8x128xbf16>, vector<128x256xbf16>, vector<8x256xf32> -> vector<8x256xf32>
    %220 = vector.extract_strided_slice %219 {offsets = [0, 0], sizes = [8, 128], strides = [1, 1]} : vector<8x256xf32> to vector<8x128xf32>
    %221 = vector.extract_strided_slice %219 {offsets = [0, 128], sizes = [8, 128], strides = [1, 1]} : vector<8x256xf32> to vector<8x128xf32>
    %cst_83 = arith.constant 1.000000e+00 : f32
    %222 = vector.broadcast %cst_83 : f32 to vector<8x128xf32>
    %223 = arith.addf %220, %222 : vector<8x128xf32>
    %224 = arith.mulf %215, %223 : vector<8x128xf32>
    %225 = arith.addf %224, %221 : vector<8x128xf32>
    %c1_84 = arith.constant 1 : index
    %c0_85 = arith.constant 0 : index
    %c0_86 = arith.constant 0 : index
    %226 = vector.load %arg6[%c1_84, %c0_85, %c0_86] : memref<5x128x128xbf16, #tpu.memory_space<vmem>>, vector<1x128x128xbf16>
    %227 = vector.shape_cast %226 : vector<1x128x128xbf16> to vector<128x128xbf16>
    %c2 = arith.constant 2 : index
    %c0_87 = arith.constant 0 : index
    %c0_88 = arith.constant 0 : index
    %228 = vector.load %arg7[%c2, %c0_87, %c0_88] : memref<7x3x128xf32, #tpu.memory_space<vmem>>, vector<1x3x128xf32>
    %229 = vector.shape_cast %228 : vector<1x3x128xf32> to vector<3x128xf32>
    %230 = arith.truncf %225 : vector<8x128xf32> to vector<8x128xbf16>
    %cst_89 = arith.constant dense<0.000000e+00> : vector<8x128xf32>
    %231 = tpu.matmul %230, %227, %cst_89 {dimension_numbers = #tpu.dot_dimension_numbers<[1], [0], [0], [1], [0, 0, 1, 1], [], []>} : vector<8x128xbf16>, vector<128x128xbf16>, vector<8x128xf32> -> vector<8x128xf32>
    %232 = vector.extract_strided_slice %229 {offsets = [0, 0], sizes = [1, 128], strides = [1, 1]} : vector<3x128xf32> to vector<1x128xf32>
    %233 = vector.broadcast %232 : vector<1x128xf32> to vector<8x128xf32>
    %234 = arith.addf %231, %233 : vector<8x128xf32>
    %cst_90 = arith.constant 5.000000e-01 : f32
    %235 = vector.broadcast %cst_90 : f32 to vector<8x128xf32>
    %236 = arith.mulf %235, %234 : vector<8x128xf32>
    %cst_91 = arith.constant 0.707106769 : f32
    %237 = vector.broadcast %cst_91 : f32 to vector<8x128xf32>
    %238 = arith.mulf %234, %237 : vector<8x128xf32>
    %239 = math.absf %238 : vector<8x128xf32>
    %cst_92 = arith.constant 0.327591091 : f32
    %240 = vector.broadcast %cst_92 : f32 to vector<8x128xf32>
    %241 = arith.mulf %240, %239 : vector<8x128xf32>
    %cst_93 = arith.constant 1.000000e+00 : f32
    %242 = vector.broadcast %cst_93 : f32 to vector<8x128xf32>
    %243 = arith.addf %242, %241 : vector<8x128xf32>
    %cst_94 = arith.constant 1.000000e+00 : f32
    %244 = vector.broadcast %cst_94 : f32 to vector<8x128xf32>
    %245 = arith.divf %244, %243 : vector<8x128xf32>
    %cst_95 = arith.constant 1.06140542 : f32
    %246 = vector.broadcast %cst_95 : f32 to vector<8x128xf32>
    %247 = arith.mulf %245, %246 : vector<8x128xf32>
    %cst_96 = arith.constant -1.45315206 : f32
    %248 = vector.broadcast %cst_96 : f32 to vector<8x128xf32>
    %249 = arith.addf %248, %247 : vector<8x128xf32>
    %250 = arith.mulf %245, %249 : vector<8x128xf32>
    %cst_97 = arith.constant 1.42141378 : f32
    %251 = vector.broadcast %cst_97 : f32 to vector<8x128xf32>
    %252 = arith.addf %251, %250 : vector<8x128xf32>
    %253 = arith.mulf %245, %252 : vector<8x128xf32>
    %cst_98 = arith.constant -0.284496725 : f32
    %254 = vector.broadcast %cst_98 : f32 to vector<8x128xf32>
    %255 = arith.addf %254, %253 : vector<8x128xf32>
    %256 = arith.mulf %245, %255 : vector<8x128xf32>
    %cst_99 = arith.constant 0.254829586 : f32
    %257 = vector.broadcast %cst_99 : f32 to vector<8x128xf32>
    %258 = arith.addf %257, %256 : vector<8x128xf32>
    %259 = arith.mulf %245, %258 : vector<8x128xf32>
    %cst_100 = arith.constant 0.000000e+00 : f32
    %260 = vector.broadcast %cst_100 : f32 to vector<8x128xf32>
    %261 = arith.subf %260, %239 : vector<8x128xf32>
    %262 = arith.mulf %261, %239 : vector<8x128xf32>
    %263 = math.exp %262 : vector<8x128xf32>
    %264 = arith.mulf %259, %263 : vector<8x128xf32>
    %cst_101 = arith.constant 1.000000e+00 : f32
    %265 = vector.broadcast %cst_101 : f32 to vector<8x128xf32>
    %266 = arith.subf %265, %264 : vector<8x128xf32>
    %cst_102 = arith.constant 0.000000e+00 : f32
    %267 = vector.broadcast %cst_102 : f32 to vector<8x128xf32>
    %268 = arith.cmpf olt, %238, %267 : vector<8x128xf32>
    %cst_103 = arith.constant 0.000000e+00 : f32
    %269 = vector.broadcast %cst_103 : f32 to vector<8x128xf32>
    %270 = arith.subf %269, %266 : vector<8x128xf32>
    %271 = arith.select %268, %270, %266 : vector<8x128xi1>, vector<8x128xf32>
    %cst_104 = arith.constant 1.000000e+00 : f32
    %272 = vector.broadcast %cst_104 : f32 to vector<8x128xf32>
    %273 = arith.addf %272, %271 : vector<8x128xf32>
    %274 = arith.mulf %236, %273 : vector<8x128xf32>
    %cst_105 = arith.constant dense<0.000000e+00> : vector<8xf32>
    %275 = vector.multi_reduction <add>, %274, %cst_105 [1] : vector<8x128xf32> to vector<8xf32>
    %276 = vector.shape_cast %275 : vector<8xf32> to vector<8x1xf32>
    %cst_106 = arith.constant 1.280000e+02 : f32
    %277 = vector.broadcast %cst_106 : f32 to vector<8x1xf32>
    %278 = arith.divf %276, %277 : vector<8x1xf32>
    %279 = arith.mulf %274, %274 : vector<8x128xf32>
    %cst_107 = arith.constant dense<0.000000e+00> : vector<8xf32>
    %280 = vector.multi_reduction <add>, %279, %cst_107 [1] : vector<8x128xf32> to vector<8xf32>
    %281 = vector.shape_cast %280 : vector<8xf32> to vector<8x1xf32>
    %cst_108 = arith.constant 1.280000e+02 : f32
    %282 = vector.broadcast %cst_108 : f32 to vector<8x1xf32>
    %283 = arith.divf %281, %282 : vector<8x1xf32>
    %284 = vector.broadcast %278 : vector<8x1xf32> to vector<8x128xf32>
    %285 = arith.subf %274, %284 : vector<8x128xf32>
    %286 = arith.mulf %278, %278 : vector<8x1xf32>
    %287 = arith.subf %283, %286 : vector<8x1xf32>
    %cst_109 = arith.constant 9.99999974E-6 : f32
    %288 = vector.broadcast %cst_109 : f32 to vector<8x1xf32>
    %289 = arith.addf %287, %288 : vector<8x1xf32>
    %290 = math.rsqrt %289 : vector<8x1xf32>
    %291 = vector.broadcast %290 : vector<8x1xf32> to vector<8x128xf32>
    %292 = arith.mulf %285, %291 : vector<8x128xf32>
    %293 = vector.extract_strided_slice %229 {offsets = [1, 0], sizes = [1, 128], strides = [1, 1]} : vector<3x128xf32> to vector<1x128xf32>
    %294 = vector.broadcast %293 : vector<1x128xf32> to vector<8x128xf32>
    %295 = arith.mulf %292, %294 : vector<8x128xf32>
    %296 = vector.extract_strided_slice %229 {offsets = [2, 0], sizes = [1, 128], strides = [1, 1]} : vector<3x128xf32> to vector<1x128xf32>
    %297 = vector.broadcast %296 : vector<1x128xf32> to vector<8x128xf32>
    %298 = arith.addf %295, %297 : vector<8x128xf32>
    %c2_110 = arith.constant 2 : index
    %c0_111 = arith.constant 0 : index
    %c0_112 = arith.constant 0 : index
    %299 = vector.load %arg6[%c2_110, %c0_111, %c0_112] : memref<5x128x128xbf16, #tpu.memory_space<vmem>>, vector<1x128x128xbf16>
    %300 = vector.shape_cast %299 : vector<1x128x128xbf16> to vector<128x128xbf16>
    %c3 = arith.constant 3 : index
    %c0_113 = arith.constant 0 : index
    %c0_114 = arith.constant 0 : index
    %301 = vector.load %arg7[%c3, %c0_113, %c0_114] : memref<7x3x128xf32, #tpu.memory_space<vmem>>, vector<1x3x128xf32>
    %302 = vector.shape_cast %301 : vector<1x3x128xf32> to vector<3x128xf32>
    %303 = arith.truncf %298 : vector<8x128xf32> to vector<8x128xbf16>
    %cst_115 = arith.constant dense<0.000000e+00> : vector<8x128xf32>
    %304 = tpu.matmul %303, %300, %cst_115 {dimension_numbers = #tpu.dot_dimension_numbers<[1], [0], [0], [1], [0, 0, 1, 1], [], []>} : vector<8x128xbf16>, vector<128x128xbf16>, vector<8x128xf32> -> vector<8x128xf32>
    %305 = vector.extract_strided_slice %302 {offsets = [0, 0], sizes = [1, 128], strides = [1, 1]} : vector<3x128xf32> to vector<1x128xf32>
    %306 = vector.broadcast %305 : vector<1x128xf32> to vector<8x128xf32>
    %307 = arith.addf %304, %306 : vector<8x128xf32>
    %cst_116 = arith.constant 5.000000e-01 : f32
    %308 = vector.broadcast %cst_116 : f32 to vector<8x128xf32>
    %309 = arith.mulf %308, %307 : vector<8x128xf32>
    %cst_117 = arith.constant 0.707106769 : f32
    %310 = vector.broadcast %cst_117 : f32 to vector<8x128xf32>
    %311 = arith.mulf %307, %310 : vector<8x128xf32>
    %312 = math.absf %311 : vector<8x128xf32>
    %cst_118 = arith.constant 0.327591091 : f32
    %313 = vector.broadcast %cst_118 : f32 to vector<8x128xf32>
    %314 = arith.mulf %313, %312 : vector<8x128xf32>
    %cst_119 = arith.constant 1.000000e+00 : f32
    %315 = vector.broadcast %cst_119 : f32 to vector<8x128xf32>
    %316 = arith.addf %315, %314 : vector<8x128xf32>
    %cst_120 = arith.constant 1.000000e+00 : f32
    %317 = vector.broadcast %cst_120 : f32 to vector<8x128xf32>
    %318 = arith.divf %317, %316 : vector<8x128xf32>
    %cst_121 = arith.constant 1.06140542 : f32
    %319 = vector.broadcast %cst_121 : f32 to vector<8x128xf32>
    %320 = arith.mulf %318, %319 : vector<8x128xf32>
    %cst_122 = arith.constant -1.45315206 : f32
    %321 = vector.broadcast %cst_122 : f32 to vector<8x128xf32>
    %322 = arith.addf %321, %320 : vector<8x128xf32>
    %323 = arith.mulf %318, %322 : vector<8x128xf32>
    %cst_123 = arith.constant 1.42141378 : f32
    %324 = vector.broadcast %cst_123 : f32 to vector<8x128xf32>
    %325 = arith.addf %324, %323 : vector<8x128xf32>
    %326 = arith.mulf %318, %325 : vector<8x128xf32>
    %cst_124 = arith.constant -0.284496725 : f32
    %327 = vector.broadcast %cst_124 : f32 to vector<8x128xf32>
    %328 = arith.addf %327, %326 : vector<8x128xf32>
    %329 = arith.mulf %318, %328 : vector<8x128xf32>
    %cst_125 = arith.constant 0.254829586 : f32
    %330 = vector.broadcast %cst_125 : f32 to vector<8x128xf32>
    %331 = arith.addf %330, %329 : vector<8x128xf32>
    %332 = arith.mulf %318, %331 : vector<8x128xf32>
    %cst_126 = arith.constant 0.000000e+00 : f32
    %333 = vector.broadcast %cst_126 : f32 to vector<8x128xf32>
    %334 = arith.subf %333, %312 : vector<8x128xf32>
    %335 = arith.mulf %334, %312 : vector<8x128xf32>
    %336 = math.exp %335 : vector<8x128xf32>
    %337 = arith.mulf %332, %336 : vector<8x128xf32>
    %cst_127 = arith.constant 1.000000e+00 : f32
    %338 = vector.broadcast %cst_127 : f32 to vector<8x128xf32>
    %339 = arith.subf %338, %337 : vector<8x128xf32>
    %cst_128 = arith.constant 0.000000e+00 : f32
    %340 = vector.broadcast %cst_128 : f32 to vector<8x128xf32>
    %341 = arith.cmpf olt, %311, %340 : vector<8x128xf32>
    %cst_129 = arith.constant 0.000000e+00 : f32
    %342 = vector.broadcast %cst_129 : f32 to vector<8x128xf32>
    %343 = arith.subf %342, %339 : vector<8x128xf32>
    %344 = arith.select %341, %343, %339 : vector<8x128xi1>, vector<8x128xf32>
    %cst_130 = arith.constant 1.000000e+00 : f32
    %345 = vector.broadcast %cst_130 : f32 to vector<8x128xf32>
    %346 = arith.addf %345, %344 : vector<8x128xf32>
    %347 = arith.mulf %309, %346 : vector<8x128xf32>
    %cst_131 = arith.constant dense<0.000000e+00> : vector<8xf32>
    %348 = vector.multi_reduction <add>, %347, %cst_131 [1] : vector<8x128xf32> to vector<8xf32>
    %349 = vector.shape_cast %348 : vector<8xf32> to vector<8x1xf32>
    %cst_132 = arith.constant 1.280000e+02 : f32
    %350 = vector.broadcast %cst_132 : f32 to vector<8x1xf32>
    %351 = arith.divf %349, %350 : vector<8x1xf32>
    %352 = arith.mulf %347, %347 : vector<8x128xf32>
    %cst_133 = arith.constant dense<0.000000e+00> : vector<8xf32>
    %353 = vector.multi_reduction <add>, %352, %cst_133 [1] : vector<8x128xf32> to vector<8xf32>
    %354 = vector.shape_cast %353 : vector<8xf32> to vector<8x1xf32>
    %cst_134 = arith.constant 1.280000e+02 : f32
    %355 = vector.broadcast %cst_134 : f32 to vector<8x1xf32>
    %356 = arith.divf %354, %355 : vector<8x1xf32>
    %357 = vector.broadcast %351 : vector<8x1xf32> to vector<8x128xf32>
    %358 = arith.subf %347, %357 : vector<8x128xf32>
    %359 = arith.mulf %351, %351 : vector<8x1xf32>
    %360 = arith.subf %356, %359 : vector<8x1xf32>
    %cst_135 = arith.constant 9.99999974E-6 : f32
    %361 = vector.broadcast %cst_135 : f32 to vector<8x1xf32>
    %362 = arith.addf %360, %361 : vector<8x1xf32>
    %363 = math.rsqrt %362 : vector<8x1xf32>
    %364 = vector.broadcast %363 : vector<8x1xf32> to vector<8x128xf32>
    %365 = arith.mulf %358, %364 : vector<8x128xf32>
    %366 = vector.extract_strided_slice %302 {offsets = [1, 0], sizes = [1, 128], strides = [1, 1]} : vector<3x128xf32> to vector<1x128xf32>
    %367 = vector.broadcast %366 : vector<1x128xf32> to vector<8x128xf32>
    %368 = arith.mulf %365, %367 : vector<8x128xf32>
    %369 = vector.extract_strided_slice %302 {offsets = [2, 0], sizes = [1, 128], strides = [1, 1]} : vector<3x128xf32> to vector<1x128xf32>
    %370 = vector.broadcast %369 : vector<1x128xf32> to vector<8x128xf32>
    %371 = arith.addf %368, %370 : vector<8x128xf32>
    %372 = arith.addf %371, %215 : vector<8x128xf32>
    %c1_136 = arith.constant 1 : index
    %c0_137 = arith.constant 0 : index
    %c0_138 = arith.constant 0 : index
    %373 = vector.load %arg8[%c1_136, %c0_137, %c0_138] : memref<2x128x256xbf16, #tpu.memory_space<vmem>>, vector<1x128x256xbf16>
    %374 = vector.shape_cast %373 : vector<1x128x256xbf16> to vector<128x256xbf16>
    %cst_139 = arith.constant dense<0.000000e+00> : vector<8x256xf32>
    %375 = tpu.matmul %216, %374, %cst_139 {dimension_numbers = #tpu.dot_dimension_numbers<[1], [0], [0], [1], [0, 0, 1, 1], [], []>} : vector<8x128xbf16>, vector<128x256xbf16>, vector<8x256xf32> -> vector<8x256xf32>
    %376 = vector.extract_strided_slice %375 {offsets = [0, 0], sizes = [8, 128], strides = [1, 1]} : vector<8x256xf32> to vector<8x128xf32>
    %377 = vector.extract_strided_slice %375 {offsets = [0, 128], sizes = [8, 128], strides = [1, 1]} : vector<8x256xf32> to vector<8x128xf32>
    %cst_140 = arith.constant 1.000000e+00 : f32
    %378 = vector.broadcast %cst_140 : f32 to vector<8x128xf32>
    %379 = arith.addf %376, %378 : vector<8x128xf32>
    %380 = arith.mulf %372, %379 : vector<8x128xf32>
    %381 = arith.addf %380, %377 : vector<8x128xf32>
    %c3_141 = arith.constant 3 : index
    %c0_142 = arith.constant 0 : index
    %c0_143 = arith.constant 0 : index
    %382 = vector.load %arg6[%c3_141, %c0_142, %c0_143] : memref<5x128x128xbf16, #tpu.memory_space<vmem>>, vector<1x128x128xbf16>
    %383 = vector.shape_cast %382 : vector<1x128x128xbf16> to vector<128x128xbf16>
    %c4 = arith.constant 4 : index
    %c0_144 = arith.constant 0 : index
    %c0_145 = arith.constant 0 : index
    %384 = vector.load %arg7[%c4, %c0_144, %c0_145] : memref<7x3x128xf32, #tpu.memory_space<vmem>>, vector<1x3x128xf32>
    %385 = vector.shape_cast %384 : vector<1x3x128xf32> to vector<3x128xf32>
    %386 = arith.truncf %381 : vector<8x128xf32> to vector<8x128xbf16>
    %cst_146 = arith.constant dense<0.000000e+00> : vector<8x128xf32>
    %387 = tpu.matmul %386, %383, %cst_146 {dimension_numbers = #tpu.dot_dimension_numbers<[1], [0], [0], [1], [0, 0, 1, 1], [], []>} : vector<8x128xbf16>, vector<128x128xbf16>, vector<8x128xf32> -> vector<8x128xf32>
    %388 = vector.extract_strided_slice %385 {offsets = [0, 0], sizes = [1, 128], strides = [1, 1]} : vector<3x128xf32> to vector<1x128xf32>
    %389 = vector.broadcast %388 : vector<1x128xf32> to vector<8x128xf32>
    %390 = arith.addf %387, %389 : vector<8x128xf32>
    %cst_147 = arith.constant 5.000000e-01 : f32
    %391 = vector.broadcast %cst_147 : f32 to vector<8x128xf32>
    %392 = arith.mulf %391, %390 : vector<8x128xf32>
    %cst_148 = arith.constant 0.707106769 : f32
    %393 = vector.broadcast %cst_148 : f32 to vector<8x128xf32>
    %394 = arith.mulf %390, %393 : vector<8x128xf32>
    %395 = math.absf %394 : vector<8x128xf32>
    %cst_149 = arith.constant 0.327591091 : f32
    %396 = vector.broadcast %cst_149 : f32 to vector<8x128xf32>
    %397 = arith.mulf %396, %395 : vector<8x128xf32>
    %cst_150 = arith.constant 1.000000e+00 : f32
    %398 = vector.broadcast %cst_150 : f32 to vector<8x128xf32>
    %399 = arith.addf %398, %397 : vector<8x128xf32>
    %cst_151 = arith.constant 1.000000e+00 : f32
    %400 = vector.broadcast %cst_151 : f32 to vector<8x128xf32>
    %401 = arith.divf %400, %399 : vector<8x128xf32>
    %cst_152 = arith.constant 1.06140542 : f32
    %402 = vector.broadcast %cst_152 : f32 to vector<8x128xf32>
    %403 = arith.mulf %401, %402 : vector<8x128xf32>
    %cst_153 = arith.constant -1.45315206 : f32
    %404 = vector.broadcast %cst_153 : f32 to vector<8x128xf32>
    %405 = arith.addf %404, %403 : vector<8x128xf32>
    %406 = arith.mulf %401, %405 : vector<8x128xf32>
    %cst_154 = arith.constant 1.42141378 : f32
    %407 = vector.broadcast %cst_154 : f32 to vector<8x128xf32>
    %408 = arith.addf %407, %406 : vector<8x128xf32>
    %409 = arith.mulf %401, %408 : vector<8x128xf32>
    %cst_155 = arith.constant -0.284496725 : f32
    %410 = vector.broadcast %cst_155 : f32 to vector<8x128xf32>
    %411 = arith.addf %410, %409 : vector<8x128xf32>
    %412 = arith.mulf %401, %411 : vector<8x128xf32>
    %cst_156 = arith.constant 0.254829586 : f32
    %413 = vector.broadcast %cst_156 : f32 to vector<8x128xf32>
    %414 = arith.addf %413, %412 : vector<8x128xf32>
    %415 = arith.mulf %401, %414 : vector<8x128xf32>
    %cst_157 = arith.constant 0.000000e+00 : f32
    %416 = vector.broadcast %cst_157 : f32 to vector<8x128xf32>
    %417 = arith.subf %416, %395 : vector<8x128xf32>
    %418 = arith.mulf %417, %395 : vector<8x128xf32>
    %419 = math.exp %418 : vector<8x128xf32>
    %420 = arith.mulf %415, %419 : vector<8x128xf32>
    %cst_158 = arith.constant 1.000000e+00 : f32
    %421 = vector.broadcast %cst_158 : f32 to vector<8x128xf32>
    %422 = arith.subf %421, %420 : vector<8x128xf32>
    %cst_159 = arith.constant 0.000000e+00 : f32
    %423 = vector.broadcast %cst_159 : f32 to vector<8x128xf32>
    %424 = arith.cmpf olt, %394, %423 : vector<8x128xf32>
    %cst_160 = arith.constant 0.000000e+00 : f32
    %425 = vector.broadcast %cst_160 : f32 to vector<8x128xf32>
    %426 = arith.subf %425, %422 : vector<8x128xf32>
    %427 = arith.select %424, %426, %422 : vector<8x128xi1>, vector<8x128xf32>
    %cst_161 = arith.constant 1.000000e+00 : f32
    %428 = vector.broadcast %cst_161 : f32 to vector<8x128xf32>
    %429 = arith.addf %428, %427 : vector<8x128xf32>
    %430 = arith.mulf %392, %429 : vector<8x128xf32>
    %cst_162 = arith.constant dense<0.000000e+00> : vector<8xf32>
    %431 = vector.multi_reduction <add>, %430, %cst_162 [1] : vector<8x128xf32> to vector<8xf32>
    %432 = vector.shape_cast %431 : vector<8xf32> to vector<8x1xf32>
    %cst_163 = arith.constant 1.280000e+02 : f32
    %433 = vector.broadcast %cst_163 : f32 to vector<8x1xf32>
    %434 = arith.divf %432, %433 : vector<8x1xf32>
    %435 = arith.mulf %430, %430 : vector<8x128xf32>
    %cst_164 = arith.constant dense<0.000000e+00> : vector<8xf32>
    %436 = vector.multi_reduction <add>, %435, %cst_164 [1] : vector<8x128xf32> to vector<8xf32>
    %437 = vector.shape_cast %436 : vector<8xf32> to vector<8x1xf32>
    %cst_165 = arith.constant 1.280000e+02 : f32
    %438 = vector.broadcast %cst_165 : f32 to vector<8x1xf32>
    %439 = arith.divf %437, %438 : vector<8x1xf32>
    %440 = vector.broadcast %434 : vector<8x1xf32> to vector<8x128xf32>
    %441 = arith.subf %430, %440 : vector<8x128xf32>
    %442 = arith.mulf %434, %434 : vector<8x1xf32>
    %443 = arith.subf %439, %442 : vector<8x1xf32>
    %cst_166 = arith.constant 9.99999974E-6 : f32
    %444 = vector.broadcast %cst_166 : f32 to vector<8x1xf32>
    %445 = arith.addf %443, %444 : vector<8x1xf32>
    %446 = math.rsqrt %445 : vector<8x1xf32>
    %447 = vector.broadcast %446 : vector<8x1xf32> to vector<8x128xf32>
    %448 = arith.mulf %441, %447 : vector<8x128xf32>
    %449 = vector.extract_strided_slice %385 {offsets = [1, 0], sizes = [1, 128], strides = [1, 1]} : vector<3x128xf32> to vector<1x128xf32>
    %450 = vector.broadcast %449 : vector<1x128xf32> to vector<8x128xf32>
    %451 = arith.mulf %448, %450 : vector<8x128xf32>
    %452 = vector.extract_strided_slice %385 {offsets = [2, 0], sizes = [1, 128], strides = [1, 1]} : vector<3x128xf32> to vector<1x128xf32>
    %453 = vector.broadcast %452 : vector<1x128xf32> to vector<8x128xf32>
    %454 = arith.addf %451, %453 : vector<8x128xf32>
    %c4_167 = arith.constant 4 : index
    %c0_168 = arith.constant 0 : index
    %c0_169 = arith.constant 0 : index
    %455 = vector.load %arg6[%c4_167, %c0_168, %c0_169] : memref<5x128x128xbf16, #tpu.memory_space<vmem>>, vector<1x128x128xbf16>
    %456 = vector.shape_cast %455 : vector<1x128x128xbf16> to vector<128x128xbf16>
    %c5 = arith.constant 5 : index
    %c0_170 = arith.constant 0 : index
    %c0_171 = arith.constant 0 : index
    %457 = vector.load %arg7[%c5, %c0_170, %c0_171] : memref<7x3x128xf32, #tpu.memory_space<vmem>>, vector<1x3x128xf32>
    %458 = vector.shape_cast %457 : vector<1x3x128xf32> to vector<3x128xf32>
    %459 = arith.truncf %454 : vector<8x128xf32> to vector<8x128xbf16>
    %cst_172 = arith.constant dense<0.000000e+00> : vector<8x128xf32>
    %460 = tpu.matmul %459, %456, %cst_172 {dimension_numbers = #tpu.dot_dimension_numbers<[1], [0], [0], [1], [0, 0, 1, 1], [], []>} : vector<8x128xbf16>, vector<128x128xbf16>, vector<8x128xf32> -> vector<8x128xf32>
    %461 = vector.extract_strided_slice %458 {offsets = [0, 0], sizes = [1, 128], strides = [1, 1]} : vector<3x128xf32> to vector<1x128xf32>
    %462 = vector.broadcast %461 : vector<1x128xf32> to vector<8x128xf32>
    %463 = arith.addf %460, %462 : vector<8x128xf32>
    %cst_173 = arith.constant 5.000000e-01 : f32
    %464 = vector.broadcast %cst_173 : f32 to vector<8x128xf32>
    %465 = arith.mulf %464, %463 : vector<8x128xf32>
    %cst_174 = arith.constant 0.707106769 : f32
    %466 = vector.broadcast %cst_174 : f32 to vector<8x128xf32>
    %467 = arith.mulf %463, %466 : vector<8x128xf32>
    %468 = math.absf %467 : vector<8x128xf32>
    %cst_175 = arith.constant 0.327591091 : f32
    %469 = vector.broadcast %cst_175 : f32 to vector<8x128xf32>
    %470 = arith.mulf %469, %468 : vector<8x128xf32>
    %cst_176 = arith.constant 1.000000e+00 : f32
    %471 = vector.broadcast %cst_176 : f32 to vector<8x128xf32>
    %472 = arith.addf %471, %470 : vector<8x128xf32>
    %cst_177 = arith.constant 1.000000e+00 : f32
    %473 = vector.broadcast %cst_177 : f32 to vector<8x128xf32>
    %474 = arith.divf %473, %472 : vector<8x128xf32>
    %cst_178 = arith.constant 1.06140542 : f32
    %475 = vector.broadcast %cst_178 : f32 to vector<8x128xf32>
    %476 = arith.mulf %474, %475 : vector<8x128xf32>
    %cst_179 = arith.constant -1.45315206 : f32
    %477 = vector.broadcast %cst_179 : f32 to vector<8x128xf32>
    %478 = arith.addf %477, %476 : vector<8x128xf32>
    %479 = arith.mulf %474, %478 : vector<8x128xf32>
    %cst_180 = arith.constant 1.42141378 : f32
    %480 = vector.broadcast %cst_180 : f32 to vector<8x128xf32>
    %481 = arith.addf %480, %479 : vector<8x128xf32>
    %482 = arith.mulf %474, %481 : vector<8x128xf32>
    %cst_181 = arith.constant -0.284496725 : f32
    %483 = vector.broadcast %cst_181 : f32 to vector<8x128xf32>
    %484 = arith.addf %483, %482 : vector<8x128xf32>
    %485 = arith.mulf %474, %484 : vector<8x128xf32>
    %cst_182 = arith.constant 0.254829586 : f32
    %486 = vector.broadcast %cst_182 : f32 to vector<8x128xf32>
    %487 = arith.addf %486, %485 : vector<8x128xf32>
    %488 = arith.mulf %474, %487 : vector<8x128xf32>
    %cst_183 = arith.constant 0.000000e+00 : f32
    %489 = vector.broadcast %cst_183 : f32 to vector<8x128xf32>
    %490 = arith.subf %489, %468 : vector<8x128xf32>
    %491 = arith.mulf %490, %468 : vector<8x128xf32>
    %492 = math.exp %491 : vector<8x128xf32>
    %493 = arith.mulf %488, %492 : vector<8x128xf32>
    %cst_184 = arith.constant 1.000000e+00 : f32
    %494 = vector.broadcast %cst_184 : f32 to vector<8x128xf32>
    %495 = arith.subf %494, %493 : vector<8x128xf32>
    %cst_185 = arith.constant 0.000000e+00 : f32
    %496 = vector.broadcast %cst_185 : f32 to vector<8x128xf32>
    %497 = arith.cmpf olt, %467, %496 : vector<8x128xf32>
    %cst_186 = arith.constant 0.000000e+00 : f32
    %498 = vector.broadcast %cst_186 : f32 to vector<8x128xf32>
    %499 = arith.subf %498, %495 : vector<8x128xf32>
    %500 = arith.select %497, %499, %495 : vector<8x128xi1>, vector<8x128xf32>
    %cst_187 = arith.constant 1.000000e+00 : f32
    %501 = vector.broadcast %cst_187 : f32 to vector<8x128xf32>
    %502 = arith.addf %501, %500 : vector<8x128xf32>
    %503 = arith.mulf %465, %502 : vector<8x128xf32>
    %cst_188 = arith.constant dense<0.000000e+00> : vector<8xf32>
    %504 = vector.multi_reduction <add>, %503, %cst_188 [1] : vector<8x128xf32> to vector<8xf32>
    %505 = vector.shape_cast %504 : vector<8xf32> to vector<8x1xf32>
    %cst_189 = arith.constant 1.280000e+02 : f32
    %506 = vector.broadcast %cst_189 : f32 to vector<8x1xf32>
    %507 = arith.divf %505, %506 : vector<8x1xf32>
    %508 = arith.mulf %503, %503 : vector<8x128xf32>
    %cst_190 = arith.constant dense<0.000000e+00> : vector<8xf32>
    %509 = vector.multi_reduction <add>, %508, %cst_190 [1] : vector<8x128xf32> to vector<8xf32>
    %510 = vector.shape_cast %509 : vector<8xf32> to vector<8x1xf32>
    %cst_191 = arith.constant 1.280000e+02 : f32
    %511 = vector.broadcast %cst_191 : f32 to vector<8x1xf32>
    %512 = arith.divf %510, %511 : vector<8x1xf32>
    %513 = vector.broadcast %507 : vector<8x1xf32> to vector<8x128xf32>
    %514 = arith.subf %503, %513 : vector<8x128xf32>
    %515 = arith.mulf %507, %507 : vector<8x1xf32>
    %516 = arith.subf %512, %515 : vector<8x1xf32>
    %cst_192 = arith.constant 9.99999974E-6 : f32
    %517 = vector.broadcast %cst_192 : f32 to vector<8x1xf32>
    %518 = arith.addf %516, %517 : vector<8x1xf32>
    %519 = math.rsqrt %518 : vector<8x1xf32>
    %520 = vector.broadcast %519 : vector<8x1xf32> to vector<8x128xf32>
    %521 = arith.mulf %514, %520 : vector<8x128xf32>
    %522 = vector.extract_strided_slice %458 {offsets = [1, 0], sizes = [1, 128], strides = [1, 1]} : vector<3x128xf32> to vector<1x128xf32>
    %523 = vector.broadcast %522 : vector<1x128xf32> to vector<8x128xf32>
    %524 = arith.mulf %521, %523 : vector<8x128xf32>
    %525 = vector.extract_strided_slice %458 {offsets = [2, 0], sizes = [1, 128], strides = [1, 1]} : vector<3x128xf32> to vector<1x128xf32>
    %526 = vector.broadcast %525 : vector<1x128xf32> to vector<8x128xf32>
    %527 = arith.addf %524, %526 : vector<8x128xf32>
    %528 = arith.addf %527, %372 : vector<8x128xf32>
    %c6 = arith.constant 6 : index
    %c0_193 = arith.constant 0 : index
    %c0_194 = arith.constant 0 : index
    %529 = vector.load %arg7[%c6, %c0_193, %c0_194] : memref<7x3x128xf32, #tpu.memory_space<vmem>>, vector<1x3x128xf32>
    %530 = vector.shape_cast %529 : vector<1x3x128xf32> to vector<3x128xf32>
    %531 = vector.extract_strided_slice %530 {offsets = [0, 0], sizes = [1, 128], strides = [1, 1]} : vector<3x128xf32> to vector<1x128xf32>
    %532 = arith.truncf %528 : vector<8x128xf32> to vector<8x128xbf16>
    %c0_195 = arith.constant 0 : index
    %c0_196 = arith.constant 0 : index
    %533 = vector.load %arg9[%c0_195, %c0_196] : memref<128x128xbf16, #tpu.memory_space<vmem>>, vector<128x128xbf16>
    %cst_197 = arith.constant dense<0.000000e+00> : vector<8x128xf32>
    %534 = tpu.matmul %532, %533, %cst_197 {dimension_numbers = #tpu.dot_dimension_numbers<[1], [0], [0], [1], [0, 0, 1, 1], [], []>} : vector<8x128xbf16>, vector<128x128xbf16>, vector<8x128xf32> -> vector<8x128xf32>
    %535 = vector.broadcast %531 : vector<1x128xf32> to vector<8x128xf32>
    %536 = arith.addf %534, %535 : vector<8x128xf32>
    %cst_198 = arith.constant 2.000000e-01 : f32
    %537 = vector.broadcast %cst_198 : f32 to vector<8x128xf32>
    %538 = arith.mulf %536, %537 : vector<8x128xf32>
    %539 = math.tanh %538 : vector<8x128xf32>
    %cst_199 = arith.constant 5.000000e+00 : f32
    %540 = vector.broadcast %cst_199 : f32 to vector<8x128xf32>
    %541 = arith.mulf %540, %539 : vector<8x128xf32>
    %542 = math.exp %541 : vector<8x128xf32>
    %c0_200 = arith.constant 0 : index
    %c0_201 = arith.constant 0 : index
    %543 = vector.load %arg10[%c0_200, %c0_201] : memref<8x128xf32, #tpu.memory_space<vmem>>, vector<8x128xf32>
    tpu.vector_store %arg10[%c0_200, %c0_201], %542 {strides = array<i32>} : memref<8x128xf32, #tpu.memory_space<vmem>>, vector<8x128xf32>,
    return
  }
  func.func @transform_0(%arg0: i32) -> (i32, i32) {
    %c0_i32 = arith.constant 0 : i32
    %c0_i32_0 = arith.constant 0 : i32
    return %arg0, %c0_i32 : i32, i32
  }
  func.func @transform_1(%arg0: i32) -> (i32, i32) {
    %c0_i32 = arith.constant 0 : i32
    %c0_i32_0 = arith.constant 0 : i32
    return %arg0, %c0_i32 : i32, i32
  }
  func.func @transform_2(%arg0: i32) -> (i32, i32) {
    %c0_i32 = arith.constant 0 : i32
    %c0_i32_0 = arith.constant 0 : i32
    %c0_i32_1 = arith.constant 0 : i32
    return %c0_i32, %c0_i32_0 : i32, i32
  }
  func.func @transform_3(%arg0: i32) -> (i32, i32) {
    %c0_i32 = arith.constant 0 : i32
    %c0_i32_0 = arith.constant 0 : i32
    %c0_i32_1 = arith.constant 0 : i32
    return %c0_i32, %c0_i32_0 : i32, i32
  }
  func.func @transform_4(%arg0: i32) -> (i32, i32) {
    %c0_i32 = arith.constant 0 : i32
    %c0_i32_0 = arith.constant 0 : i32
    %c0_i32_1 = arith.constant 0 : i32
    return %c0_i32, %c0_i32_0 : i32, i32
  }
  func.func @transform_5(%arg0: i32) -> (i32, i32, i32) {
    %c0_i32 = arith.constant 0 : i32
    %c0_i32_0 = arith.constant 0 : i32
    %c0_i32_1 = arith.constant 0 : i32
    %c0_i32_2 = arith.constant 0 : i32
    return %c0_i32, %c0_i32_0, %c0_i32_1 : i32, i32, i32
  }
  func.func @transform_6(%arg0: i32) -> (i32, i32, i32) {
    %c0_i32 = arith.constant 0 : i32
    %c0_i32_0 = arith.constant 0 : i32
    %c0_i32_1 = arith.constant 0 : i32
    %c0_i32_2 = arith.constant 0 : i32
    return %c0_i32, %c0_i32_0, %c0_i32_1 : i32, i32, i32
  }
  func.func @transform_7(%arg0: i32) -> (i32, i32, i32) {
    %c0_i32 = arith.constant 0 : i32
    %c0_i32_0 = arith.constant 0 : i32
    %c0_i32_1 = arith.constant 0 : i32
    %c0_i32_2 = arith.constant 0 : i32
    return %c0_i32, %c0_i32_0, %c0_i32_1 : i32, i32, i32
  }
  func.func @transform_8(%arg0: i32) -> (i32, i32) {
    %c0_i32 = arith.constant 0 : i32
    %c0_i32_0 = arith.constant 0 : i32
    %c0_i32_1 = arith.constant 0 : i32
    return %c0_i32, %c0_i32_0 : i32, i32
  }
  func.func @transform_9(%arg0: i32) -> (i32, i32) {
    %c0_i32 = arith.constant 0 : i32
    %c0_i32_0 = arith.constant 0 : i32
    return %arg0, %c0_i32 : i32, i32
  }
}

</mosaic_0001>

<llo_original>
// kernel: model_cube_forward.1
$region0: #{model_cube_forward.1}
  #allocation0 [shape = 'u32[]', space=smem, size = 0x4, offset = 0x4, fixed_abs, tag = 'smem constant byte address 0x4 - core index']
  #allocation1 [shape = 'u32[144,128]{1,0:T(1,128)}', space=vmem, size = 0x12000, scoped, tag = 'internal scratch']
  %s0 = inlined_call_operand.vmem [shape: bf16[8,128], index: 0, kind: input, shape index: {}]
  %s1 = inlined_call_operand.vmem [shape: bf16[8,128], index: 1, kind: input, shape index: {}]
  %s2 = inlined_call_operand.hbm [shape: bf16[128,640], index: 2, kind: input, shape index: {}]
  %s3 = inlined_call_operand.vmem [shape: f32[3,640], index: 3, kind: input, shape index: {}]
  %s4 = inlined_call_operand.hbm [shape: bf16[640,128], index: 4, kind: input, shape index: {}]
  %s5 = inlined_call_operand.hbm [shape: bf16[5,128,128], index: 5, kind: input, shape index: {}]
  %s6 = inlined_call_operand.vmem [shape: f32[7,3,128], index: 6, kind: input, shape index: {}]
  %s7 = inlined_call_operand.hbm [shape: bf16[2,128,256], index: 7, kind: input, shape index: {}]
  %s8 = inlined_call_operand.vmem [shape: bf16[128,128], index: 8, kind: input, shape index: {}]
  %s9 = inlined_call_operand.vmem [shape: f32[8,128], index: 9, kind: output, shape index: {}]
  %s10 = sld [smem:[#allocation0]]
  $region62: #{model_cube_forward.1} parent=0
    _
  %s12 = ssub.s32 1, %s10
  %s13 = scalar_select 0, %s12, %s10
  $region1: #{model_cube_forward.1} parent=0
    #allocation2 [shape = 'u8[163840]{0}', space=vmem, size = 0x28000, scoped, tag = 'input window, operand 2, single buffered']
    #allocation3 [shape = 's32[1]{0}', space=sflag, size = 0x4, scoped, tag = 'scoped memory for model_cube_forward.1']
    #allocation4 [shape = 'u8[163840]{0}', space=vmem, size = 0x28000, scoped, tag = 'input window, operand 4, single buffered']
    #allocation5 [shape = 's32[1]{0}', space=sflag, size = 0x4, scoped, tag = 'scoped memory for model_cube_forward.1']
    #allocation6 [shape = 'u8[163840]{0}', space=vmem, size = 0x28000, scoped, tag = 'input window, operand 5, single buffered']
    #allocation7 [shape = 'u8[131072]{0}', space=vmem, size = 0x20000, scoped, tag = 'input window, operand 7, single buffered']
    #allocation8 [shape = 's32[1]{0}', space=sflag, size = 0x4, scoped, tag = 'scoped memory for model_cube_forward.1']
    %14 = vsyncpa [#allocation3], 0
    %15 = vsyncpa [#allocation5], 0
    %16 = vsyncpa [#allocation8], 0
    // Predicated region
    $region2: #{model_cube_forward.1} parent=1 // pred_check
      _
    $region3: #{model_cube_forward.1} parent=1 // pred_check_branch
      %18 = sbr.rel (0) target = $region5
    $region4: #{model_cube_forward.1} parent=1 // pred_region
      _
    $region5: #{model_cube_forward.1} parent=1 // pred_fallthru
      _
    // Predicated region
    $region6: #{model_cube_forward.1} parent=1 // pred_check
      _
    $region7: #{model_cube_forward.1} parent=1 // pred_check_branch
      %20 = sbr.rel (0) target = $region9
    $region8: #{model_cube_forward.1} parent=1 // pred_region
      _
    $region9: #{model_cube_forward.1} parent=1 // pred_fallthru
      _
    // Predicated region
    $region10: #{model_cube_forward.1} parent=1 // pred_check
      _
    $region11: #{model_cube_forward.1} parent=1 // pred_check_branch
      %22 = sbr.rel (0) target = $region13
    $region12: #{model_cube_forward.1} parent=1 // pred_region
      %s24 = ssub.s32 5120, 5120
      %25 = vsyncadd [#allocation3], %s24
      %s26 = sshll.u32 [#allocation2], 4
      %s27 = int_to_ptr.vmem [resolvable:$true] %s26
      %32 = dma.hbm_to_vmem [thread:$0]  %s2, 5120, %s27, [#allocation3], 320, 320, 20
    $region13: #{model_cube_forward.1} parent=1 // pred_fallthru
      _
    // Predicated region
    $region14: #{model_cube_forward.1} parent=1 // pred_check
      _
    $region15: #{model_cube_forward.1} parent=1 // pred_check_branch
      %34 = sbr.rel (0) target = $region17
    $region16: #{model_cube_forward.1} parent=1 // pred_region
      _
    $region17: #{model_cube_forward.1} parent=1 // pred_fallthru
      _
    // Predicated region
    $region18: #{model_cube_forward.1} parent=1 // pred_check
      _
    $region19: #{model_cube_forward.1} parent=1 // pred_check_branch
      %36 = sbr.rel (0) target = $region21
    $region20: #{model_cube_forward.1} parent=1 // pred_region
      %s38 = ssub.s32 5120, 5120
      %39 = vsyncadd [#allocation5], %s38
      %s40 = sshll.u32 [#allocation4], 4
      %s41 = int_to_ptr.vmem [resolvable:$true] %s40
      %46 = dma.hbm_to_vmem [thread:$0]  %s4, 5120, %s41, [#allocation5], 64, 64, 4
    $region21: #{model_cube_forward.1} parent=1 // pred_fallthru
      _
    // Predicated region
    $region22: #{model_cube_forward.1} parent=1 // pred_check
      _
    $region23: #{model_cube_forward.1} parent=1 // pred_check_branch
      %48 = sbr.rel (0) target = $region25
    $region24: #{model_cube_forward.1} parent=1 // pred_region
      %s50 = ssub.s32 5120, 5120
      %51 = vsyncadd [#allocation5], %s50
      %s52 = sshll.u32 [#allocation6], 4
      %s53 = int_to_ptr.vmem [resolvable:$true] %s52
      %58 = dma.hbm_to_vmem [thread:$0]  %s5, 5120, %s53, [#allocation5], 64, 64, 4
    $region25: #{model_cube_forward.1} parent=1 // pred_fallthru
      _
    // Predicated region
    $region26: #{model_cube_forward.1} parent=1 // pred_check
      _
    $region27: #{model_cube_forward.1} parent=1 // pred_check_branch
      %60 = sbr.rel (0) target = $region29
    $region28: #{model_cube_forward.1} parent=1 // pred_region
      _
    $region29: #{model_cube_forward.1} parent=1 // pred_fallthru
      _
    // Predicated region
    $region30: #{model_cube_forward.1} parent=1 // pred_check
      _
    $region31: #{model_cube_forward.1} parent=1 // pred_check_branch
      %62 = sbr.rel (0) target = $region33
    $region32: #{model_cube_forward.1} parent=1 // pred_region
      %s64 = ssub.s32 4096, 4096
      %65 = vsyncadd [#allocation8], %s64
      %s66 = sshll.u32 [#allocation7], 4
      %s67 = int_to_ptr.vmem [resolvable:$true] %s66
      %72 = dma.hbm_to_vmem [thread:$0]  %s7, 4096, %s67, [#allocation8], 128, 128, 8
    $region33: #{model_cube_forward.1} parent=1 // pred_fallthru
      _
    // Predicated region
    $region34: #{model_cube_forward.1} parent=1 // pred_check
      _
    $region35: #{model_cube_forward.1} parent=1 // pred_check_branch
      %74 = sbr.rel (0) target = $region37
    $region36: #{model_cube_forward.1} parent=1 // pred_region
      _
    $region37: #{model_cube_forward.1} parent=1 // pred_fallthru
      _
    // Predicated region
    $region38: #{model_cube_forward.1} parent=1 // pred_check
      _
    $region39: #{model_cube_forward.1} parent=1 // pred_check_branch
      %76 = sbr.rel (0) target = $region41
    $region40: #{model_cube_forward.1} parent=1 // pred_region
      %77 = dma.done [#allocation3], 5120
    $region41: #{model_cube_forward.1} parent=1 // pred_fallthru
      _
    // Predicated region
    $region42: #{model_cube_forward.1} parent=1 // pred_check
      _
    $region43: #{model_cube_forward.1} parent=1 // pred_check_branch
      %79 = sbr.rel (0) target = $region45
    $region44: #{model_cube_forward.1} parent=1 // pred_region
      %80 = dma.done [#allocation5], 5120
    $region45: #{model_cube_forward.1} parent=1 // pred_fallthru
      _
    // Predicated region
    $region46: #{model_cube_forward.1} parent=1 // pred_check
      _
    $region47: #{model_cube_forward.1} parent=1 // pred_check_branch
      %82 = sbr.rel (0) target = $region49
    $region48: #{model_cube_forward.1} parent=1 // pred_region
      %83 = dma.done [#allocation5], 5120
    $region49: #{model_cube_forward.1} parent=1 // pred_fallthru
      _
    // Predicated region
    $region50: #{model_cube_forward.1} parent=1 // pred_check
      _
    $region51: #{model_cube_forward.1} parent=1 // pred_check_branch
      %85 = sbr.rel (0) target = $region53
    $region52: #{model_cube_forward.1} parent=1 // pred_region
      %86 = dma.done [#allocation8], 4096
    $region53: #{model_cube_forward.1} parent=1 // pred_fallthru
      _
    %v88 = vld [vmem:[%s0] sm:$0xf]
    %v89 = vld [vmem:[#allocation2] sm:$0xff]
    %v90 = vld [vmem:[#allocation2 + $0x8] sm:$0xff]
    %v91 = vld [vmem:[#allocation2 + $0x10] sm:$0xf]
    %v92 = vld [vmem:[#allocation2 + $0x14] sm:$0xff]
    %v93 = vld [vmem:[#allocation2 + $0x1c] sm:$0xff]
    %v94 = vld [vmem:[#allocation2 + $0x24] sm:$0xf]
    %v95 = vld [vmem:[#allocation2 + $0x28] sm:$0xff]
    %v96 = vld [vmem:[#allocation2 + $0x30] sm:$0xff]
    %v97 = vld [vmem:[#allocation2 + $0x38] sm:$0xf]
    %v98 = vld [vmem:[#allocation2 + $0x3c] sm:$0xff]
    %v99 = vld [vmem:[#allocation2 + $0x44] sm:$0xff]
    %v100 = vld [vmem:[#allocation2 + $0x4c] sm:$0xf]
    %v101 = vld [vmem:[#allocation2 + $0x50] sm:$0xff]
    %v102 = vld [vmem:[#allocation2 + $0x58] sm:$0xff]
    %v103 = vld [vmem:[#allocation2 + $0x60] sm:$0xf]
    %v104 = vld [vmem:[#allocation2 + $0x64] sm:$0xff]
    %v105 = vld [vmem:[#allocation2 + $0x6c] sm:$0xff]
    %v106 = vld [vmem:[#allocation2 + $0x74] sm:$0xf]
    %v107 = vld [vmem:[#allocation2 + $0x78] sm:$0xff]
    %v108 = vld [vmem:[#allocation2 + $0x80] sm:$0xff]
    %v109 = vld [vmem:[#allocation2 + $0x88] sm:$0xf]
    %v110 = vld [vmem:[#allocation2 + $0x8c] sm:$0xff]
    %v111 = vld [vmem:[#allocation2 + $0x94] sm:$0xff]
    %v112 = vld [vmem:[#allocation2 + $0x9c] sm:$0xf]
    %v113 = vld [vmem:[#allocation2 + $0xa0] sm:$0xff]
    %v114 = vld [vmem:[#allocation2 + $0xa8] sm:$0xff]
    %v115 = vld [vmem:[#allocation2 + $0xb0] sm:$0xf]
    %v116 = vld [vmem:[#allocation2 + $0xb4] sm:$0xff]
    %v117 = vld [vmem:[#allocation2 + $0xbc] sm:$0xff]
    %v118 = vld [vmem:[#allocation2 + $0xc4] sm:$0xf]
    %v119 = vld [vmem:[#allocation2 + $0xc8] sm:$0xff]
    %v120 = vld [vmem:[#allocation2 + $0xd0] sm:$0xff]
    %v121 = vld [vmem:[#allocation2 + $0xd8] sm:$0xf]
    %v122 = vld [vmem:[#allocation2 + $0xdc] sm:$0xff]
    %v123 = vld [vmem:[#allocation2 + $0xe4] sm:$0xff]
    %v124 = vld [vmem:[#allocation2 + $0xec] sm:$0xf]
    %v125 = vld [vmem:[#allocation2 + $0xf0] sm:$0xff]
    %v126 = vld [vmem:[#allocation2 + $0xf8] sm:$0xff]
    %v127 = vld [vmem:[#allocation2 + $0x100] sm:$0xf]
    %v128 = vld [vmem:[#allocation2 + $0x104] sm:$0xff]
    %v129 = vld [vmem:[#allocation2 + $0x10c] sm:$0xff]
    %v130 = vld [vmem:[#allocation2 + $0x114] sm:$0xf]
    %v131 = vld [vmem:[#allocation2 + $0x118] sm:$0xff]
    %v132 = vld [vmem:[#allocation2 + $0x120] sm:$0xff]
    %v133 = vld [vmem:[#allocation2 + $0x128] sm:$0xf]
    %v134 = vld [vmem:[#allocation2 + $0x12c] sm:$0xff]
    %v135 = vld [vmem:[#allocation2 + $0x134] sm:$0xff]
    %v136 = vld [vmem:[#allocation2 + $0x13c] sm:$0xf]
    %v137 = vld [vmem:[%s3] sm:$0x77]
    %v138 = vld [vmem:[%s3 + $0x8] sm:$0x77]
    %v139 = vld [vmem:[%s3 + $0x10] sm:$0x7]
    %v143 = vlaneseq
    %v144 = vshrl.u32 %v143, 7
    %v145 = vsub.s32 0, %v144
    %v146 = vrot.slane %v137, %v145
    %v147 = vlaneseq
    %v148 = vshrl.u32 %v147, 7
    %v149 = vsub.s32 4, %v148
    %v150 = vrot.slane %v137, %v149
    %v151 = vlaneseq
    %v152 = vshrl.u32 %v151, 7
    %v153 = vsub.s32 0, %v152
    %v154 = vrot.slane %v138, %v153
    %v155 = vlaneseq
    %v156 = vshrl.u32 %v155, 7
    %v157 = vsub.s32 4, %v156
    %v158 = vrot.slane %v138, %v157
    %v159 = vlaneseq
    %v160 = vshrl.u32 %v159, 7
    %v161 = vsub.s32 0, %v160
    %v162 = vrot.slane %v139, %v161
    %v168 = vlaneseq
    %v169 = vshrl.u32 %v168, 7
    %v170 = vsub.s32 0, %v169
    %v171 = vrot.slane %v146, %v170
    %v172 = vlaneseq
    %v173 = vshrl.u32 %v172, 7
    %v174 = vsub.s32 0, %v173
    %v175 = vrot.slane %v150, %v174
    %v176 = vlaneseq
    %v177 = vshrl.u32 %v176, 7
    %v178 = vsub.s32 0, %v177
    %v179 = vrot.slane %v154, %v178
    %v180 = vlaneseq
    %v181 = vshrl.u32 %v180, 7
    %v182 = vsub.s32 0, %v181
    %v183 = vrot.slane %v158, %v182
    %v184 = vlaneseq
    %v185 = vshrl.u32 %v184, 7
    %v186 = vsub.s32 0, %v185
    %v187 = vrot.slane %v162, %v186
    %v236 = vunpack.c.l.b16 %v89
    %v237 = vunpack.c.h.b16 %v89
    %v238 = vunpack.c.l.b16 %v90
    %v239 = vunpack.c.h.b16 %v90
    %v240 = vunpack.c.l.b16 %v91
    %v241 = vunpack.c.l.b16 %v92
    %v242 = vunpack.c.h.b16 %v92
    %v243 = vunpack.c.l.b16 %v93
    %v244 = vunpack.c.h.b16 %v93
    %v245 = vunpack.c.l.b16 %v94
    %v246 = vunpack.c.l.b16 %v95
    %v247 = vunpack.c.h.b16 %v95
    %v248 = vunpack.c.l.b16 %v96
    %v249 = vunpack.c.h.b16 %v96
    %v250 = vunpack.c.l.b16 %v97
    %v251 = vunpack.c.l.b16 %v98
    %v252 = vunpack.c.h.b16 %v98
    %v253 = vunpack.c.l.b16 %v99
    %v254 = vunpack.c.h.b16 %v99
    %v255 = vunpack.c.l.b16 %v100
    %v256 = vunpack.c.l.b16 %v101
    %v257 = vunpack.c.h.b16 %v101
    %v258 = vunpack.c.l.b16 %v102
    %v259 = vunpack.c.h.b16 %v102
    %v260 = vunpack.c.l.b16 %v103
    %v261 = vunpack.c.l.b16 %v104
    %v262 = vunpack.c.h.b16 %v104
    %v263 = vunpack.c.l.b16 %v105
    %v264 = vunpack.c.h.b16 %v105
    %v265 = vunpack.c.l.b16 %v106
    %v266 = vunpack.c.l.b16 %v107
    %v267 = vunpack.c.h.b16 %v107
    %v268 = vunpack.c.l.b16 %v108
    %v269 = vunpack.c.h.b16 %v108
    %v270 = vunpack.c.l.b16 %v109
    %v271 = vunpack.c.l.b16 %v110
    %v272 = vunpack.c.h.b16 %v110
    %v273 = vunpack.c.l.b16 %v111
    %v274 = vunpack.c.h.b16 %v111
    %v275 = vunpack.c.l.b16 %v112
    %v276 = vunpack.c.l.b16 %v113
    %v277 = vunpack.c.h.b16 %v113
    %v278 = vunpack.c.l.b16 %v114
    %v279 = vunpack.c.h.b16 %v114
    %v280 = vunpack.c.l.b16 %v115
    %v281 = vunpack.c.l.b16 %v116
    %v282 = vunpack.c.h.b16 %v116
    %v283 = vunpack.c.l.b16 %v117
    %v284 = vunpack.c.h.b16 %v117
    %v285 = vunpack.c.l.b16 %v118
    %v286 = vunpack.c.l.b16 %v119
    %v287 = vunpack.c.h.b16 %v119
    %v288 = vunpack.c.l.b16 %v120
    %v289 = vunpack.c.h.b16 %v120
    %v290 = vunpack.c.l.b16 %v121
    %v291 = vunpack.c.l.b16 %v122
    %v292 = vunpack.c.h.b16 %v122
    %v293 = vunpack.c.l.b16 %v123
    %v294 = vunpack.c.h.b16 %v123
    %v295 = vunpack.c.l.b16 %v124
    %v296 = vunpack.c.l.b16 %v125
    %v297 = vunpack.c.h.b16 %v125
    %v298 = vunpack.c.l.b16 %v126
    %v299 = vunpack.c.h.b16 %v126
    %v300 = vunpack.c.l.b16 %v127
    %v301 = vunpack.c.l.b16 %v128
    %v302 = vunpack.c.h.b16 %v128
    %v303 = vunpack.c.l.b16 %v129
    %v304 = vunpack.c.h.b16 %v129
    %v305 = vunpack.c.l.b16 %v130
    %v306 = vunpack.c.l.b16 %v131
    %v307 = vunpack.c.h.b16 %v131
    %v308 = vunpack.c.l.b16 %v132
    %v309 = vunpack.c.h.b16 %v132
    %v310 = vunpack.c.l.b16 %v133
    %v311 = vunpack.c.l.b16 %v134
    %v312 = vunpack.c.h.b16 %v134
    %v313 = vunpack.c.l.b16 %v135
    %v314 = vunpack.c.h.b16 %v135
    %v315 = vunpack.c.l.b16 %v136
    %v316 = vpack.c.b16 %v241, %v236
    %v317 = vpack.c.b16 %v242, %v237
    %v318 = vpack.c.b16 %v243, %v238
    %v319 = vpack.c.b16 %v244, %v239
    %v320 = vpack.c.b16 %v245, %v240
    %v321 = vpack.c.b16 %v251, %v246
    %v322 = vpack.c.b16 %v252, %v247
    %v323 = vpack.c.b16 %v253, %v248
    %v324 = vpack.c.b16 %v254, %v249
    %v325 = vpack.c.b16 %v255, %v250
    %v326 = vpack.c.b16 %v261, %v256
    %v327 = vpack.c.b16 %v262, %v257
    %v328 = vpack.c.b16 %v263, %v258
    %v329 = vpack.c.b16 %v264, %v259
    %v330 = vpack.c.b16 %v265, %v260
    %v331 = vpack.c.b16 %v271, %v266
    %v332 = vpack.c.b16 %v272, %v267
    %v333 = vpack.c.b16 %v273, %v268
    %v334 = vpack.c.b16 %v274, %v269
    %v335 = vpack.c.b16 %v275, %v270
    %v336 = vpack.c.b16 %v281, %v276
    %v337 = vpack.c.b16 %v282, %v277
    %v338 = vpack.c.b16 %v283, %v278
    %v339 = vpack.c.b16 %v284, %v279
    %v340 = vpack.c.b16 %v285, %v280
    %v341 = vpack.c.b16 %v291, %v286
    %v342 = vpack.c.b16 %v292, %v287
    %v343 = vpack.c.b16 %v293, %v288
    %v344 = vpack.c.b16 %v294, %v289
    %v345 = vpack.c.b16 %v295, %v290
    %v346 = vpack.c.b16 %v301, %v296
    %v347 = vpack.c.b16 %v302, %v297
    %v348 = vpack.c.b16 %v303, %v298
    %v349 = vpack.c.b16 %v304, %v299
    %v350 = vpack.c.b16 %v305, %v300
    %v351 = vpack.c.b16 %v311, %v306
    %v352 = vpack.c.b16 %v312, %v307
    %v353 = vpack.c.b16 %v313, %v308
    %v354 = vpack.c.b16 %v314, %v309
    %v355 = vpack.c.b16 %v315, %v310
    %396 = vmatprep.subr.bf16.mxu0 %v352
    %397 = vmatpush1.bf16.msra.mxu0 %v351
    %398 = vmatprep.subr.bf16.mxu0 %v347
    %399 = vmatpush1.bf16.msra.mxu0 %v346
    %400 = vmatprep.subr.bf16.mxu0 %v342
    %401 = vmatpush1.bf16.msra.mxu0 %v341
    %402 = vmatprep.subr.bf16.mxu0 %v337
    %403 = vmatpush1.bf16.msra.mxu0 %v336
    %404 = vmatprep.subr.bf16.mxu0 %v332
    %405 = vmatpush1.bf16.msra.mxu0 %v331
    %406 = vmatprep.subr.bf16.mxu0 %v327
    %407 = vmatpush1.bf16.msra.mxu0 %v326
    %408 = vmatprep.subr.bf16.mxu0 %v322
    %409 = vmatpush1.bf16.msra.mxu0 %v321
    %410 = vmatprep.subr.bf16.mxu0 %v317
    %411 = vmatpush1.bf16.msra.mxu0 %v316
    %412 = vmatprep.subr.bf16.mxu0 0
    %413 = vmatpush2.bf16.msra.mxu0 0
    %414 = vmatprep.subr.bf16.mxu0 0
    %415 = vmatpush2.bf16.msra.mxu0 0
    %416 = vmatprep.subr.bf16.mxu0 0
    %417 = vmatpush2.bf16.msra.mxu0 0
    %418 = vmatprep.subr.bf16.mxu0 0
    %419 = vmatpush2.bf16.msra.mxu0 0
    %420 = vmatprep.subr.bf16.mxu0 0
    %421 = vmatpush2.bf16.msra.mxu0 0
    %422 = vmatprep.subr.bf16.mxu0 0
    %423 = vmatpush2.bf16.msra.mxu0 0
    %424 = vmatprep.subr.bf16.mxu0 0
    %425 = vmatpush2.bf16.msra.mxu0 0
    %426 = vmatprep.subr.bf16.mxu0 0
    %427 = vmatpush2.bf16.msra.mxu0 0
    %428 = vmatprep.mubr.bf16.mxu0 0
    %429 = vmatmul.mubr.bf16.gmra.mxu0 %v88
    %v430 = vpop.f32.mrf.mxu0
    %v431 = vadd.f32 %v171, %v430
    %v432 = vpop.f32.mrf.mxu0
    %v433 = vadd.f32 %v175, %v432
    %v434 = vpop.f32.mrf.mxu0
    %v435 = vpop.f32.mrf.mxu0
    %436 = vdwg.mxu0
    %437 = vmatprep.subr.bf16.mxu0 %v354
    %438 = vmatpush1.bf16.msra.mxu0 %v353
    %439 = vmatprep.subr.bf16.mxu0 %v349
    %440 = vmatpush1.bf16.msra.mxu0 %v348
    %441 = vmatprep.subr.bf16.mxu0 %v344
    %442 = vmatpush1.bf16.msra.mxu0 %v343
    %443 = vmatprep.subr.bf16.mxu0 %v339
    %444 = vmatpush1.bf16.msra.mxu0 %v338
    %445 = vmatprep.subr.bf16.mxu0 %v334
    %446 = vmatpush1.bf16.msra.mxu0 %v333
    %447 = vmatprep.subr.bf16.mxu0 %v329
    %448 = vmatpush1.bf16.msra.mxu0 %v328
    %449 = vmatprep.subr.bf16.mxu0 %v324
    %450 = vmatpush1.bf16.msra.mxu0 %v323
    %451 = vmatprep.subr.bf16.mxu0 %v319
    %452 = vmatpush1.bf16.msra.mxu0 %v318
    %453 = vmatprep.subr.bf16.mxu0 0
    %454 = vmatpush2.bf16.msra.mxu0 0
    %455 = vmatprep.subr.bf16.mxu0 0
    %456 = vmatpush2.bf16.msra.mxu0 0
    %457 = vmatprep.subr.bf16.mxu0 0
    %458 = vmatpush2.bf16.msra.mxu0 0
    %459 = vmatprep.subr.bf16.mxu0 0
    %460 = vmatpush2.bf16.msra.mxu0 0
    %461 = vmatprep.subr.bf16.mxu0 0
    %462 = vmatpush2.bf16.msra.mxu0 0
    %463 = vmatprep.subr.bf16.mxu0 0
    %464 = vmatpush2.bf16.msra.mxu0 0
    %465 = vmatprep.subr.bf16.mxu0 0
    %466 = vmatpush2.bf16.msra.mxu0 0
    %467 = vmatprep.subr.bf16.mxu0 0
    %468 = vmatpush2.bf16.msra.mxu0 0
    %469 = vmatprep.mubr.bf16.mxu0 0
    %470 = vmatmul.mubr.bf16.gmra.mxu0 %v88
    %v471 = vpop.f32.mrf.mxu0
    %v472 = vadd.f32 %v179, %v471
    %v473 = vpop.f32.mrf.mxu0
    %v474 = vadd.f32 %v183, %v473
    %v475 = vpop.f32.mrf.mxu0
    %v476 = vpop.f32.mrf.mxu0
    %477 = vdwg.mxu0
    %478 = vmatprep.subr.bf16.mxu0 0
    %479 = vmatpush1.bf16.msra.mxu0 %v355
    %480 = vmatprep.subr.bf16.mxu0 0
    %481 = vmatpush1.bf16.msra.mxu0 %v350
    %482 = vmatprep.subr.bf16.mxu0 0
    %483 = vmatpush1.bf16.msra.mxu0 %v345
    %484 = vmatprep.subr.bf16.mxu0 0
    %485 = vmatpush1.bf16.msra.mxu0 %v340
    %486 = vmatprep.subr.bf16.mxu0 0
    %487 = vmatpush1.bf16.msra.mxu0 %v335
    %488 = vmatprep.subr.bf16.mxu0 0
    %489 = vmatpush1.bf16.msra.mxu0 %v330
    %490 = vmatprep.subr.bf16.mxu0 0
    %491 = vmatpush1.bf16.msra.mxu0 %v325
    %492 = vmatprep.subr.bf16.mxu0 0
    %493 = vmatpush1.bf16.msra.mxu0 %v320
    %494 = vmatprep.subr.bf16.mxu0 0
    %495 = vmatpush2.bf16.msra.mxu0 0
    %496 = vmatprep.subr.bf16.mxu0 0
    %497 = vmatpush2.bf16.msra.mxu0 0
    %498 = vmatprep.subr.bf16.mxu0 0
    %499 = vmatpush2.bf16.msra.mxu0 0
    %500 = vmatprep.subr.bf16.mxu0 0
    %501 = vmatpush2.bf16.msra.mxu0 0
    %502 = vmatprep.subr.bf16.mxu0 0
    %503 = vmatpush2.bf16.msra.mxu0 0
    %504 = vmatprep.subr.bf16.mxu0 0
    %505 = vmatpush2.bf16.msra.mxu0 0
    %506 = vmatprep.subr.bf16.mxu0 0
    %507 = vmatpush2.bf16.msra.mxu0 0
    %508 = vmatprep.subr.bf16.mxu0 0
    %509 = vmatpush2.bf16.msra.mxu0 0
    %510 = vmatprep.mubr.bf16.mxu0 0
    %511 = vmatmul.mubr.bf16.gmra.mxu0 %v88
    %v512 = vpop.f32.mrf.mxu0
    %v513 = vadd.f32 %v187, %v512
    %v514 = vpop.f32.mrf.mxu0
    %v515 = vpop.f32.mrf.mxu0
    %v516 = vpop.f32.mrf.mxu0
    %517 = vdwg.mxu0
    %v518 = vmul.f32 %v431, 0.5
    %v519 = vmul.f32 %v433, 0.5
    %v520 = vmul.f32 %v472, 0.5
    %v521 = vmul.f32 %v474, 0.5
    %v522 = vmul.f32 %v513, 0.5
    %v523 = vmul.f32 %v431, 0.70710677
    %v524 = vmul.f32 %v433, 0.70710677
    %v525 = vmul.f32 %v472, 0.70710677
    %v526 = vmul.f32 %v474, 0.70710677
    %v527 = vmul.f32 %v513, 0.70710677
    %v528 = vand.u32 2147483647, %v523
    %v529 = vand.u32 2147483647, %v524
    %v530 = vand.u32 2147483647, %v525
    %v531 = vand.u32 2147483647, %v526
    %v532 = vand.u32 2147483647, %v527
    %v533 = vmul.f32 %v528, 0.3275911
    %v534 = vmul.f32 %v529, 0.3275911
    %v535 = vmul.f32 %v530, 0.3275911
    %v536 = vmul.f32 %v531, 0.3275911
    %v537 = vmul.f32 %v532, 0.3275911
    %v538 = vadd.f32 %v533, 1.0
    %v539 = vadd.f32 %v534, 1.0
    %v540 = vadd.f32 %v535, 1.0
    %v541 = vadd.f32 %v536, 1.0
    %v542 = vadd.f32 %v537, 1.0
    %v543 = vrcp.pop %v538
    %v544 = vmul.f32 1.0, %v543
    %v545 = vrcp.pop %v539
    %v546 = vmul.f32 1.0, %v545
    %v547 = vrcp.pop %v540
    %v548 = vmul.f32 1.0, %v547
    %v549 = vrcp.pop %v541
    %v550 = vmul.f32 1.0, %v549
    %v551 = vrcp.pop %v542
    %v552 = vmul.f32 1.0, %v551
    %v553 = vmul.f32 %v544, 1.0614054
    %v554 = vmul.f32 %v546, 1.0614054
    %v555 = vmul.f32 %v548, 1.0614054
    %v556 = vmul.f32 %v550, 1.0614054
    %v557 = vmul.f32 %v552, 1.0614054
    %v558 = vadd.f32 %v553, -1.4531521
    %v559 = vadd.f32 %v554, -1.4531521
    %v560 = vadd.f32 %v555, -1.4531521
    %v561 = vadd.f32 %v556, -1.4531521
    %v562 = vadd.f32 %v557, -1.4531521
    %v563 = vmul.f32 %v544, %v558
    %v564 = vmul.f32 %v546, %v559
    %v565 = vmul.f32 %v548, %v560
    %v566 = vmul.f32 %v550, %v561
    %v567 = vmul.f32 %v552, %v562
    %v568 = vadd.f32 %v563, 1.4214138
    %v569 = vadd.f32 %v564, 1.4214138
    %v570 = vadd.f32 %v565, 1.4214138
    %v571 = vadd.f32 %v566, 1.4214138
    %v572 = vadd.f32 %v567, 1.4214138
    %v573 = vmul.f32 %v544, %v568
    %v574 = vmul.f32 %v546, %v569
    %v575 = vmul.f32 %v548, %v570
    %v576 = vmul.f32 %v550, %v571
    %v577 = vmul.f32 %v552, %v572
    %v578 = vadd.f32 %v573, -0.28449672
    %v579 = vadd.f32 %v574, -0.28449672
    %v580 = vadd.f32 %v575, -0.28449672
    %v581 = vadd.f32 %v576, -0.28449672
    %v582 = vadd.f32 %v577, -0.28449672
    %v583 = vmul.f32 %v544, %v578
    %v584 = vmul.f32 %v546, %v579
    %v585 = vmul.f32 %v548, %v580
    %v586 = vmul.f32 %v550, %v581
    %v587 = vmul.f32 %v552, %v582
    %v588 = vadd.f32 %v583, 0.2548296
    %v589 = vadd.f32 %v584, 0.2548296
    %v590 = vadd.f32 %v585, 0.2548296
    %v591 = vadd.f32 %v586, 0.2548296
    %v592 = vadd.f32 %v587, 0.2548296
    %v593 = vmul.f32 %v544, %v588
    %v594 = vmul.f32 %v546, %v589
    %v595 = vmul.f32 %v548, %v590
    %v596 = vmul.f32 %v550, %v591
    %v597 = vmul.f32 %v552, %v592
    %v598 = vsub.f32 0.0, %v528
    %v599 = vsub.f32 0.0, %v529
    %v600 = vsub.f32 0.0, %v530
    %v601 = vsub.f32 0.0, %v531
    %v602 = vsub.f32 0.0, %v532
    %v603 = vmul.f32 %v598, %v528
    %v604 = vmul.f32 %v599, %v529
    %v605 = vmul.f32 %v600, %v530
    %v606 = vmul.f32 %v601, %v531
    %v607 = vmul.f32 %v602, %v532
    %v608 = vmul.f32 %v603, 1.442695
    %v609 = vpow.pop %v608
    %v610 = vmul.f32 %v604, 1.442695
    %v611 = vpow.pop %v610
    %v612 = vmul.f32 %v605, 1.442695
    %v613 = vpow.pop %v612
    %v614 = vmul.f32 %v606, 1.442695
    %v615 = vpow.pop %v614
    %v616 = vmul.f32 %v607, 1.442695
    %v617 = vpow.pop %v616
    %v618 = vmul.f32 %v593, %v609
    %v619 = vmul.f32 %v594, %v611
    %v620 = vmul.f32 %v595, %v613
    %v621 = vmul.f32 %v596, %v615
    %v622 = vmul.f32 %v597, %v617
    %v623 = vsub.f32 1.0, %v618
    %v624 = vsub.f32 1.0, %v619
    %v625 = vsub.f32 1.0, %v620
    %v626 = vsub.f32 1.0, %v621
    %v627 = vsub.f32 1.0, %v622
    %vm628 = vcmp.lt.f32.partialorder %v523, 0.0
    %vm629 = vcmp.lt.f32.partialorder %v524, 0.0
    %vm630 = vcmp.lt.f32.partialorder %v525, 0.0
    %vm631 = vcmp.lt.f32.partialorder %v526, 0.0
    %vm632 = vcmp.lt.f32.partialorder %v527, 0.0
    %v633 = vsub.f32 0.0, %v623
    %v634 = vsub.f32 0.0, %v624
    %v635 = vsub.f32 0.0, %v625
    %v636 = vsub.f32 0.0, %v626
    %v637 = vsub.f32 0.0, %v627
    %v638 = vsel %vm628, %v633, %v623
    %v639 = vsel %vm629, %v634, %v624
    %v640 = vsel %vm630, %v635, %v625
    %v641 = vsel %vm631, %v636, %v626
    %v642 = vsel %vm632, %v637, %v627
    %v643 = vadd.f32 %v638, 1.0
    %v644 = vadd.f32 %v639, 1.0
    %v645 = vadd.f32 %v640, 1.0
    %v646 = vadd.f32 %v641, 1.0
    %v647 = vadd.f32 %v642, 1.0
    %v648 = vmul.f32 %v518, %v643
    %v649 = vmul.f32 %v519, %v644
    %v650 = vmul.f32 %v520, %v645
    %v651 = vmul.f32 %v521, %v646
    %v652 = vmul.f32 %v522, %v647
    %v653 = vadd.f32 %v648, %v649
    %v654 = vadd.f32 %v653, %v650
    %v655 = vadd.f32 %v654, %v651
    %v656 = vadd.f32 %v655, %v652
    %657 = vadd.xlane.f32.xlu0 %v656
    %v658 = vpop.xlane.xlu0 %657
    %v659 = vrcp.pop 640.0
    %v660 = vmul.f32 %v658, %v659
    %v661 = vmul.f32 %v648, %v648
    %v662 = vmul.f32 %v649, %v649
    %v663 = vmul.f32 %v650, %v650
    %v664 = vmul.f32 %v651, %v651
    %v665 = vmul.f32 %v652, %v652
    %v666 = vadd.f32 %v661, %v662
    %v667 = vadd.f32 %v666, %v663
    %v668 = vadd.f32 %v667, %v664
    %v669 = vadd.f32 %v668, %v665
    %670 = vadd.xlane.f32.xlu0 %v669
    %v671 = vpop.xlane.xlu0 %670
    %v672 = vmul.f32 %v671, %v659
    %v673 = vsub.f32 %v648, %v660
    %v674 = vsub.f32 %v649, %v660
    %v675 = vsub.f32 %v650, %v660
    %v676 = vsub.f32 %v651, %v660
    %v677 = vsub.f32 %v652, %v660
    %v678 = vmul.f32 %v660, %v660
    %v679 = vsub.f32 %v672, %v678
    %v680 = vadd.f32 %v679, 1e-05
    %v681 = vrsqrt.pop %v680
    %v682 = vmul.f32 %v673, %v681
    %v683 = vmul.f32 %v674, %v681
    %v684 = vmul.f32 %v675, %v681
    %v685 = vmul.f32 %v676, %v681
    %v686 = vmul.f32 %v677, %v681
    %v687 = vlaneseq
    %v688 = vshrl.u32 %v687, 7
    %v689 = vsub.s32 1, %v688
    %v690 = vrot.slane %v137, %v689
    %v691 = vlaneseq
    %v692 = vshrl.u32 %v691, 7
    %v693 = vsub.s32 5, %v692
    %v694 = vrot.slane %v137, %v693
    %v695 = vlaneseq
    %v696 = vshrl.u32 %v695, 7
    %v697 = vsub.s32 1, %v696
    %v698 = vrot.slane %v138, %v697
    %v699 = vlaneseq
    %v700 = vshrl.u32 %v699, 7
    %v701 = vsub.s32 5, %v700
    %v702 = vrot.slane %v138, %v701
    %v703 = vlaneseq
    %v704 = vshrl.u32 %v703, 7
    %v705 = vsub.s32 1, %v704
    %v706 = vrot.slane %v139, %v705
    %v712 = vlaneseq
    %v713 = vshrl.u32 %v712, 7
    %v714 = vsub.s32 1, %v713
    %v715 = vrot.slane %v690, %v714
    %v716 = vlaneseq
    %v717 = vshrl.u32 %v716, 7
    %v718 = vsub.s32 1, %v717
    %v719 = vrot.slane %v694, %v718
    %v720 = vlaneseq
    %v721 = vshrl.u32 %v720, 7
    %v722 = vsub.s32 1, %v721
    %v723 = vrot.slane %v698, %v722
    %v724 = vlaneseq
    %v725 = vshrl.u32 %v724, 7
    %v726 = vsub.s32 1, %v725
    %v727 = vrot.slane %v702, %v726
    %v728 = vlaneseq
    %v729 = vshrl.u32 %v728, 7
    %v730 = vsub.s32 1, %v729
    %v731 = vrot.slane %v706, %v730
    %v732 = vmul.f32 %v682, %v715
    %v733 = vmul.f32 %v683, %v719
    %v734 = vmul.f32 %v684, %v723
    %v735 = vmul.f32 %v685, %v727
    %v736 = vmul.f32 %v686, %v731
    %v737 = vlaneseq
    %v738 = vshrl.u32 %v737, 7
    %v739 = vsub.s32 2, %v738
    %v740 = vrot.slane %v137, %v739
    %v741 = vlaneseq
    %v742 = vshrl.u32 %v741, 7
    %v743 = vsub.s32 6, %v742
    %v744 = vrot.slane %v137, %v743
    %v745 = vlaneseq
    %v746 = vshrl.u32 %v745, 7
    %v747 = vsub.s32 2, %v746
    %v748 = vrot.slane %v138, %v747
    %v749 = vlaneseq
    %v750 = vshrl.u32 %v749, 7
    %v751 = vsub.s32 6, %v750
    %v752 = vrot.slane %v138, %v751
    %v753 = vlaneseq
    %v754 = vshrl.u32 %v753, 7
    %v755 = vsub.s32 2, %v754
    %v756 = vrot.slane %v139, %v755
    %v762 = vlaneseq
    %v763 = vshrl.u32 %v762, 7
    %v764 = vsub.s32 2, %v763
    %v765 = vrot.slane %v740, %v764
    %v766 = vlaneseq
    %v767 = vshrl.u32 %v766, 7
    %v768 = vsub.s32 2, %v767
    %v769 = vrot.slane %v744, %v768
    %v770 = vlaneseq
    %v771 = vshrl.u32 %v770, 7
    %v772 = vsub.s32 2, %v771
    %v773 = vrot.slane %v748, %v772
    %v774 = vlaneseq
    %v775 = vshrl.u32 %v774, 7
    %v776 = vsub.s32 2, %v775
    %v777 = vrot.slane %v752, %v776
    %v778 = vlaneseq
    %v779 = vshrl.u32 %v778, 7
    %v780 = vsub.s32 2, %v779
    %v781 = vrot.slane %v756, %v780
    %v782 = vadd.f32 %v732, %v765
    %v783 = vadd.f32 %v733, %v769
    %v784 = vadd.f32 %v734, %v773
    %v785 = vadd.f32 %v735, %v777
    %v786 = vadd.f32 %v736, %v781
    %v787 = vld [vmem:[#allocation4] sm:$0xf]
    %v788 = vld [vmem:[#allocation4 + $0x4] sm:$0xf]
    %v789 = vld [vmem:[#allocation4 + $0x8] sm:$0xf]
    %v790 = vld [vmem:[#allocation4 + $0xc] sm:$0xf]
    %v791 = vld [vmem:[#allocation4 + $0x10] sm:$0xf]
    %v792 = vld [vmem:[#allocation4 + $0x14] sm:$0xf]
    %v793 = vld [vmem:[#allocation4 + $0x18] sm:$0xf]
    %v794 = vld [vmem:[#allocation4 + $0x1c] sm:$0xf]
    %v795 = vld [vmem:[#allocation4 + $0x20] sm:$0xf]
    %v796 = vld [vmem:[#allocation4 + $0x24] sm:$0xf]
    %v797 = vld [vmem:[#allocation4 + $0x28] sm:$0xf]
    %v798 = vld [vmem:[#allocation4 + $0x2c] sm:$0xf]
    %v799 = vld [vmem:[#allocation4 + $0x30] sm:$0xf]
    %v800 = vld [vmem:[#allocation4 + $0x34] sm:$0xf]
    %v801 = vld [vmem:[#allocation4 + $0x38] sm:$0xf]
    %v802 = vld [vmem:[#allocation4 + $0x3c] sm:$0xf]
    %v803 = vld [vmem:[#allocation4 + $0x40] sm:$0xf]
    %v804 = vld [vmem:[#allocation4 + $0x44] sm:$0xf]
    %v805 = vld [vmem:[#allocation4 + $0x48] sm:$0xf]
    %v806 = vld [vmem:[#allocation4 + $0x4c] sm:$0xf]
    %v807 = vld [vmem:[#allocation4 + $0x50] sm:$0xf]
    %v808 = vld [vmem:[#allocation4 + $0x54] sm:$0xf]
    %v809 = vld [vmem:[#allocation4 + $0x58] sm:$0xf]
    %v810 = vld [vmem:[#allocation4 + $0x5c] sm:$0xf]
    %v811 = vld [vmem:[#allocation4 + $0x60] sm:$0xf]
    %v812 = vld [vmem:[#allocation4 + $0x64] sm:$0xf]
    %v813 = vld [vmem:[#allocation4 + $0x68] sm:$0xf]
    %v814 = vld [vmem:[#allocation4 + $0x6c] sm:$0xf]
    %v815 = vld [vmem:[#allocation4 + $0x70] sm:$0xf]
    %v816 = vld [vmem:[#allocation4 + $0x74] sm:$0xf]
    %v817 = vld [vmem:[#allocation4 + $0x78] sm:$0xf]
    %v818 = vld [vmem:[#allocation4 + $0x7c] sm:$0xf]
    %v819 = vld [vmem:[#allocation4 + $0x80] sm:$0xf]
    %v820 = vld [vmem:[#allocation4 + $0x84] sm:$0xf]
    %v821 = vld [vmem:[#allocation4 + $0x88] sm:$0xf]
    %v822 = vld [vmem:[#allocation4 + $0x8c] sm:$0xf]
    %v823 = vld [vmem:[#allocation4 + $0x90] sm:$0xf]
    %v824 = vld [vmem:[#allocation4 + $0x94] sm:$0xf]
    %v825 = vld [vmem:[#allocation4 + $0x98] sm:$0xf]
    %v826 = vld [vmem:[#allocation4 + $0x9c] sm:$0xf]
    %v827 = vld [vmem:[#allocation4 + $0xa0] sm:$0xf]
    %v828 = vld [vmem:[#allocation4 + $0xa4] sm:$0xf]
    %v829 = vld [vmem:[#allocation4 + $0xa8] sm:$0xf]
    %v830 = vld [vmem:[#allocation4 + $0xac] sm:$0xf]
    %v831 = vld [vmem:[#allocation4 + $0xb0] sm:$0xf]
    %v832 = vld [vmem:[#allocation4 + $0xb4] sm:$0xf]
    %v833 = vld [vmem:[#allocation4 + $0xb8] sm:$0xf]
    %v834 = vld [vmem:[#allocation4 + $0xbc] sm:$0xf]
    %v835 = vld [vmem:[#allocation4 + $0xc0] sm:$0xf]
    %v836 = vld [vmem:[#allocation4 + $0xc4] sm:$0xf]
    %v837 = vld [vmem:[#allocation4 + $0xc8] sm:$0xf]
    %v838 = vld [vmem:[#allocation4 + $0xcc] sm:$0xf]
    %v839 = vld [vmem:[#allocation4 + $0xd0] sm:$0xf]
    %v840 = vld [vmem:[#allocation4 + $0xd4] sm:$0xf]
    %v841 = vld [vmem:[#allocation4 + $0xd8] sm:$0xf]
    %v842 = vld [vmem:[#allocation4 + $0xdc] sm:$0xf]
    %v843 = vld [vmem:[#allocation4 + $0xe0] sm:$0xf]
    %v844 = vld [vmem:[#allocation4 + $0xe4] sm:$0xf]
    %v845 = vld [vmem:[#allocation4 + $0xe8] sm:$0xf]
    %v846 = vld [vmem:[#allocation4 + $0xec] sm:$0xf]
    %v847 = vld [vmem:[#allocation4 + $0xf0] sm:$0xf]
    %v848 = vld [vmem:[#allocation4 + $0xf4] sm:$0xf]
    %v849 = vld [vmem:[#allocation4 + $0xf8] sm:$0xf]
    %v850 = vld [vmem:[#allocation4 + $0xfc] sm:$0xf]
    %v851 = vld [vmem:[#allocation4 + $0x100] sm:$0xf]
    %v852 = vld [vmem:[#allocation4 + $0x104] sm:$0xf]
    %v853 = vld [vmem:[#allocation4 + $0x108] sm:$0xf]
    %v854 = vld [vmem:[#allocation4 + $0x10c] sm:$0xf]
    %v855 = vld [vmem:[#allocation4 + $0x110] sm:$0xf]
    %v856 = vld [vmem:[#allocation4 + $0x114] sm:$0xf]
    %v857 = vld [vmem:[#allocation4 + $0x118] sm:$0xf]
    %v858 = vld [vmem:[#allocation4 + $0x11c] sm:$0xf]
    %v859 = vld [vmem:[#allocation4 + $0x120] sm:$0xf]
    %v860 = vld [vmem:[#allocation4 + $0x124] sm:$0xf]
    %v861 = vld [vmem:[#allocation4 + $0x128] sm:$0xf]
    %v862 = vld [vmem:[#allocation4 + $0x12c] sm:$0xf]
    %v863 = vld [vmem:[#allocation4 + $0x130] sm:$0xf]
    %v864 = vld [vmem:[#allocation4 + $0x134] sm:$0xf]
    %v865 = vld [vmem:[#allocation4 + $0x138] sm:$0xf]
    %v866 = vld [vmem:[#allocation4 + $0x13c] sm:$0xf]
    %v867 = vld [vmem:[%s6] sm:$0x7]
    %v868 = vpack.c.bf16 %v782, %v782
    %v869 = vpack.c.bf16 %v783, %v783
    %v870 = vpack.c.bf16 %v784, %v784
    %v871 = vpack.c.bf16 %v785, %v785
    %v872 = vpack.c.bf16 %v786, %v786
    %v873 = vlaneseq
    %v874 = vshrl.u32 %v873, 7
    %v875 = vsub.s32 0, %v874
    %v876 = vrot.slane %v867, %v875
    %v957 = vunpack.c.l.b16 %v787
    %v958 = vunpack.c.l.b16 %v788
    %v959 = vunpack.c.l.b16 %v789
    %v960 = vunpack.c.l.b16 %v790
    %v961 = vunpack.c.l.b16 %v791
    %v962 = vunpack.c.l.b16 %v792
    %v963 = vunpack.c.l.b16 %v793
    %v964 = vunpack.c.l.b16 %v794
    %v965 = vunpack.c.l.b16 %v795
    %v966 = vunpack.c.l.b16 %v796
    %v967 = vunpack.c.l.b16 %v797
    %v968 = vunpack.c.l.b16 %v798
    %v969 = vunpack.c.l.b16 %v799
    %v970 = vunpack.c.l.b16 %v800
    %v971 = vunpack.c.l.b16 %v801
    %v972 = vunpack.c.l.b16 %v802
    %v973 = vunpack.c.l.b16 %v803
    %v974 = vunpack.c.l.b16 %v804
    %v975 = vunpack.c.l.b16 %v805
    %v976 = vunpack.c.l.b16 %v806
    %v977 = vunpack.c.l.b16 %v807
    %v978 = vunpack.c.l.b16 %v808
    %v979 = vunpack.c.l.b16 %v809
    %v980 = vunpack.c.l.b16 %v810
    %v981 = vunpack.c.l.b16 %v811
    %v982 = vunpack.c.l.b16 %v812
    %v983 = vunpack.c.l.b16 %v813
    %v984 = vunpack.c.l.b16 %v814
    %v985 = vunpack.c.l.b16 %v815
    %v986 = vunpack.c.l.b16 %v816
    %v987 = vunpack.c.l.b16 %v817
    %v988 = vunpack.c.l.b16 %v818
    %v989 = vunpack.c.l.b16 %v819
    %v990 = vunpack.c.l.b16 %v820
    %v991 = vunpack.c.l.b16 %v821
    %v992 = vunpack.c.l.b16 %v822
    %v993 = vunpack.c.l.b16 %v823
    %v994 = vunpack.c.l.b16 %v824
    %v995 = vunpack.c.l.b16 %v825
    %v996 = vunpack.c.l.b16 %v826
    %v997 = vunpack.c.l.b16 %v827
    %v998 = vunpack.c.l.b16 %v828
    %v999 = vunpack.c.l.b16 %v829
    %v1000 = vunpack.c.l.b16 %v830
    %v1001 = vunpack.c.l.b16 %v831
    %v1002 = vunpack.c.l.b16 %v832
    %v1003 = vunpack.c.l.b16 %v833
    %v1004 = vunpack.c.l.b16 %v834
    %v1005 = vunpack.c.l.b16 %v835
    %v1006 = vunpack.c.l.b16 %v836
    %v1007 = vunpack.c.l.b16 %v837
    %v1008 = vunpack.c.l.b16 %v838
    %v1009 = vunpack.c.l.b16 %v839
    %v1010 = vunpack.c.l.b16 %v840
    %v1011 = vunpack.c.l.b16 %v841
    %v1012 = vunpack.c.l.b16 %v842
    %v1013 = vunpack.c.l.b16 %v843
    %v1014 = vunpack.c.l.b16 %v844
    %v1015 = vunpack.c.l.b16 %v845
    %v1016 = vunpack.c.l.b16 %v846
    %v1017 = vunpack.c.l.b16 %v847
    %v1018 = vunpack.c.l.b16 %v848
    %v1019 = vunpack.c.l.b16 %v849
    %v1020 = vunpack.c.l.b16 %v850
    %v1021 = vunpack.c.l.b16 %v851
    %v1022 = vunpack.c.l.b16 %v852
    %v1023 = vunpack.c.l.b16 %v853
    %v1024 = vunpack.c.l.b16 %v854
    %v1025 = vunpack.c.l.b16 %v855
    %v1026 = vunpack.c.l.b16 %v856
    %v1027 = vunpack.c.l.b16 %v857
    %v1028 = vunpack.c.l.b16 %v858
    %v1029 = vunpack.c.l.b16 %v859
    %v1030 = vunpack.c.l.b16 %v860
    %v1031 = vunpack.c.l.b16 %v861
    %v1032 = vunpack.c.l.b16 %v862
    %v1033 = vunpack.c.l.b16 %v863
    %v1034 = vunpack.c.l.b16 %v864
    %v1035 = vunpack.c.l.b16 %v865
    %v1036 = vunpack.c.l.b16 %v866
    %v1037 = vpack.c.b16 %v958, %v957
    %v1038 = vpack.c.b16 %v960, %v959
    %v1039 = vpack.c.b16 %v962, %v961
    %v1040 = vpack.c.b16 %v964, %v963
    %v1041 = vpack.c.b16 %v966, %v965
    %v1042 = vpack.c.b16 %v968, %v967
    %v1043 = vpack.c.b16 %v970, %v969
    %v1044 = vpack.c.b16 %v972, %v971
    %v1045 = vpack.c.b16 %v974, %v973
    %v1046 = vpack.c.b16 %v976, %v975
    %v1047 = vpack.c.b16 %v978, %v977
    %v1048 = vpack.c.b16 %v980, %v979
    %v1049 = vpack.c.b16 %v982, %v981
    %v1050 = vpack.c.b16 %v984, %v983
    %v1051 = vpack.c.b16 %v986, %v985
    %v1052 = vpack.c.b16 %v988, %v987
    %v1053 = vpack.c.b16 %v990, %v989
    %v1054 = vpack.c.b16 %v992, %v991
    %v1055 = vpack.c.b16 %v994, %v993
    %v1056 = vpack.c.b16 %v996, %v995
    %v1057 = vpack.c.b16 %v998, %v997
    %v1058 = vpack.c.b16 %v1000, %v999
    %v1059 = vpack.c.b16 %v1002, %v1001
    %v1060 = vpack.c.b16 %v1004, %v1003
    %v1061 = vpack.c.b16 %v1006, %v1005
    %v1062 = vpack.c.b16 %v1008, %v1007
    %v1063 = vpack.c.b16 %v1010, %v1009
    %v1064 = vpack.c.b16 %v1012, %v1011
    %v1065 = vpack.c.b16 %v1014, %v1013
    %v1066 = vpack.c.b16 %v1016, %v1015
    %v1067 = vpack.c.b16 %v1018, %v1017
    %v1068 = vpack.c.b16 %v1020, %v1019
    %v1069 = vpack.c.b16 %v1022, %v1021
    %v1070 = vpack.c.b16 %v1024, %v1023
    %v1071 = vpack.c.b16 %v1026, %v1025
    %v1072 = vpack.c.b16 %v1028, %v1027
    %v1073 = vpack.c.b16 %v1030, %v1029
    %v1074 = vpack.c.b16 %v1032, %v1031
    %v1075 = vpack.c.b16 %v1034, %v1033
    %v1076 = vpack.c.b16 %v1036, %v1035
    %1117 = vmatprep.subr.bf16.mxu0 0
    %1118 = vmatpush1.bf16.msra.mxu0 %v1044
    %1119 = vmatprep.subr.bf16.mxu0 0
    %1120 = vmatpush1.bf16.msra.mxu0 %v1043
    %1121 = vmatprep.subr.bf16.mxu0 0
    %1122 = vmatpush1.bf16.msra.mxu0 %v1042
    %1123 = vmatprep.subr.bf16.mxu0 0
    %1124 = vmatpush1.bf16.msra.mxu0 %v1041
    %1125 = vmatprep.subr.bf16.mxu0 0
    %1126 = vmatpush1.bf16.msra.mxu0 %v1040
    %1127 = vmatprep.subr.bf16.mxu0 0
    %1128 = vmatpush1.bf16.msra.mxu0 %v1039
    %1129 = vmatprep.subr.bf16.mxu0 0
    %1130 = vmatpush1.bf16.msra.mxu0 %v1038
    %1131 = vmatprep.subr.bf16.mxu0 0
    %1132 = vmatpush1.bf16.msra.mxu0 %v1037
    %1133 = vmatprep.subr.bf16.mxu0 0
    %1134 = vmatpush2.bf16.msra.mxu0 %v1052
    %1135 = vmatprep.subr.bf16.mxu0 0
    %1136 = vmatpush2.bf16.msra.mxu0 %v1051
    %1137 = vmatprep.subr.bf16.mxu0 0
    %1138 = vmatpush2.bf16.msra.mxu0 %v1050
    %1139 = vmatprep.subr.bf16.mxu0 0
    %1140 = vmatpush2.bf16.msra.mxu0 %v1049
    %1141 = vmatprep.subr.bf16.mxu0 0
    %1142 = vmatpush2.bf16.msra.mxu0 %v1048
    %1143 = vmatprep.subr.bf16.mxu0 0
    %1144 = vmatpush2.bf16.msra.mxu0 %v1047
    %1145 = vmatprep.subr.bf16.mxu0 0
    %1146 = vmatpush2.bf16.msra.mxu0 %v1046
    %1147 = vmatprep.subr.bf16.mxu0 0
    %1148 = vmatpush2.bf16.msra.mxu0 %v1045
    %1149 = vmatprep.mubr.bf16.mxu0 %v869
    %1150 = vmatmul.mubr.bf16.gmra.mxu0 %v868
    %v1151 = vpop.f32.mrf.mxu0
    %v1152 = vadd.f32 %v876, %v1151
    %v1153 = vpop.f32.mrf.mxu0
    %v1154 = vpop.f32.mrf.mxu0
    %v1155 = vpop.f32.mrf.mxu0
    %1156 = vdwg.mxu0
    %1157 = vmatprep.subr.bf16.mxu0 0
    %1158 = vmatpush1.bf16.msra.mxu0 %v1060
    %1159 = vmatprep.subr.bf16.mxu0 0
    %1160 = vmatpush1.bf16.msra.mxu0 %v1059
    %1161 = vmatprep.subr.bf16.mxu0 0
    %1162 = vmatpush1.bf16.msra.mxu0 %v1058
    %1163 = vmatprep.subr.bf16.mxu0 0
    %1164 = vmatpush1.bf16.msra.mxu0 %v1057
    %1165 = vmatprep.subr.bf16.mxu0 0
    %1166 = vmatpush1.bf16.msra.mxu0 %v1056
    %1167 = vmatprep.subr.bf16.mxu0 0
    %1168 = vmatpush1.bf16.msra.mxu0 %v1055
    %1169 = vmatprep.subr.bf16.mxu0 0
    %1170 = vmatpush1.bf16.msra.mxu0 %v1054
    %1171 = vmatprep.subr.bf16.mxu0 0
    %1172 = vmatpush1.bf16.msra.mxu0 %v1053
    %1173 = vmatprep.subr.bf16.mxu0 0
    %1174 = vmatpush2.bf16.msra.mxu0 %v1068
    %1175 = vmatprep.subr.bf16.mxu0 0
    %1176 = vmatpush2.bf16.msra.mxu0 %v1067
    %1177 = vmatprep.subr.bf16.mxu0 0
    %1178 = vmatpush2.bf16.msra.mxu0 %v1066
    %1179 = vmatprep.subr.bf16.mxu0 0
    %1180 = vmatpush2.bf16.msra.mxu0 %v1065
    %1181 = vmatprep.subr.bf16.mxu0 0
    %1182 = vmatpush2.bf16.msra.mxu0 %v1064
    %1183 = vmatprep.subr.bf16.mxu0 0
    %1184 = vmatpush2.bf16.msra.mxu0 %v1063
    %1185 = vmatprep.subr.bf16.mxu0 0
    %1186 = vmatpush2.bf16.msra.mxu0 %v1062
    %1187 = vmatprep.subr.bf16.mxu0 0
    %1188 = vmatpush2.bf16.msra.mxu0 %v1061
    %1189 = vmatprep.mubr.bf16.mxu0 %v871
    %1190 = vmatmul.mubr.bf16.gmra.mxu0 %v870
    %v1191 = vpop.f32.mrf.mxu0
    %v1192 = vadd.f32 %v1152, %v1191
    %v1193 = vpop.f32.mrf.mxu0
    %v1194 = vpop.f32.mrf.mxu0
    %v1195 = vpop.f32.mrf.mxu0
    %1196 = vdwg.mxu0
    %1197 = vmatprep.subr.bf16.mxu0 0
    %1198 = vmatpush1.bf16.msra.mxu0 %v1076
    %1199 = vmatprep.subr.bf16.mxu0 0
    %1200 = vmatpush1.bf16.msra.mxu0 %v1075
    %1201 = vmatprep.subr.bf16.mxu0 0
    %1202 = vmatpush1.bf16.msra.mxu0 %v1074
    %1203 = vmatprep.subr.bf16.mxu0 0
    %1204 = vmatpush1.bf16.msra.mxu0 %v1073
    %1205 = vmatprep.subr.bf16.mxu0 0
    %1206 = vmatpush1.bf16.msra.mxu0 %v1072
    %1207 = vmatprep.subr.bf16.mxu0 0
    %1208 = vmatpush1.bf16.msra.mxu0 %v1071
    %1209 = vmatprep.subr.bf16.mxu0 0
    %1210 = vmatpush1.bf16.msra.mxu0 %v1070
    %1211 = vmatprep.subr.bf16.mxu0 0
    %1212 = vmatpush1.bf16.msra.mxu0 %v1069
    %1213 = vmatprep.subr.bf16.mxu0 0
    %1214 = vmatpush2.bf16.msra.mxu0 0
    %1215 = vmatprep.subr.bf16.mxu0 0
    %1216 = vmatpush2.bf16.msra.mxu0 0
    %1217 = vmatprep.subr.bf16.mxu0 0
    %1218 = vmatpush2.bf16.msra.mxu0 0
    %1219 = vmatprep.subr.bf16.mxu0 0
    %1220 = vmatpush2.bf16.msra.mxu0 0
    %1221 = vmatprep.subr.bf16.mxu0 0
    %1222 = vmatpush2.bf16.msra.mxu0 0
    %1223 = vmatprep.subr.bf16.mxu0 0
    %1224 = vmatpush2.bf16.msra.mxu0 0
    %1225 = vmatprep.subr.bf16.mxu0 0
    %1226 = vmatpush2.bf16.msra.mxu0 0
    %1227 = vmatprep.subr.bf16.mxu0 0
    %1228 = vmatpush2.bf16.msra.mxu0 0
    %1229 = vmatprep.mubr.bf16.mxu0 0
    %1230 = vmatmul.mubr.bf16.gmra.mxu0 %v872
    %v1231 = vpop.f32.mrf.mxu0
    %v1232 = vadd.f32 %v1192, %v1231
    %v1233 = vpop.f32.mrf.mxu0
    %v1234 = vpop.f32.mrf.mxu0
    %v1235 = vpop.f32.mrf.mxu0
    %1236 = vdwg.mxu0
    %v1237 = vmul.f32 %v1232, 0.5
    %v1238 = vmul.f32 %v1232, 0.70710677
    %v1239 = vand.u32 2147483647, %v1238
    %v1240 = vmul.f32 %v1239, 0.3275911
    %v1241 = vadd.f32 %v1240, 1.0
    %v1242 = vrcp.pop %v1241
    %v1243 = vmul.f32 1.0, %v1242
    %v1244 = vmul.f32 %v1243, 1.0614054
    %v1245 = vadd.f32 %v1244, -1.4531521
    %v1246 = vmul.f32 %v1243, %v1245
    %v1247 = vadd.f32 %v1246, 1.4214138
    %v1248 = vmul.f32 %v1243, %v1247
    %v1249 = vadd.f32 %v1248, -0.28449672
    %v1250 = vmul.f32 %v1243, %v1249
    %v1251 = vadd.f32 %v1250, 0.2548296
    %v1252 = vmul.f32 %v1243, %v1251
    %v1253 = vsub.f32 0.0, %v1239
    %v1254 = vmul.f32 %v1253, %v1239
    %v1255 = vmul.f32 %v1254, 1.442695
    %v1256 = vpow.pop %v1255
    %v1257 = vmul.f32 %v1252, %v1256
    %v1258 = vsub.f32 1.0, %v1257
    %vm1259 = vcmp.lt.f32.partialorder %v1238, 0.0
    %v1260 = vsub.f32 0.0, %v1258
    %v1261 = vsel %vm1259, %v1260, %v1258
    %v1262 = vadd.f32 %v1261, 1.0
    %v1263 = vmul.f32 %v1237, %v1262
    %1264 = vadd.xlane.f32.xlu0 %v1263
    %v1265 = vpop.xlane.xlu0 %1264
    %v1266 = vrcp.pop 128.0
    %v1267 = vmul.f32 %v1265, %v1266
    %v1268 = vmul.f32 %v1263, %v1263
    %1269 = vadd.xlane.f32.xlu0 %v1268
    %v1270 = vpop.xlane.xlu0 %1269
    %v1271 = vmul.f32 %v1270, %v1266
    %v1272 = vsub.f32 %v1263, %v1267
    %v1273 = vmul.f32 %v1267, %v1267
    %v1274 = vsub.f32 %v1271, %v1273
    %v1275 = vadd.f32 %v1274, 1e-05
    %v1276 = vrsqrt.pop %v1275
    %v1277 = vmul.f32 %v1272, %v1276
    %v1278 = vlaneseq
    %v1279 = vshrl.u32 %v1278, 7
    %v1280 = vsub.s32 1, %v1279
    %v1281 = vrot.slane %v867, %v1280
    %v1282 = vmul.f32 %v1277, %v1281
    %v1283 = vlaneseq
    %v1284 = vshrl.u32 %v1283, 7
    %v1285 = vsub.s32 2, %v1284
    %v1286 = vrot.slane %v867, %v1285
    %v1287 = vadd.f32 %v1282, %v1286
    %v1288 = vld [vmem:[#allocation6] sm:$0xf]
    %v1289 = vld [vmem:[#allocation6 + $0x4] sm:$0xf]
    %v1290 = vld [vmem:[#allocation6 + $0x8] sm:$0xf]
    %v1291 = vld [vmem:[#allocation6 + $0xc] sm:$0xf]
    %v1292 = vld [vmem:[#allocation6 + $0x10] sm:$0xf]
    %v1293 = vld [vmem:[#allocation6 + $0x14] sm:$0xf]
    %v1294 = vld [vmem:[#allocation6 + $0x18] sm:$0xf]
    %v1295 = vld [vmem:[#allocation6 + $0x1c] sm:$0xf]
    %v1296 = vld [vmem:[#allocation6 + $0x20] sm:$0xf]
    %v1297 = vld [vmem:[#allocation6 + $0x24] sm:$0xf]
    %v1298 = vld [vmem:[#allocation6 + $0x28] sm:$0xf]
    %v1299 = vld [vmem:[#allocation6 + $0x2c] sm:$0xf]
    %v1300 = vld [vmem:[#allocation6 + $0x30] sm:$0xf]
    %v1301 = vld [vmem:[#allocation6 + $0x34] sm:$0xf]
    %v1302 = vld [vmem:[#allocation6 + $0x38] sm:$0xf]
    %v1303 = vld [vmem:[#allocation6 + $0x3c] sm:$0xf]
    %s1304 = scalar_lea.vmem %s6, 4
    %v1305 = vld [vmem:[%s1304] sm:$0x7]
    %v1306 = vpack.c.bf16 %v1287, %v1287
    %v1307 = vlaneseq
    %v1308 = vshrl.u32 %v1307, 7
    %v1309 = vsub.s32 0, %v1308
    %v1310 = vrot.slane %v1305, %v1309
    %v1327 = vunpack.c.l.b16 %v1288
    %v1328 = vunpack.c.l.b16 %v1289
    %v1329 = vunpack.c.l.b16 %v1290
    %v1330 = vunpack.c.l.b16 %v1291
    %v1331 = vunpack.c.l.b16 %v1292
    %v1332 = vunpack.c.l.b16 %v1293
    %v1333 = vunpack.c.l.b16 %v1294
    %v1334 = vunpack.c.l.b16 %v1295
    %v1335 = vunpack.c.l.b16 %v1296
    %v1336 = vunpack.c.l.b16 %v1297
    %v1337 = vunpack.c.l.b16 %v1298
    %v1338 = vunpack.c.l.b16 %v1299
    %v1339 = vunpack.c.l.b16 %v1300
    %v1340 = vunpack.c.l.b16 %v1301
    %v1341 = vunpack.c.l.b16 %v1302
    %v1342 = vunpack.c.l.b16 %v1303
    %v1343 = vpack.c.b16 %v1328, %v1327
    %v1344 = vpack.c.b16 %v1330, %v1329
    %v1345 = vpack.c.b16 %v1332, %v1331
    %v1346 = vpack.c.b16 %v1334, %v1333
    %v1347 = vpack.c.b16 %v1336, %v1335
    %v1348 = vpack.c.b16 %v1338, %v1337
    %v1349 = vpack.c.b16 %v1340, %v1339
    %v1350 = vpack.c.b16 %v1342, %v1341
    %1359 = vmatprep.subr.bf16.mxu0 0
    %1360 = vmatpush1.bf16.msra.mxu0 %v1350
    %1361 = vmatprep.subr.bf16.mxu0 0
    %1362 = vmatpush1.bf16.msra.mxu0 %v1349
    %1363 = vmatprep.subr.bf16.mxu0 0
    %1364 = vmatpush1.bf16.msra.mxu0 %v1348
    %1365 = vmatprep.subr.bf16.mxu0 0
    %1366 = vmatpush1.bf16.msra.mxu0 %v1347
    %1367 = vmatprep.subr.bf16.mxu0 0
    %1368 = vmatpush1.bf16.msra.mxu0 %v1346
    %1369 = vmatprep.subr.bf16.mxu0 0
    %1370 = vmatpush1.bf16.msra.mxu0 %v1345
    %1371 = vmatprep.subr.bf16.mxu0 0
    %1372 = vmatpush1.bf16.msra.mxu0 %v1344
    %1373 = vmatprep.subr.bf16.mxu0 0
    %1374 = vmatpush1.bf16.msra.mxu0 %v1343
    %1375 = vmatprep.subr.bf16.mxu0 0
    %1376 = vmatpush2.bf16.msra.mxu0 0
    %1377 = vmatprep.subr.bf16.mxu0 0
    %1378 = vmatpush2.bf16.msra.mxu0 0
    %1379 = vmatprep.subr.bf16.mxu0 0
    %1380 = vmatpush2.bf16.msra.mxu0 0
    %1381 = vmatprep.subr.bf16.mxu0 0
    %1382 = vmatpush2.bf16.msra.mxu0 0
    %1383 = vmatprep.subr.bf16.mxu0 0
    %1384 = vmatpush2.bf16.msra.mxu0 0
    %1385 = vmatprep.subr.bf16.mxu0 0
    %1386 = vmatpush2.bf16.msra.mxu0 0
    %1387 = vmatprep.subr.bf16.mxu0 0
    %1388 = vmatpush2.bf16.msra.mxu0 0
    %1389 = vmatprep.subr.bf16.mxu0 0
    %1390 = vmatpush2.bf16.msra.mxu0 0
    %1391 = vmatprep.mubr.bf16.mxu0 0
    %1392 = vmatmul.mubr.bf16.gmra.mxu0 %v1306
    %v1393 = vpop.f32.mrf.mxu0
    %v1394 = vadd.f32 %v1310, %v1393
    %v1395 = vpop.f32.mrf.mxu0
    %v1396 = vpop.f32.mrf.mxu0
    %v1397 = vpop.f32.mrf.mxu0
    %1398 = vdwg.mxu0
    %v1399 = vmul.f32 %v1394, 0.5
    %v1400 = vmul.f32 %v1394, 0.70710677
    %v1401 = vand.u32 2147483647, %v1400
    %v1402 = vmul.f32 %v1401, 0.3275911
    %v1403 = vadd.f32 %v1402, 1.0
    %v1404 = vrcp.pop %v1403
    %v1405 = vmul.f32 1.0, %v1404
    %v1406 = vmul.f32 %v1405, 1.0614054
    %v1407 = vadd.f32 %v1406, -1.4531521
    %v1408 = vmul.f32 %v1405, %v1407
    %v1409 = vadd.f32 %v1408, 1.4214138
    %v1410 = vmul.f32 %v1405, %v1409
    %v1411 = vadd.f32 %v1410, -0.28449672
    %v1412 = vmul.f32 %v1405, %v1411
    %v1413 = vadd.f32 %v1412, 0.2548296
    %v1414 = vmul.f32 %v1405, %v1413
    %v1415 = vsub.f32 0.0, %v1401
    %v1416 = vmul.f32 %v1415, %v1401
    %v1417 = vmul.f32 %v1416, 1.442695
    %v1418 = vpow.pop %v1417
    %v1419 = vmul.f32 %v1414, %v1418
    %v1420 = vsub.f32 1.0, %v1419
    %vm1421 = vcmp.lt.f32.partialorder %v1400, 0.0
    %v1422 = vsub.f32 0.0, %v1420
    %v1423 = vsel %vm1421, %v1422, %v1420
    %v1424 = vadd.f32 %v1423, 1.0
    %v1425 = vmul.f32 %v1399, %v1424
    %1426 = vadd.xlane.f32.xlu0 %v1425
    %v1427 = vpop.xlane.xlu0 %1426
    %v1428 = vmul.f32 %v1427, %v1266
    %v1429 = vmul.f32 %v1425, %v1425
    %1430 = vadd.xlane.f32.xlu0 %v1429
    %v1431 = vpop.xlane.xlu0 %1430
    %v1432 = vmul.f32 %v1431, %v1266
    %v1433 = vsub.f32 %v1425, %v1428
    %v1434 = vmul.f32 %v1428, %v1428
    %v1435 = vsub.f32 %v1432, %v1434
    %v1436 = vadd.f32 %v1435, 1e-05
    %v1437 = vrsqrt.pop %v1436
    %v1438 = vmul.f32 %v1433, %v1437
    %v1439 = vlaneseq
    %v1440 = vshrl.u32 %v1439, 7
    %v1441 = vsub.s32 1, %v1440
    %v1442 = vrot.slane %v1305, %v1441
    %v1443 = vmul.f32 %v1438, %v1442
    %v1444 = vlaneseq
    %v1445 = vshrl.u32 %v1444, 7
    %v1446 = vsub.s32 2, %v1445
    %v1447 = vrot.slane %v1305, %v1446
    %v1448 = vadd.f32 %v1443, %v1447
    %v1449 = vld [vmem:[%s1] sm:$0xf]
    %v1450 = vld [vmem:[#allocation7] sm:$0xff]
    %v1451 = vld [vmem:[#allocation7 + $0x8] sm:$0xff]
    %v1452 = vld [vmem:[#allocation7 + $0x10] sm:$0xff]
    %v1453 = vld [vmem:[#allocation7 + $0x18] sm:$0xff]
    %v1454 = vld [vmem:[#allocation7 + $0x20] sm:$0xff]
    %v1455 = vld [vmem:[#allocation7 + $0x28] sm:$0xff]
    %v1456 = vld [vmem:[#allocation7 + $0x30] sm:$0xff]
    %v1457 = vld [vmem:[#allocation7 + $0x38] sm:$0xff]
    %v1458 = vld [vmem:[#allocation7 + $0x40] sm:$0xff]
    %v1459 = vld [vmem:[#allocation7 + $0x48] sm:$0xff]
    %v1460 = vld [vmem:[#allocation7 + $0x50] sm:$0xff]
    %v1461 = vld [vmem:[#allocation7 + $0x58] sm:$0xff]
    %v1462 = vld [vmem:[#allocation7 + $0x60] sm:$0xff]
    %v1463 = vld [vmem:[#allocation7 + $0x68] sm:$0xff]
    %v1464 = vld [vmem:[#allocation7 + $0x70] sm:$0xff]
    %v1465 = vld [vmem:[#allocation7 + $0x78] sm:$0xff]
    %v1482 = vunpack.c.l.b16 %v1450
    %v1483 = vunpack.c.h.b16 %v1450
    %v1484 = vunpack.c.l.b16 %v1451
    %v1485 = vunpack.c.h.b16 %v1451
    %v1486 = vunpack.c.l.b16 %v1452
    %v1487 = vunpack.c.h.b16 %v1452
    %v1488 = vunpack.c.l.b16 %v1453
    %v1489 = vunpack.c.h.b16 %v1453
    %v1490 = vunpack.c.l.b16 %v1454
    %v1491 = vunpack.c.h.b16 %v1454
    %v1492 = vunpack.c.l.b16 %v1455
    %v1493 = vunpack.c.h.b16 %v1455
    %v1494 = vunpack.c.l.b16 %v1456
    %v1495 = vunpack.c.h.b16 %v1456
    %v1496 = vunpack.c.l.b16 %v1457
    %v1497 = vunpack.c.h.b16 %v1457
    %v1498 = vunpack.c.l.b16 %v1458
    %v1499 = vunpack.c.h.b16 %v1458
    %v1500 = vunpack.c.l.b16 %v1459
    %v1501 = vunpack.c.h.b16 %v1459
    %v1502 = vunpack.c.l.b16 %v1460
    %v1503 = vunpack.c.h.b16 %v1460
    %v1504 = vunpack.c.l.b16 %v1461
    %v1505 = vunpack.c.h.b16 %v1461
    %v1506 = vunpack.c.l.b16 %v1462
    %v1507 = vunpack.c.h.b16 %v1462
    %v1508 = vunpack.c.l.b16 %v1463
    %v1509 = vunpack.c.h.b16 %v1463
    %v1510 = vunpack.c.l.b16 %v1464
    %v1511 = vunpack.c.h.b16 %v1464
    %v1512 = vunpack.c.l.b16 %v1465
    %v1513 = vunpack.c.h.b16 %v1465
    %v1514 = vpack.c.b16 %v1484, %v1482
    %v1515 = vpack.c.b16 %v1485, %v1483
    %v1516 = vpack.c.b16 %v1488, %v1486
    %v1517 = vpack.c.b16 %v1489, %v1487
    %v1518 = vpack.c.b16 %v1492, %v1490
    %v1519 = vpack.c.b16 %v1493, %v1491
    %v1520 = vpack.c.b16 %v1496, %v1494
    %v1521 = vpack.c.b16 %v1497, %v1495
    %v1522 = vpack.c.b16 %v1500, %v1498
    %v1523 = vpack.c.b16 %v1501, %v1499
    %v1524 = vpack.c.b16 %v1504, %v1502
    %v1525 = vpack.c.b16 %v1505, %v1503
    %v1526 = vpack.c.b16 %v1508, %v1506
    %v1527 = vpack.c.b16 %v1509, %v1507
    %v1528 = vpack.c.b16 %v1512, %v1510
    %v1529 = vpack.c.b16 %v1513, %v1511
    %1546 = vmatprep.subr.bf16.mxu0 %v1529
    %1547 = vmatpush1.bf16.msra.mxu0 %v1528
    %1548 = vmatprep.subr.bf16.mxu0 %v1527
    %1549 = vmatpush1.bf16.msra.mxu0 %v1526
    %1550 = vmatprep.subr.bf16.mxu0 %v1525
    %1551 = vmatpush1.bf16.msra.mxu0 %v1524
    %1552 = vmatprep.subr.bf16.mxu0 %v1523
    %1553 = vmatpush1.bf16.msra.mxu0 %v1522
    %1554 = vmatprep.subr.bf16.mxu0 %v1521
    %1555 = vmatpush1.bf16.msra.mxu0 %v1520
    %1556 = vmatprep.subr.bf16.mxu0 %v1519
    %1557 = vmatpush1.bf16.msra.mxu0 %v1518
    %1558 = vmatprep.subr.bf16.mxu0 %v1517
    %1559 = vmatpush1.bf16.msra.mxu0 %v1516
    %1560 = vmatprep.subr.bf16.mxu0 %v1515
    %1561 = vmatpush1.bf16.msra.mxu0 %v1514
    %1562 = vmatprep.subr.bf16.mxu0 0
    %1563 = vmatpush2.bf16.msra.mxu0 0
    %1564 = vmatprep.subr.bf16.mxu0 0
    %1565 = vmatpush2.bf16.msra.mxu0 0
    %1566 = vmatprep.subr.bf16.mxu0 0
    %1567 = vmatpush2.bf16.msra.mxu0 0
    %1568 = vmatprep.subr.bf16.mxu0 0
    %1569 = vmatpush2.bf16.msra.mxu0 0
    %1570 = vmatprep.subr.bf16.mxu0 0
    %1571 = vmatpush2.bf16.msra.mxu0 0
    %1572 = vmatprep.subr.bf16.mxu0 0
    %1573 = vmatpush2.bf16.msra.mxu0 0
    %1574 = vmatprep.subr.bf16.mxu0 0
    %1575 = vmatpush2.bf16.msra.mxu0 0
    %1576 = vmatprep.subr.bf16.mxu0 0
    %1577 = vmatpush2.bf16.msra.mxu0 0
    %1578 = vmatprep.mubr.bf16.mxu0 0
    %1579 = vmatmul.mubr.bf16.gmra.mxu0 %v1449
    %v1580 = vpop.f32.mrf.mxu0
    %v1581 = vadd.f32 0.0, %v1580
    %v1582 = vpop.f32.mrf.mxu0
    %v1583 = vadd.f32 0.0, %v1582
    %v1584 = vpop.f32.mrf.mxu0
    %v1585 = vpop.f32.mrf.mxu0
    %1586 = vdwg.mxu0
    %v1587 = vadd.f32 %v1581, 1.0
    %v1588 = vmul.f32 %v1448, %v1587
    %v1589 = vadd.f32 %v1588, %v1583
    %s1590 = scalar_lea.vmem [#allocation6], 64
    %v1591 = vld [vmem:[%s1590] sm:$0xf]
    %v1592 = vld [vmem:[%s1590 + $0x4] sm:$0xf]
    %v1593 = vld [vmem:[%s1590 + $0x8] sm:$0xf]
    %v1594 = vld [vmem:[%s1590 + $0xc] sm:$0xf]
    %v1595 = vld [vmem:[%s1590 + $0x10] sm:$0xf]
    %v1596 = vld [vmem:[%s1590 + $0x14] sm:$0xf]
    %v1597 = vld [vmem:[%s1590 + $0x18] sm:$0xf]
    %v1598 = vld [vmem:[%s1590 + $0x1c] sm:$0xf]
    %v1599 = vld [vmem:[%s1590 + $0x20] sm:$0xf]
    %v1600 = vld [vmem:[%s1590 + $0x24] sm:$0xf]
    %v1601 = vld [vmem:[%s1590 + $0x28] sm:$0xf]
    %v1602 = vld [vmem:[%s1590 + $0x2c] sm:$0xf]
    %v1603 = vld [vmem:[%s1590 + $0x30] sm:$0xf]
    %v1604 = vld [vmem:[%s1590 + $0x34] sm:$0xf]
    %v1605 = vld [vmem:[%s1590 + $0x38] sm:$0xf]
    %v1606 = vld [vmem:[%s1590 + $0x3c] sm:$0xf]
    %s1607 = scalar_lea.vmem %s6, 8
    %v1608 = vld [vmem:[%s1607] sm:$0x7]
    %v1609 = vpack.c.bf16 %v1589, %v1589
    %v1610 = vlaneseq
    %v1611 = vshrl.u32 %v1610, 7
    %v1612 = vsub.s32 0, %v1611
    %v1613 = vrot.slane %v1608, %v1612
    %v1630 = vunpack.c.l.b16 %v1591
    %v1631 = vunpack.c.l.b16 %v1592
    %v1632 = vunpack.c.l.b16 %v1593
    %v1633 = vunpack.c.l.b16 %v1594
    %v1634 = vunpack.c.l.b16 %v1595
    %v1635 = vunpack.c.l.b16 %v1596
    %v1636 = vunpack.c.l.b16 %v1597
    %v1637 = vunpack.c.l.b16 %v1598
    %v1638 = vunpack.c.l.b16 %v1599
    %v1639 = vunpack.c.l.b16 %v1600
    %v1640 = vunpack.c.l.b16 %v1601
    %v1641 = vunpack.c.l.b16 %v1602
    %v1642 = vunpack.c.l.b16 %v1603
    %v1643 = vunpack.c.l.b16 %v1604
    %v1644 = vunpack.c.l.b16 %v1605
    %v1645 = vunpack.c.l.b16 %v1606
    %v1646 = vpack.c.b16 %v1631, %v1630
    %v1647 = vpack.c.b16 %v1633, %v1632
    %v1648 = vpack.c.b16 %v1635, %v1634
    %v1649 = vpack.c.b16 %v1637, %v1636
    %v1650 = vpack.c.b16 %v1639, %v1638
    %v1651 = vpack.c.b16 %v1641, %v1640
    %v1652 = vpack.c.b16 %v1643, %v1642
    %v1653 = vpack.c.b16 %v1645, %v1644
    %1662 = vmatprep.subr.bf16.mxu0 0
    %1663 = vmatpush1.bf16.msra.mxu0 %v1653
    %1664 = vmatprep.subr.bf16.mxu0 0
    %1665 = vmatpush1.bf16.msra.mxu0 %v1652
    %1666 = vmatprep.subr.bf16.mxu0 0
    %1667 = vmatpush1.bf16.msra.mxu0 %v1651
    %1668 = vmatprep.subr.bf16.mxu0 0
    %1669 = vmatpush1.bf16.msra.mxu0 %v1650
    %1670 = vmatprep.subr.bf16.mxu0 0
    %1671 = vmatpush1.bf16.msra.mxu0 %v1649
    %1672 = vmatprep.subr.bf16.mxu0 0
    %1673 = vmatpush1.bf16.msra.mxu0 %v1648
    %1674 = vmatprep.subr.bf16.mxu0 0
    %1675 = vmatpush1.bf16.msra.mxu0 %v1647
    %1676 = vmatprep.subr.bf16.mxu0 0
    %1677 = vmatpush1.bf16.msra.mxu0 %v1646
    %1678 = vmatprep.subr.bf16.mxu0 0
    %1679 = vmatpush2.bf16.msra.mxu0 0
    %1680 = vmatprep.subr.bf16.mxu0 0
    %1681 = vmatpush2.bf16.msra.mxu0 0
    %1682 = vmatprep.subr.bf16.mxu0 0
    %1683 = vmatpush2.bf16.msra.mxu0 0
    %1684 = vmatprep.subr.bf16.mxu0 0
    %1685 = vmatpush2.bf16.msra.mxu0 0
    %1686 = vmatprep.subr.bf16.mxu0 0
    %1687 = vmatpush2.bf16.msra.mxu0 0
    %1688 = vmatprep.subr.bf16.mxu0 0
    %1689 = vmatpush2.bf16.msra.mxu0 0
    %1690 = vmatprep.subr.bf16.mxu0 0
    %1691 = vmatpush2.bf16.msra.mxu0 0
    %1692 = vmatprep.subr.bf16.mxu0 0
    %1693 = vmatpush2.bf16.msra.mxu0 0
    %1694 = vmatprep.mubr.bf16.mxu0 0
    %1695 = vmatmul.mubr.bf16.gmra.mxu0 %v1609
    %v1696 = vpop.f32.mrf.mxu0
    %v1697 = vadd.f32 %v1613, %v1696
    %v1698 = vpop.f32.mrf.mxu0
    %v1699 = vpop.f32.mrf.mxu0
    %v1700 = vpop.f32.mrf.mxu0
    %1701 = vdwg.mxu0
    %v1702 = vmul.f32 %v1697, 0.5
    %v1703 = vmul.f32 %v1697, 0.70710677
    %v1704 = vand.u32 2147483647, %v1703
    %v1705 = vmul.f32 %v1704, 0.3275911
    %v1706 = vadd.f32 %v1705, 1.0
    %v1707 = vrcp.pop %v1706
    %v1708 = vmul.f32 1.0, %v1707
    %v1709 = vmul.f32 %v1708, 1.0614054
    %v1710 = vadd.f32 %v1709, -1.4531521
    %v1711 = vmul.f32 %v1708, %v1710
    %v1712 = vadd.f32 %v1711, 1.4214138
    %v1713 = vmul.f32 %v1708, %v1712
    %v1714 = vadd.f32 %v1713, -0.28449672
    %v1715 = vmul.f32 %v1708, %v1714
    %v1716 = vadd.f32 %v1715, 0.2548296
    %v1717 = vmul.f32 %v1708, %v1716
    %v1718 = vsub.f32 0.0, %v1704
    %v1719 = vmul.f32 %v1718, %v1704
    %v1720 = vmul.f32 %v1719, 1.442695
    %v1721 = vpow.pop %v1720
    %v1722 = vmul.f32 %v1717, %v1721
    %v1723 = vsub.f32 1.0, %v1722
    %vm1724 = vcmp.lt.f32.partialorder %v1703, 0.0
    %v1725 = vsub.f32 0.0, %v1723
    %v1726 = vsel %vm1724, %v1725, %v1723
    %v1727 = vadd.f32 %v1726, 1.0
    %v1728 = vmul.f32 %v1702, %v1727
    %1729 = vadd.xlane.f32.xlu0 %v1728
    %v1730 = vpop.xlane.xlu0 %1729
    %v1731 = vmul.f32 %v1730, %v1266
    %v1732 = vmul.f32 %v1728, %v1728
    %1733 = vadd.xlane.f32.xlu0 %v1732
    %v1734 = vpop.xlane.xlu0 %1733
    %v1735 = vmul.f32 %v1734, %v1266
    %v1736 = vsub.f32 %v1728, %v1731
    %v1737 = vmul.f32 %v1731, %v1731
    %v1738 = vsub.f32 %v1735, %v1737
    %v1739 = vadd.f32 %v1738, 1e-05
    %v1740 = vrsqrt.pop %v1739
    %v1741 = vmul.f32 %v1736, %v1740
    %v1742 = vlaneseq
    %v1743 = vshrl.u32 %v1742, 7
    %v1744 = vsub.s32 1, %v1743
    %v1745 = vrot.slane %v1608, %v1744
    %v1746 = vmul.f32 %v1741, %v1745
    %v1747 = vlaneseq
    %v1748 = vshrl.u32 %v1747, 7
    %v1749 = vsub.s32 2, %v1748
    %v1750 = vrot.slane %v1608, %v1749
    %v1751 = vadd.f32 %v1746, %v1750
    %s1752 = scalar_lea.vmem [#allocation6], 128
    %v1753 = vld [vmem:[%s1752] sm:$0xf]
    %v1754 = vld [vmem:[%s1752 + $0x4] sm:$0xf]
    %v1755 = vld [vmem:[%s1752 + $0x8] sm:$0xf]
    %v1756 = vld [vmem:[%s1752 + $0xc] sm:$0xf]
    %v1757 = vld [vmem:[%s1752 + $0x10] sm:$0xf]
    %v1758 = vld [vmem:[%s1752 + $0x14] sm:$0xf]
    %v1759 = vld [vmem:[%s1752 + $0x18] sm:$0xf]
    %v1760 = vld [vmem:[%s1752 + $0x1c] sm:$0xf]
    %v1761 = vld [vmem:[%s1752 + $0x20] sm:$0xf]
    %v1762 = vld [vmem:[%s1752 + $0x24] sm:$0xf]
    %v1763 = vld [vmem:[%s1752 + $0x28] sm:$0xf]
    %v1764 = vld [vmem:[%s1752 + $0x2c] sm:$0xf]
    %v1765 = vld [vmem:[%s1752 + $0x30] sm:$0xf]
    %v1766 = vld [vmem:[%s1752 + $0x34] sm:$0xf]
    %v1767 = vld [vmem:[%s1752 + $0x38] sm:$0xf]
    %v1768 = vld [vmem:[%s1752 + $0x3c] sm:$0xf]
    %s1769 = scalar_lea.vmem %s6, 12
    %v1770 = vld [vmem:[%s1769] sm:$0x7]
    %v1771 = vpack.c.bf16 %v1751, %v1751
    %v1772 = vlaneseq
    %v1773 = vshrl.u32 %v1772, 7
    %v1774 = vsub.s32 0, %v1773
    %v1775 = vrot.slane %v1770, %v1774
    %v1792 = vunpack.c.l.b16 %v1753
    %v1793 = vunpack.c.l.b16 %v1754
    %v1794 = vunpack.c.l.b16 %v1755
    %v1795 = vunpack.c.l.b16 %v1756
    %v1796 = vunpack.c.l.b16 %v1757
    %v1797 = vunpack.c.l.b16 %v1758
    %v1798 = vunpack.c.l.b16 %v1759
    %v1799 = vunpack.c.l.b16 %v1760
    %v1800 = vunpack.c.l.b16 %v1761
    %v1801 = vunpack.c.l.b16 %v1762
    %v1802 = vunpack.c.l.b16 %v1763
    %v1803 = vunpack.c.l.b16 %v1764
    %v1804 = vunpack.c.l.b16 %v1765
    %v1805 = vunpack.c.l.b16 %v1766
    %v1806 = vunpack.c.l.b16 %v1767
    %v1807 = vunpack.c.l.b16 %v1768
    %v1808 = vpack.c.b16 %v1793, %v1792
    %v1809 = vpack.c.b16 %v1795, %v1794
    %v1810 = vpack.c.b16 %v1797, %v1796
    %v1811 = vpack.c.b16 %v1799, %v1798
    %v1812 = vpack.c.b16 %v1801, %v1800
    %v1813 = vpack.c.b16 %v1803, %v1802
    %v1814 = vpack.c.b16 %v1805, %v1804
    %v1815 = vpack.c.b16 %v1807, %v1806
    %1824 = vmatprep.subr.bf16.mxu0 0
    %1825 = vmatpush1.bf16.msra.mxu0 %v1815
    %1826 = vmatprep.subr.bf16.mxu0 0
    %1827 = vmatpush1.bf16.msra.mxu0 %v1814
    %1828 = vmatprep.subr.bf16.mxu0 0
    %1829 = vmatpush1.bf16.msra.mxu0 %v1813
    %1830 = vmatprep.subr.bf16.mxu0 0
    %1831 = vmatpush1.bf16.msra.mxu0 %v1812
    %1832 = vmatprep.subr.bf16.mxu0 0
    %1833 = vmatpush1.bf16.msra.mxu0 %v1811
    %1834 = vmatprep.subr.bf16.mxu0 0
    %1835 = vmatpush1.bf16.msra.mxu0 %v1810
    %1836 = vmatprep.subr.bf16.mxu0 0
    %1837 = vmatpush1.bf16.msra.mxu0 %v1809
    %1838 = vmatprep.subr.bf16.mxu0 0
    %1839 = vmatpush1.bf16.msra.mxu0 %v1808
    %1840 = vmatprep.subr.bf16.mxu0 0
    %1841 = vmatpush2.bf16.msra.mxu0 0
    %1842 = vmatprep.subr.bf16.mxu0 0
    %1843 = vmatpush2.bf16.msra.mxu0 0
    %1844 = vmatprep.subr.bf16.mxu0 0
    %1845 = vmatpush2.bf16.msra.mxu0 0
    %1846 = vmatprep.subr.bf16.mxu0 0
    %1847 = vmatpush2.bf16.msra.mxu0 0
    %1848 = vmatprep.subr.bf16.mxu0 0
    %1849 = vmatpush2.bf16.msra.mxu0 0
    %1850 = vmatprep.subr.bf16.mxu0 0
    %1851 = vmatpush2.bf16.msra.mxu0 0
    %1852 = vmatprep.subr.bf16.mxu0 0
    %1853 = vmatpush2.bf16.msra.mxu0 0
    %1854 = vmatprep.subr.bf16.mxu0 0
    %1855 = vmatpush2.bf16.msra.mxu0 0
    %1856 = vmatprep.mubr.bf16.mxu0 0
    %1857 = vmatmul.mubr.bf16.gmra.mxu0 %v1771
    %v1858 = vpop.f32.mrf.mxu0
    %v1859 = vadd.f32 %v1775, %v1858
    %v1860 = vpop.f32.mrf.mxu0
    %v1861 = vpop.f32.mrf.mxu0
    %v1862 = vpop.f32.mrf.mxu0
    %1863 = vdwg.mxu0
    %v1864 = vmul.f32 %v1859, 0.5
    %v1865 = vmul.f32 %v1859, 0.70710677
    %v1866 = vand.u32 2147483647, %v1865
    %v1867 = vmul.f32 %v1866, 0.3275911
    %v1868 = vadd.f32 %v1867, 1.0
    %v1869 = vrcp.pop %v1868
    %v1870 = vmul.f32 1.0, %v1869
    %v1871 = vmul.f32 %v1870, 1.0614054
    %v1872 = vadd.f32 %v1871, -1.4531521
    %v1873 = vmul.f32 %v1870, %v1872
    %v1874 = vadd.f32 %v1873, 1.4214138
    %v1875 = vmul.f32 %v1870, %v1874
    %v1876 = vadd.f32 %v1875, -0.28449672
    %v1877 = vmul.f32 %v1870, %v1876
    %v1878 = vadd.f32 %v1877, 0.2548296
    %v1879 = vmul.f32 %v1870, %v1878
    %v1880 = vsub.f32 0.0, %v1866
    %v1881 = vmul.f32 %v1880, %v1866
    %v1882 = vmul.f32 %v1881, 1.442695
    %v1883 = vpow.pop %v1882
    %v1884 = vmul.f32 %v1879, %v1883
    %v1885 = vsub.f32 1.0, %v1884
    %vm1886 = vcmp.lt.f32.partialorder %v1865, 0.0
    %v1887 = vsub.f32 0.0, %v1885
    %v1888 = vsel %vm1886, %v1887, %v1885
    %v1889 = vadd.f32 %v1888, 1.0
    %v1890 = vmul.f32 %v1864, %v1889
    %1891 = vadd.xlane.f32.xlu0 %v1890
    %v1892 = vpop.xlane.xlu0 %1891
    %v1893 = vmul.f32 %v1892, %v1266
    %v1894 = vmul.f32 %v1890, %v1890
    %1895 = vadd.xlane.f32.xlu0 %v1894
    %v1896 = vpop.xlane.xlu0 %1895
    %v1897 = vmul.f32 %v1896, %v1266
    %v1898 = vsub.f32 %v1890, %v1893
    %v1899 = vmul.f32 %v1893, %v1893
    %v1900 = vsub.f32 %v1897, %v1899
    %v1901 = vadd.f32 %v1900, 1e-05
    %v1902 = vrsqrt.pop %v1901
    %v1903 = vmul.f32 %v1898, %v1902
    %v1904 = vlaneseq
    %v1905 = vshrl.u32 %v1904, 7
    %v1906 = vsub.s32 1, %v1905
    %v1907 = vrot.slane %v1770, %v1906
    %v1908 = vmul.f32 %v1903, %v1907
    %v1909 = vlaneseq
    %v1910 = vshrl.u32 %v1909, 7
    %v1911 = vsub.s32 2, %v1910
    %v1912 = vrot.slane %v1770, %v1911
    %v1913 = vadd.f32 %v1908, %v1912
    %v1914 = vadd.f32 %v1913, %v1448
    %s1915 = scalar_lea.vmem [#allocation7], 128
    %v1916 = vld [vmem:[%s1915] sm:$0xff]
    %v1917 = vld [vmem:[%s1915 + $0x8] sm:$0xff]
    %v1918 = vld [vmem:[%s1915 + $0x10] sm:$0xff]
    %v1919 = vld [vmem:[%s1915 + $0x18] sm:$0xff]
    %v1920 = vld [vmem:[%s1915 + $0x20] sm:$0xff]
    %v1921 = vld [vmem:[%s1915 + $0x28] sm:$0xff]
    %v1922 = vld [vmem:[%s1915 + $0x30] sm:$0xff]
    %v1923 = vld [vmem:[%s1915 + $0x38] sm:$0xff]
    %v1924 = vld [vmem:[%s1915 + $0x40] sm:$0xff]
    %v1925 = vld [vmem:[%s1915 + $0x48] sm:$0xff]
    %v1926 = vld [vmem:[%s1915 + $0x50] sm:$0xff]
    %v1927 = vld [vmem:[%s1915 + $0x58] sm:$0xff]
    %v1928 = vld [vmem:[%s1915 + $0x60] sm:$0xff]
    %v1929 = vld [vmem:[%s1915 + $0x68] sm:$0xff]
    %v1930 = vld [vmem:[%s1915 + $0x70] sm:$0xff]
    %v1931 = vld [vmem:[%s1915 + $0x78] sm:$0xff]
    %v1948 = vunpack.c.l.b16 %v1916
    %v1949 = vunpack.c.h.b16 %v1916
    %v1950 = vunpack.c.l.b16 %v1917
    %v1951 = vunpack.c.h.b16 %v1917
    %v1952 = vunpack.c.l.b16 %v1918
    %v1953 = vunpack.c.h.b16 %v1918
    %v1954 = vunpack.c.l.b16 %v1919
    %v1955 = vunpack.c.h.b16 %v1919
    %v1956 = vunpack.c.l.b16 %v1920
    %v1957 = vunpack.c.h.b16 %v1920
    %v1958 = vunpack.c.l.b16 %v1921
    %v1959 = vunpack.c.h.b16 %v1921
    %v1960 = vunpack.c.l.b16 %v1922
    %v1961 = vunpack.c.h.b16 %v1922
    %v1962 = vunpack.c.l.b16 %v1923
    %v1963 = vunpack.c.h.b16 %v1923
    %v1964 = vunpack.c.l.b16 %v1924
    %v1965 = vunpack.c.h.b16 %v1924
    %v1966 = vunpack.c.l.b16 %v1925
    %v1967 = vunpack.c.h.b16 %v1925
    %v1968 = vunpack.c.l.b16 %v1926
    %v1969 = vunpack.c.h.b16 %v1926
    %v1970 = vunpack.c.l.b16 %v1927
    %v1971 = vunpack.c.h.b16 %v1927
    %v1972 = vunpack.c.l.b16 %v1928
    %v1973 = vunpack.c.h.b16 %v1928
    %v1974 = vunpack.c.l.b16 %v1929
    %v1975 = vunpack.c.h.b16 %v1929
    %v1976 = vunpack.c.l.b16 %v1930
    %v1977 = vunpack.c.h.b16 %v1930
    %v1978 = vunpack.c.l.b16 %v1931
    %v1979 = vunpack.c.h.b16 %v1931
    %v1980 = vpack.c.b16 %v1950, %v1948
    %v1981 = vpack.c.b16 %v1951, %v1949
    %v1982 = vpack.c.b16 %v1954, %v1952
    %v1983 = vpack.c.b16 %v1955, %v1953
    %v1984 = vpack.c.b16 %v1958, %v1956
    %v1985 = vpack.c.b16 %v1959, %v1957
    %v1986 = vpack.c.b16 %v1962, %v1960
    %v1987 = vpack.c.b16 %v1963, %v1961
    %v1988 = vpack.c.b16 %v1966, %v1964
    %v1989 = vpack.c.b16 %v1967, %v1965
    %v1990 = vpack.c.b16 %v1970, %v1968
    %v1991 = vpack.c.b16 %v1971, %v1969
    %v1992 = vpack.c.b16 %v1974, %v1972
    %v1993 = vpack.c.b16 %v1975, %v1973
    %v1994 = vpack.c.b16 %v1978, %v1976
    %v1995 = vpack.c.b16 %v1979, %v1977
    %2012 = vmatprep.subr.bf16.mxu0 %v1995
    %2013 = vmatpush1.bf16.msra.mxu0 %v1994
    %2014 = vmatprep.subr.bf16.mxu0 %v1993
    %2015 = vmatpush1.bf16.msra.mxu0 %v1992
    %2016 = vmatprep.subr.bf16.mxu0 %v1991
    %2017 = vmatpush1.bf16.msra.mxu0 %v1990
    %2018 = vmatprep.subr.bf16.mxu0 %v1989
    %2019 = vmatpush1.bf16.msra.mxu0 %v1988
    %2020 = vmatprep.subr.bf16.mxu0 %v1987
    %2021 = vmatpush1.bf16.msra.mxu0 %v1986
    %2022 = vmatprep.subr.bf16.mxu0 %v1985
    %2023 = vmatpush1.bf16.msra.mxu0 %v1984
    %2024 = vmatprep.subr.bf16.mxu0 %v1983
    %2025 = vmatpush1.bf16.msra.mxu0 %v1982
    %2026 = vmatprep.subr.bf16.mxu0 %v1981
    %2027 = vmatpush1.bf16.msra.mxu0 %v1980
    %2028 = vmatprep.subr.bf16.mxu0 0
    %2029 = vmatpush2.bf16.msra.mxu0 0
    %2030 = vmatprep.subr.bf16.mxu0 0
    %2031 = vmatpush2.bf16.msra.mxu0 0
    %2032 = vmatprep.subr.bf16.mxu0 0
    %2033 = vmatpush2.bf16.msra.mxu0 0
    %2034 = vmatprep.subr.bf16.mxu0 0
    %2035 = vmatpush2.bf16.msra.mxu0 0
    %2036 = vmatprep.subr.bf16.mxu0 0
    %2037 = vmatpush2.bf16.msra.mxu0 0
    %2038 = vmatprep.subr.bf16.mxu0 0
    %2039 = vmatpush2.bf16.msra.mxu0 0
    %2040 = vmatprep.subr.bf16.mxu0 0
    %2041 = vmatpush2.bf16.msra.mxu0 0
    %2042 = vmatprep.subr.bf16.mxu0 0
    %2043 = vmatpush2.bf16.msra.mxu0 0
    %2044 = vmatprep.mubr.bf16.mxu0 0
    %2045 = vmatmul.mubr.bf16.gmra.mxu0 %v1449
    %v2046 = vpop.f32.mrf.mxu0
    %v2047 = vadd.f32 0.0, %v2046
    %v2048 = vpop.f32.mrf.mxu0
    %v2049 = vadd.f32 0.0, %v2048
    %v2050 = vpop.f32.mrf.mxu0
    %v2051 = vpop.f32.mrf.mxu0
    %2052 = vdwg.mxu0
    %v2053 = vadd.f32 %v2047, 1.0
    %v2054 = vmul.f32 %v1914, %v2053
    %v2055 = vadd.f32 %v2054, %v2049
    %s2056 = scalar_lea.vmem [#allocation6], 192
    %v2057 = vld [vmem:[%s2056] sm:$0xf]
    %v2058 = vld [vmem:[%s2056 + $0x4] sm:$0xf]
    %v2059 = vld [vmem:[%s2056 + $0x8] sm:$0xf]
    %v2060 = vld [vmem:[%s2056 + $0xc] sm:$0xf]
    %v2061 = vld [vmem:[%s2056 + $0x10] sm:$0xf]
    %v2062 = vld [vmem:[%s2056 + $0x14] sm:$0xf]
    %v2063 = vld [vmem:[%s2056 + $0x18] sm:$0xf]
    %v2064 = vld [vmem:[%s2056 + $0x1c] sm:$0xf]
    %v2065 = vld [vmem:[%s2056 + $0x20] sm:$0xf]
    %v2066 = vld [vmem:[%s2056 + $0x24] sm:$0xf]
    %v2067 = vld [vmem:[%s2056 + $0x28] sm:$0xf]
    %v2068 = vld [vmem:[%s2056 + $0x2c] sm:$0xf]
    %v2069 = vld [vmem:[%s2056 + $0x30] sm:$0xf]
    %v2070 = vld [vmem:[%s2056 + $0x34] sm:$0xf]
    %v2071 = vld [vmem:[%s2056 + $0x38] sm:$0xf]
    %v2072 = vld [vmem:[%s2056 + $0x3c] sm:$0xf]
    %s2073 = scalar_lea.vmem %s6, 16
    %v2074 = vld [vmem:[%s2073] sm:$0x7]
    %v2075 = vpack.c.bf16 %v2055, %v2055
    %v2076 = vlaneseq
    %v2077 = vshrl.u32 %v2076, 7
    %v2078 = vsub.s32 0, %v2077
    %v2079 = vrot.slane %v2074, %v2078
    %v2096 = vunpack.c.l.b16 %v2057
    %v2097 = vunpack.c.l.b16 %v2058
    %v2098 = vunpack.c.l.b16 %v2059
    %v2099 = vunpack.c.l.b16 %v2060
    %v2100 = vunpack.c.l.b16 %v2061
    %v2101 = vunpack.c.l.b16 %v2062
    %v2102 = vunpack.c.l.b16 %v2063
    %v2103 = vunpack.c.l.b16 %v2064
    %v2104 = vunpack.c.l.b16 %v2065
    %v2105 = vunpack.c.l.b16 %v2066
    %v2106 = vunpack.c.l.b16 %v2067
    %v2107 = vunpack.c.l.b16 %v2068
    %v2108 = vunpack.c.l.b16 %v2069
    %v2109 = vunpack.c.l.b16 %v2070
    %v2110 = vunpack.c.l.b16 %v2071
    %v2111 = vunpack.c.l.b16 %v2072
    %v2112 = vpack.c.b16 %v2097, %v2096
    %v2113 = vpack.c.b16 %v2099, %v2098
    %v2114 = vpack.c.b16 %v2101, %v2100
    %v2115 = vpack.c.b16 %v2103, %v2102
    %v2116 = vpack.c.b16 %v2105, %v2104
    %v2117 = vpack.c.b16 %v2107, %v2106
    %v2118 = vpack.c.b16 %v2109, %v2108
    %v2119 = vpack.c.b16 %v2111, %v2110
    %2128 = vmatprep.subr.bf16.mxu0 0
    %2129 = vmatpush1.bf16.msra.mxu0 %v2119
    %2130 = vmatprep.subr.bf16.mxu0 0
    %2131 = vmatpush1.bf16.msra.mxu0 %v2118
    %2132 = vmatprep.subr.bf16.mxu0 0
    %2133 = vmatpush1.bf16.msra.mxu0 %v2117
    %2134 = vmatprep.subr.bf16.mxu0 0
    %2135 = vmatpush1.bf16.msra.mxu0 %v2116
    %2136 = vmatprep.subr.bf16.mxu0 0
    %2137 = vmatpush1.bf16.msra.mxu0 %v2115
    %2138 = vmatprep.subr.bf16.mxu0 0
    %2139 = vmatpush1.bf16.msra.mxu0 %v2114
    %2140 = vmatprep.subr.bf16.mxu0 0
    %2141 = vmatpush1.bf16.msra.mxu0 %v2113
    %2142 = vmatprep.subr.bf16.mxu0 0
    %2143 = vmatpush1.bf16.msra.mxu0 %v2112
    %2144 = vmatprep.subr.bf16.mxu0 0
    %2145 = vmatpush2.bf16.msra.mxu0 0
    %2146 = vmatprep.subr.bf16.mxu0 0
    %2147 = vmatpush2.bf16.msra.mxu0 0
    %2148 = vmatprep.subr.bf16.mxu0 0
    %2149 = vmatpush2.bf16.msra.mxu0 0
    %2150 = vmatprep.subr.bf16.mxu0 0
    %2151 = vmatpush2.bf16.msra.mxu0 0
    %2152 = vmatprep.subr.bf16.mxu0 0
    %2153 = vmatpush2.bf16.msra.mxu0 0
    %2154 = vmatprep.subr.bf16.mxu0 0
    %2155 = vmatpush2.bf16.msra.mxu0 0
    %2156 = vmatprep.subr.bf16.mxu0 0
    %2157 = vmatpush2.bf16.msra.mxu0 0
    %2158 = vmatprep.subr.bf16.mxu0 0
    %2159 = vmatpush2.bf16.msra.mxu0 0
    %2160 = vmatprep.mubr.bf16.mxu0 0
    %2161 = vmatmul.mubr.bf16.gmra.mxu0 %v2075
    %v2162 = vpop.f32.mrf.mxu0
    %v2163 = vadd.f32 %v2079, %v2162
    %v2164 = vpop.f32.mrf.mxu0
    %v2165 = vpop.f32.mrf.mxu0
    %v2166 = vpop.f32.mrf.mxu0
    %2167 = vdwg.mxu0
    %v2168 = vmul.f32 %v2163, 0.5
    %v2169 = vmul.f32 %v2163, 0.70710677
    %v2170 = vand.u32 2147483647, %v2169
    %v2171 = vmul.f32 %v2170, 0.3275911
    %v2172 = vadd.f32 %v2171, 1.0
    %v2173 = vrcp.pop %v2172
    %v2174 = vmul.f32 1.0, %v2173
    %v2175 = vmul.f32 %v2174, 1.0614054
    %v2176 = vadd.f32 %v2175, -1.4531521
    %v2177 = vmul.f32 %v2174, %v2176
    %v2178 = vadd.f32 %v2177, 1.4214138
    %v2179 = vmul.f32 %v2174, %v2178
    %v2180 = vadd.f32 %v2179, -0.28449672
    %v2181 = vmul.f32 %v2174, %v2180
    %v2182 = vadd.f32 %v2181, 0.2548296
    %v2183 = vmul.f32 %v2174, %v2182
    %v2184 = vsub.f32 0.0, %v2170
    %v2185 = vmul.f32 %v2184, %v2170
    %v2186 = vmul.f32 %v2185, 1.442695
    %v2187 = vpow.pop %v2186
    %v2188 = vmul.f32 %v2183, %v2187
    %v2189 = vsub.f32 1.0, %v2188
    %vm2190 = vcmp.lt.f32.partialorder %v2169, 0.0
    %v2191 = vsub.f32 0.0, %v2189
    %v2192 = vsel %vm2190, %v2191, %v2189
    %v2193 = vadd.f32 %v2192, 1.0
    %v2194 = vmul.f32 %v2168, %v2193
    %2195 = vadd.xlane.f32.xlu0 %v2194
    %v2196 = vpop.xlane.xlu0 %2195
    %v2197 = vmul.f32 %v2196, %v1266
    %v2198 = vmul.f32 %v2194, %v2194
    %2199 = vadd.xlane.f32.xlu0 %v2198
    %v2200 = vpop.xlane.xlu0 %2199
    %v2201 = vmul.f32 %v2200, %v1266
    %v2202 = vsub.f32 %v2194, %v2197
    %v2203 = vmul.f32 %v2197, %v2197
    %v2204 = vsub.f32 %v2201, %v2203
    %v2205 = vadd.f32 %v2204, 1e-05
    %v2206 = vrsqrt.pop %v2205
    %v2207 = vmul.f32 %v2202, %v2206
    %v2208 = vlaneseq
    %v2209 = vshrl.u32 %v2208, 7
    %v2210 = vsub.s32 1, %v2209
    %v2211 = vrot.slane %v2074, %v2210
    %v2212 = vmul.f32 %v2207, %v2211
    %v2213 = vlaneseq
    %v2214 = vshrl.u32 %v2213, 7
    %v2215 = vsub.s32 2, %v2214
    %v2216 = vrot.slane %v2074, %v2215
    %v2217 = vadd.f32 %v2212, %v2216
    %s2218 = scalar_lea.vmem [#allocation6], 256
    %v2219 = vld [vmem:[%s2218] sm:$0xf]
    %v2220 = vld [vmem:[%s2218 + $0x4] sm:$0xf]
    %v2221 = vld [vmem:[%s2218 + $0x8] sm:$0xf]
    %v2222 = vld [vmem:[%s2218 + $0xc] sm:$0xf]
    %v2223 = vld [vmem:[%s2218 + $0x10] sm:$0xf]
    %v2224 = vld [vmem:[%s2218 + $0x14] sm:$0xf]
    %v2225 = vld [vmem:[%s2218 + $0x18] sm:$0xf]
    %v2226 = vld [vmem:[%s2218 + $0x1c] sm:$0xf]
    %v2227 = vld [vmem:[%s2218 + $0x20] sm:$0xf]
    %v2228 = vld [vmem:[%s2218 + $0x24] sm:$0xf]
    %v2229 = vld [vmem:[%s2218 + $0x28] sm:$0xf]
    %v2230 = vld [vmem:[%s2218 + $0x2c] sm:$0xf]
    %v2231 = vld [vmem:[%s2218 + $0x30] sm:$0xf]
    %v2232 = vld [vmem:[%s2218 + $0x34] sm:$0xf]
    %v2233 = vld [vmem:[%s2218 + $0x38] sm:$0xf]
    %v2234 = vld [vmem:[%s2218 + $0x3c] sm:$0xf]
    %s2235 = scalar_lea.vmem %s6, 20
    %v2236 = vld [vmem:[%s2235] sm:$0x7]
    %v2237 = vpack.c.bf16 %v2217, %v2217
    %v2238 = vlaneseq
    %v2239 = vshrl.u32 %v2238, 7
    %v2240 = vsub.s32 0, %v2239
    %v2241 = vrot.slane %v2236, %v2240
    %v2258 = vunpack.c.l.b16 %v2219
    %v2259 = vunpack.c.l.b16 %v2220
    %v2260 = vunpack.c.l.b16 %v2221
    %v2261 = vunpack.c.l.b16 %v2222
    %v2262 = vunpack.c.l.b16 %v2223
    %v2263 = vunpack.c.l.b16 %v2224
    %v2264 = vunpack.c.l.b16 %v2225
    %v2265 = vunpack.c.l.b16 %v2226
    %v2266 = vunpack.c.l.b16 %v2227
    %v2267 = vunpack.c.l.b16 %v2228
    %v2268 = vunpack.c.l.b16 %v2229
    %v2269 = vunpack.c.l.b16 %v2230
    %v2270 = vunpack.c.l.b16 %v2231
    %v2271 = vunpack.c.l.b16 %v2232
    %v2272 = vunpack.c.l.b16 %v2233
    %v2273 = vunpack.c.l.b16 %v2234
    %v2274 = vpack.c.b16 %v2259, %v2258
    %v2275 = vpack.c.b16 %v2261, %v2260
    %v2276 = vpack.c.b16 %v2263, %v2262
    %v2277 = vpack.c.b16 %v2265, %v2264
    %v2278 = vpack.c.b16 %v2267, %v2266
    %v2279 = vpack.c.b16 %v2269, %v2268
    %v2280 = vpack.c.b16 %v2271, %v2270
    %v2281 = vpack.c.b16 %v2273, %v2272
    %2290 = vmatprep.subr.bf16.mxu0 0
    %2291 = vmatpush1.bf16.msra.mxu0 %v2281
    %2292 = vmatprep.subr.bf16.mxu0 0
    %2293 = vmatpush1.bf16.msra.mxu0 %v2280
    %2294 = vmatprep.subr.bf16.mxu0 0
    %2295 = vmatpush1.bf16.msra.mxu0 %v2279
    %2296 = vmatprep.subr.bf16.mxu0 0
    %2297 = vmatpush1.bf16.msra.mxu0 %v2278
    %2298 = vmatprep.subr.bf16.mxu0 0
    %2299 = vmatpush1.bf16.msra.mxu0 %v2277
    %2300 = vmatprep.subr.bf16.mxu0 0
    %2301 = vmatpush1.bf16.msra.mxu0 %v2276
    %2302 = vmatprep.subr.bf16.mxu0 0
    %2303 = vmatpush1.bf16.msra.mxu0 %v2275
    %2304 = vmatprep.subr.bf16.mxu0 0
    %2305 = vmatpush1.bf16.msra.mxu0 %v2274
    %2306 = vmatprep.subr.bf16.mxu0 0
    %2307 = vmatpush2.bf16.msra.mxu0 0
    %2308 = vmatprep.subr.bf16.mxu0 0
    %2309 = vmatpush2.bf16.msra.mxu0 0
    %2310 = vmatprep.subr.bf16.mxu0 0
    %2311 = vmatpush2.bf16.msra.mxu0 0
    %2312 = vmatprep.subr.bf16.mxu0 0
    %2313 = vmatpush2.bf16.msra.mxu0 0
    %2314 = vmatprep.subr.bf16.mxu0 0
    %2315 = vmatpush2.bf16.msra.mxu0 0
    %2316 = vmatprep.subr.bf16.mxu0 0
    %2317 = vmatpush2.bf16.msra.mxu0 0
    %2318 = vmatprep.subr.bf16.mxu0 0
    %2319 = vmatpush2.bf16.msra.mxu0 0
    %2320 = vmatprep.subr.bf16.mxu0 0
    %2321 = vmatpush2.bf16.msra.mxu0 0
    %2322 = vmatprep.mubr.bf16.mxu0 0
    %2323 = vmatmul.mubr.bf16.gmra.mxu0 %v2237
    %v2324 = vpop.f32.mrf.mxu0
    %v2325 = vadd.f32 %v2241, %v2324
    %v2326 = vpop.f32.mrf.mxu0
    %v2327 = vpop.f32.mrf.mxu0
    %v2328 = vpop.f32.mrf.mxu0
    %2329 = vdwg.mxu0
    %v2330 = vmul.f32 %v2325, 0.5
    %v2331 = vmul.f32 %v2325, 0.70710677
    %v2332 = vand.u32 2147483647, %v2331
    %v2333 = vmul.f32 %v2332, 0.3275911
    %v2334 = vadd.f32 %v2333, 1.0
    %v2335 = vrcp.pop %v2334
    %v2336 = vmul.f32 1.0, %v2335
    %v2337 = vmul.f32 %v2336, 1.0614054
    %v2338 = vadd.f32 %v2337, -1.4531521
    %v2339 = vmul.f32 %v2336, %v2338
    %v2340 = vadd.f32 %v2339, 1.4214138
    %v2341 = vmul.f32 %v2336, %v2340
    %v2342 = vadd.f32 %v2341, -0.28449672
    %v2343 = vmul.f32 %v2336, %v2342
    %v2344 = vadd.f32 %v2343, 0.2548296
    %v2345 = vmul.f32 %v2336, %v2344
    %v2346 = vsub.f32 0.0, %v2332
    %v2347 = vmul.f32 %v2346, %v2332
    %v2348 = vmul.f32 %v2347, 1.442695
    %v2349 = vpow.pop %v2348
    %v2350 = vmul.f32 %v2345, %v2349
    %v2351 = vsub.f32 1.0, %v2350
    %vm2352 = vcmp.lt.f32.partialorder %v2331, 0.0
    %v2353 = vsub.f32 0.0, %v2351
    %v2354 = vsel %vm2352, %v2353, %v2351
    %v2355 = vadd.f32 %v2354, 1.0
    %v2356 = vmul.f32 %v2330, %v2355
    %2357 = vadd.xlane.f32.xlu0 %v2356
    %v2358 = vpop.xlane.xlu0 %2357
    %v2359 = vmul.f32 %v2358, %v1266
    %v2360 = vmul.f32 %v2356, %v2356
    %2361 = vadd.xlane.f32.xlu0 %v2360
    %v2362 = vpop.xlane.xlu0 %2361
    %v2363 = vmul.f32 %v2362, %v1266
    %v2364 = vsub.f32 %v2356, %v2359
    %v2365 = vmul.f32 %v2359, %v2359
    %v2366 = vsub.f32 %v2363, %v2365
    %v2367 = vadd.f32 %v2366, 1e-05
    %v2368 = vrsqrt.pop %v2367
    %v2369 = vmul.f32 %v2364, %v2368
    %v2370 = vlaneseq
    %v2371 = vshrl.u32 %v2370, 7
    %v2372 = vsub.s32 1, %v2371
    %v2373 = vrot.slane %v2236, %v2372
    %v2374 = vmul.f32 %v2369, %v2373
    %v2375 = vlaneseq
    %v2376 = vshrl.u32 %v2375, 7
    %v2377 = vsub.s32 2, %v2376
    %v2378 = vrot.slane %v2236, %v2377
    %v2379 = vadd.f32 %v2374, %v2378
    %v2380 = vadd.f32 %v2379, %v1914
    %s2381 = scalar_lea.vmem %s6, 24
    %v2382 = vld [vmem:[%s2381] sm:$0x7]
    %v2383 = vpack.c.bf16 %v2380, %v2380
    %v2384 = vld [vmem:[%s8] sm:$0xf]
    %v2385 = vld [vmem:[%s8 + $0x4] sm:$0xf]
    %v2386 = vld [vmem:[%s8 + $0x8] sm:$0xf]
    %v2387 = vld [vmem:[%s8 + $0xc] sm:$0xf]
    %v2388 = vld [vmem:[%s8 + $0x10] sm:$0xf]
    %v2389 = vld [vmem:[%s8 + $0x14] sm:$0xf]
    %v2390 = vld [vmem:[%s8 + $0x18] sm:$0xf]
    %v2391 = vld [vmem:[%s8 + $0x1c] sm:$0xf]
    %v2392 = vld [vmem:[%s8 + $0x20] sm:$0xf]
    %v2393 = vld [vmem:[%s8 + $0x24] sm:$0xf]
    %v2394 = vld [vmem:[%s8 + $0x28] sm:$0xf]
    %v2395 = vld [vmem:[%s8 + $0x2c] sm:$0xf]
    %v2396 = vld [vmem:[%s8 + $0x30] sm:$0xf]
    %v2397 = vld [vmem:[%s8 + $0x34] sm:$0xf]
    %v2398 = vld [vmem:[%s8 + $0x38] sm:$0xf]
    %v2399 = vld [vmem:[%s8 + $0x3c] sm:$0xf]
    %v2400 = vlaneseq
    %v2401 = vshrl.u32 %v2400, 7
    %v2402 = vsub.s32 0, %v2401
    %v2403 = vrot.slane %v2382, %v2402
    %v2420 = vunpack.c.l.b16 %v2384
    %v2421 = vunpack.c.l.b16 %v2385
    %v2422 = vunpack.c.l.b16 %v2386
    %v2423 = vunpack.c.l.b16 %v2387
    %v2424 = vunpack.c.l.b16 %v2388
    %v2425 = vunpack.c.l.b16 %v2389
    %v2426 = vunpack.c.l.b16 %v2390
    %v2427 = vunpack.c.l.b16 %v2391
    %v2428 = vunpack.c.l.b16 %v2392
    %v2429 = vunpack.c.l.b16 %v2393
    %v2430 = vunpack.c.l.b16 %v2394
    %v2431 = vunpack.c.l.b16 %v2395
    %v2432 = vunpack.c.l.b16 %v2396
    %v2433 = vunpack.c.l.b16 %v2397
    %v2434 = vunpack.c.l.b16 %v2398
    %v2435 = vunpack.c.l.b16 %v2399
    %v2436 = vpack.c.b16 %v2421, %v2420
    %v2437 = vpack.c.b16 %v2423, %v2422
    %v2438 = vpack.c.b16 %v2425, %v2424
    %v2439 = vpack.c.b16 %v2427, %v2426
    %v2440 = vpack.c.b16 %v2429, %v2428
    %v2441 = vpack.c.b16 %v2431, %v2430
    %v2442 = vpack.c.b16 %v2433, %v2432
    %v2443 = vpack.c.b16 %v2435, %v2434
    %2452 = vmatprep.subr.bf16.mxu0 0
    %2453 = vmatpush1.bf16.msra.mxu0 %v2443
    %2454 = vmatprep.subr.bf16.mxu0 0
    %2455 = vmatpush1.bf16.msra.mxu0 %v2442
    %2456 = vmatprep.subr.bf16.mxu0 0
    %2457 = vmatpush1.bf16.msra.mxu0 %v2441
    %2458 = vmatprep.subr.bf16.mxu0 0
    %2459 = vmatpush1.bf16.msra.mxu0 %v2440
    %2460 = vmatprep.subr.bf16.mxu0 0
    %2461 = vmatpush1.bf16.msra.mxu0 %v2439
    %2462 = vmatprep.subr.bf16.mxu0 0
    %2463 = vmatpush1.bf16.msra.mxu0 %v2438
    %2464 = vmatprep.subr.bf16.mxu0 0
    %2465 = vmatpush1.bf16.msra.mxu0 %v2437
    %2466 = vmatprep.subr.bf16.mxu0 0
    %2467 = vmatpush1.bf16.msra.mxu0 %v2436
    %2468 = vmatprep.subr.bf16.mxu0 0
    %2469 = vmatpush2.bf16.msra.mxu0 0
    %2470 = vmatprep.subr.bf16.mxu0 0
    %2471 = vmatpush2.bf16.msra.mxu0 0
    %2472 = vmatprep.subr.bf16.mxu0 0
    %2473 = vmatpush2.bf16.msra.mxu0 0
    %2474 = vmatprep.subr.bf16.mxu0 0
    %2475 = vmatpush2.bf16.msra.mxu0 0
    %2476 = vmatprep.subr.bf16.mxu0 0
    %2477 = vmatpush2.bf16.msra.mxu0 0
    %2478 = vmatprep.subr.bf16.mxu0 0
    %2479 = vmatpush2.bf16.msra.mxu0 0
    %2480 = vmatprep.subr.bf16.mxu0 0
    %2481 = vmatpush2.bf16.msra.mxu0 0
    %2482 = vmatprep.subr.bf16.mxu0 0
    %2483 = vmatpush2.bf16.msra.mxu0 0
    %2484 = vmatprep.mubr.bf16.mxu0 0
    %2485 = vmatmul.mubr.bf16.gmra.mxu0 %v2383
    %v2486 = vpop.f32.mrf.mxu0
    %v2487 = vadd.f32 %v2403, %v2486
    %v2488 = vpop.f32.mrf.mxu0
    %v2489 = vpop.f32.mrf.mxu0
    %v2490 = vpop.f32.mrf.mxu0
    %2491 = vdwg.mxu0
    %v2492 = vmul.f32 %v2487, 0.2
    %v2493 = vtanh.pop %v2492
    %v2494 = vmul.f32 %v2493, 5.0
    %v2495 = vmul.f32 %v2494, 1.442695
    %v2496 = vpow.pop %v2495
    %2497 = vst [vmem:[%s9] sm:$0xff] %v2496
    // Predicated region
    $region54: #{model_cube_forward.1} parent=1 // pred_check
      _
    $region55: #{model_cube_forward.1} parent=1 // pred_check_branch
      %2499 = sbr.rel (0) target = $region57
    $region56: #{model_cube_forward.1} parent=1 // pred_region
      _
    $region57: #{model_cube_forward.1} parent=1 // pred_fallthru
      _
    // Predicated region
    $region58: #{model_cube_forward.1} parent=1 // pred_check
      _
    $region59: #{model_cube_forward.1} parent=1 // pred_check_branch
      %2501 = sbr.rel (0) target = $region61
    $region60: #{model_cube_forward.1} parent=1 // pred_region
      _
    $region61: #{model_cube_forward.1} parent=1 // pred_fallthru
      _
    %2502 = vsyncpa [#allocation3], 1
    %2503 = vsyncpa [#allocation5], 1
    %2504 = vsyncpa [#allocation8], 1

</llo_original>
